<compile_context>
chip_gen: v7x
topology: tpu7x:2x2x1
jax: 0.10.0
libtpu: 0.0.40
codegen_flags: <defaults>
</compile_context>

<pallas_src>
import functools

import numpy as np
import jax
import jax.numpy as jnp
from jax.experimental import pallas as pl
from jax.experimental.pallas import tpu as pltpu

IS_RELU_HIDDEN = 1
IS_RELU_HIDDEN_AND_OUT = 2


def _round_up(n, m):
    return ((n + m - 1) // m) * m


def _vmem_bytes(shape, dtype):
    """Conservative VMEM footprint of one resident array (tile-padded)."""
    item = np.dtype(dtype).itemsize
    if len(shape) < 2:
        n = shape[0] if shape else 1
        return _round_up(n * item, 512)
    sub = 8 * (4 // item) if item < 4 else 8        # 8 for f32, 16 for bf16
    lead = 1
    for s in shape[:-2]:
        lead *= s
    return lead * _round_up(shape[-2], sub) * _round_up(shape[-1], 128) * item


def _pad_gate_cols(w, H, Hp):
    """(..., 4*H) -> (..., 4*Hp), zero-padding each of the 4 gate blocks."""
    lead = w.shape[:-1]
    w4 = w.reshape(*lead, 4, H)
    w4 = jnp.pad(w4, [(0, 0)] * len(lead) + [(0, 0), (0, Hp - H)])
    return w4.reshape(*lead, 4 * Hp)


# ----------------------------------------------------------------------------
# Single fused kernel: LSTM stack + FFN stack.
# refs (all full-array VMEM blocks, grid-less pallas_call):
#   x (T*Bp, insize) bf16,
#   per LSTM layer: w_ih (Din|Hp,4Hp) bf16, w_hh (Hp,4Hp) bf16, b (1,4Hp) f32,
#   per hidden FFN layer: w (Hp,Hp) bf16, b (1,Hp) f32,
#   output layer: w_ol (Hp,Op) bf16, b_ol (1,Op) f32,
#   out (T*Bp, Op) f32,
#   scratch: pg_sc (tch*Bp,4Hp) f32, seq_a/seq_b (T*Bp,Hp) bf16.
# Gate order matches PyTorch: i, f, g, o. Padded gate columns stay exactly 0
# in h/c (zero weights + zero bias -> i=f=o=0.5, g=0, c=0, h=0).
# ----------------------------------------------------------------------------
def _fused_lstm_ffn_kernel(*refs, numlstm, numffn, T, Bp, Hp, activ, tch):
    n_in = 1 + 3 * numlstm + 2 * (numffn - 1) + 2
    in_refs = refs[:n_in]
    out_ref = refs[n_in]
    pg_sc, seq_a, seq_b = refs[n_in + 1:n_in + 4]

    idx = 0
    x_ref = in_refs[idx]; idx += 1
    lstm_w = []
    for _ in range(numlstm):
        lstm_w.append(tuple(in_refs[idx:idx + 3])); idx += 3
    hl_w = []
    for _ in range(numffn - 1):
        hl_w.append(tuple(in_refs[idx:idx + 2])); idx += 2
    w_ol_ref, b_ol_ref = in_refs[idx], in_refs[idx + 1]

    seq_bufs = (seq_a, seq_b)
    src = None

    # ---------------- LSTM stack ----------------
    for layer, (wih_ref, whh_ref, b_ref) in enumerate(lstm_w):
        dst = seq_bufs[layer % 2]
        wih = wih_ref[...]                       # bf16 (Din|Hp, 4Hp), hoisted
        whh = whh_ref[...]                       # bf16 (Hp, 4Hp), hoisted
        bias = b_ref[...]                        # f32  (1, 4Hp)

        h = jnp.zeros((Bp, Hp), jnp.float32)     # f32 loop carries
        c = jnp.zeros((Bp, Hp), jnp.float32)

        for c0 in range(0, T, tch):              # chunked pre-gates
            csize = min(tch, T - c0)
            rows = csize * Bp
            row0 = c0 * Bp

            xin = (x_ref if layer == 0 else src)[pl.ds(row0, rows), :]
            # bf16 x bf16 MXU matmul, f32 accumulate, bias folded in.
            pg_sc[pl.ds(0, rows), :] = (
                jnp.dot(xin, wih, preferred_element_type=jnp.float32) + bias)

            def step(t, carry, _dst=dst, _row0=row0):
                h, c = carry
                row = pl.multiple_of(t * Bp, Bp)
                row_abs = pl.multiple_of(_row0 + t * Bp, Bp)
                g = pg_sc[pl.ds(row, Bp), :] + jnp.dot(
                    h.astype(jnp.bfloat16), whh,
                    preferred_element_type=jnp.float32)
                # lane-aligned gate slices (Hp % 128 == 0)
                i_g = jax.nn.sigmoid(g[:, 0 * Hp:1 * Hp])
                f_g = jax.nn.sigmoid(g[:, 1 * Hp:2 * Hp])
                g_g = jnp.tanh(g[:, 2 * Hp:3 * Hp])
                o_g = jax.nn.sigmoid(g[:, 3 * Hp:4 * Hp])
                c = f_g * c + i_g * g_g          # f32 cell update
                h = o_g * jnp.tanh(c)
                _dst[pl.ds(row_abs, Bp), :] = h.astype(_dst.dtype)  # bf16 seq
                return (h, c)

            h, c = jax.lax.fori_loop(0, csize, step, (h, c),
                                     unroll=min(csize, 8))
        src = dst

    # ---------------- fused FFN stack (row-chunked, weights resident) -------
    hl = [(w_r[...], b_r[...]) for (w_r, b_r) in hl_w]
    w_ol = w_ol_ref[...]
    b_ol = b_ol_ref[...]
    for c0 in range(0, T, tch):
        csize = min(tch, T - c0)
        rows = csize * Bp
        row0 = c0 * Bp
        y = src[pl.ds(row0, rows), :]            # bf16 (rows, Hp)
        for (w, b) in hl:
            y = jnp.dot(y, w, preferred_element_type=jnp.float32) + b
            if activ >= IS_RELU_HIDDEN:
                y = jnp.maximum(y, 0.0)
            y = y.astype(jnp.bfloat16)
        y = jnp.dot(y, w_ol, preferred_element_type=jnp.float32) + b_ol
        if activ >= IS_RELU_HIDDEN_AND_OUT:
            y = jnp.maximum(y, 0.0)
        out_ref[pl.ds(row0, rows), :] = y        # lane-dense f32 store


# ----------------------------------------------------------------------------
# Wrapper: layout plumbing (pad batch/gates/output, bf16 casts, unpad output).
# ----------------------------------------------------------------------------
def model_forward(x, params, activ):
    """x: (B, T, insize) batch-first float input, like the torch module."""
    x = x.astype(jnp.float32)
    B, T, D = x.shape
    H = params["lstm"][0][1].shape[0]
    numlstm = len(params["lstm"])
    numffn = len(params["hl"]) + 1
    outsize = params["ol"][0].shape[1]

    Hp = _round_up(max(H, 128), 128)          # lane-aligned gate / hidden dim
    Bp = _round_up(max(B, 1), 16)             # bf16 sublane-tile aligned batch
    Op = _round_up(max(outsize, 128), 128)    # lane-dense output width
    tch = min(T, 64)                          # pre-gate time-chunk length
    # TODO(synk): on v5e, pack several timesteps' outputs per 128-lane row
    # (or emit bf16) to cut HBM write amplification when outsize << 128.

    # time-major, batch-padded, flattened: row index = t*Bp + b
    x_tm = jnp.transpose(x, (1, 0, 2))                         # (T, B, D)
    x_tm = jnp.pad(x_tm, ((0, 0), (0, Bp - B), (0, 0)))
    x2 = x_tm.reshape(T * Bp, D).astype(jnp.bfloat16)

    inputs = [x2]
    for li, (w_ih, w_hh, b) in enumerate(params["lstm"]):
        d_in = w_ih.shape[0]
        wih_p = _pad_gate_cols(w_ih, H, Hp)
        if li > 0:                                             # pad K rows
            wih_p = jnp.pad(wih_p, ((0, Hp - d_in), (0, 0)))
        whh_p = jnp.pad(_pad_gate_cols(w_hh, H, Hp), ((0, Hp - H), (0, 0)))
        b_p = _pad_gate_cols(b, H, Hp)
        inputs += [wih_p.astype(jnp.bfloat16), whh_p.astype(jnp.bfloat16),
                   b_p.astype(jnp.float32)]
    for (w, b) in params["hl"]:
        inputs += [jnp.pad(w, ((0, Hp - H), (0, Hp - H))).astype(jnp.bfloat16),
                   jnp.pad(b, ((0, 0), (0, Hp - H))).astype(jnp.float32)]
    w_ol, b_ol = params["ol"]
    inputs += [jnp.pad(w_ol, ((0, Hp - H), (0, Op - outsize))).astype(jnp.bfloat16),
               jnp.pad(b_ol, ((0, 0), (0, Op - outsize))).astype(jnp.float32)]

    out_shape = jax.ShapeDtypeStruct((T * Bp, Op), jnp.float32)
    scratch = [
        pltpu.VMEM((tch * Bp, 4 * Hp), jnp.float32),   # pre-gate chunk (f32)
        pltpu.VMEM((T * Bp, Hp), jnp.bfloat16),        # sequence ping (bf16)
        pltpu.VMEM((T * Bp, Hp), jnp.bfloat16),        # sequence pong (bf16)
    ]

    # Explicit VMEM budget: resident inputs + output + scratch, 1.5x headroom.
    vmem = sum(_vmem_bytes(a.shape, a.dtype) for a in inputs)
    vmem += _vmem_bytes(out_shape.shape, out_shape.dtype)
    vmem += _vmem_bytes((tch * Bp, 4 * Hp), jnp.float32)
    vmem += 2 * _vmem_bytes((T * Bp, Hp), jnp.bfloat16)
    vmem_limit = min(max(int(vmem * 1.5) + (8 << 20), 32 << 20), 100 << 20)
    # TODO(synk): footprints beyond ~56 MiB need re-tiling for v7x (64 MiB VMEM).

    kernel = functools.partial(
        _fused_lstm_ffn_kernel,
        numlstm=numlstm, numffn=numffn, T=T, Bp=Bp, Hp=Hp,
        activ=int(activ), tch=tch)

    out = pl.pallas_call(
        kernel,
        out_shape=out_shape,
        scratch_shapes=scratch,
        compiler_params=pltpu.CompilerParams(vmem_limit_bytes=vmem_limit),
    )(*inputs)

    # strip padding: (T*Bp, Op) -> (B, T, outsize)
    out = out.reshape(T, Bp, Op)[:, :B, :outsize]
    return jnp.transpose(out, (1, 0, 2))


# ----------------------------------------------------------------------------
# Parameter init (PyTorch-style uniform(-1/sqrt(H), 1/sqrt(H))).
# LSTM biases b_ih and b_hh are combined into a single bias.
# ----------------------------------------------------------------------------
def init_params(key, insize, outsize, hidsize, numlstm, numffn):
    k = 1.0 / jnp.sqrt(jnp.float32(hidsize))
    params = {"lstm": [], "hl": [], "ol": None}
    for layer in range(numlstm):
        d_in = insize if layer == 0 else hidsize
        key, k1, k2, k3, k4 = jax.random.split(key, 5)
        w_ih = jax.random.uniform(k1, (d_in, 4 * hidsize), jnp.float32, -k, k)
        w_hh = jax.random.uniform(k2, (hidsize, 4 * hidsize), jnp.float32, -k, k)
        b_ih = jax.random.uniform(k3, (4 * hidsize,), jnp.float32, -k, k)
        b_hh = jax.random.uniform(k4, (4 * hidsize,), jnp.float32, -k, k)
        params["lstm"].append((w_ih, w_hh, (b_ih + b_hh)[None, :]))
    for _ in range(numffn - 1):
        key, k1, k2 = jax.random.split(key, 3)
        w = jax.random.uniform(k1, (hidsize, hidsize), jnp.float32, -k, k)
        b = jax.random.uniform(k2, (hidsize,), jnp.float32, -k, k)
        params["hl"].append((w, b[None, :]))
    key, k1, k2 = jax.random.split(key, 3)
    w = jax.random.uniform(k1, (hidsize, outsize), jnp.float32, -k, k)
    b = jax.random.uniform(k2, (outsize,), jnp.float32, -k, k)
    params["ol"] = (w, b[None, :])
    return params


# ----------------------------------------------------------------------------
# Pure-JAX reference. emulate_bf16=True mirrors the kernel's mixed precision
# (bf16 matmul operands, f32 accumulate / cell math) for a tight check.
# ----------------------------------------------------------------------------
def reference_forward(x, params, activ, emulate_bf16=False):
    f32 = jnp.float32

    def q(a):
        return a.astype(jnp.bfloat16).astype(f32) if emulate_bf16 else a.astype(f32)

    x = x.astype(f32)
    B, T, _ = x.shape
    seq = x
    for (w_ih, w_hh, b) in params["lstm"]:
        H = w_hh.shape[0]
        h = jnp.zeros((B, H), f32)
        c = jnp.zeros((B, H), f32)
        outs = []
        for t in range(T):
            g = q(seq[:, t, :]) @ q(w_ih) + q(h) @ q(w_hh) + b
            i = jax.nn.sigmoid(g[:, 0 * H:1 * H])
            f = jax.nn.sigmoid(g[:, 1 * H:2 * H])
            gg = jnp.tanh(g[:, 2 * H:3 * H])
            o = jax.nn.sigmoid(g[:, 3 * H:4 * H])
            c = f * c + i * gg
            h = o * jnp.tanh(c)
            outs.append(h)
        seq = jnp.stack(outs, axis=1)
    y = seq
    for (w, b) in params["hl"]:
        y = q(y) @ q(w) + b
        if activ >= IS_RELU_HIDDEN:
            y = jnp.maximum(y, 0.0)
    w, b = params["ol"]
    y = q(y) @ q(w) + b
    if activ >= IS_RELU_HIDDEN_AND_OUT:
        y = jnp.maximum(y, 0.0)
    return y


if __name__ == "__main__":
    insize, outsize, hidsize = 8, 4, 32
    numlstm, numffn, activ = 2, 2, 1
    B, T = 2, 8

    key = jax.random.PRNGKey(0)
    key, kx = jax.random.split(key)
    x = jax.random.normal(kx, (B, T, insize), jnp.float32)

    params = init_params(key, insize, outsize, hidsize, numlstm, numffn)

    fwd = jax.jit(functools.partial(model_forward, activ=activ))
    out = jax.block_until_ready(fwd(x, params))

    ref_mp = reference_forward(x, params, activ, emulate_bf16=True)
    ref_f32 = reference_forward(x, params, activ, emulate_bf16=False)
    assert out.shape == (B, T, outsize)
    err_mp = float(jnp.max(jnp.abs(out - ref_mp)))
    err_f32 = float(jnp.max(jnp.abs(out - ref_f32)))
    # Tight check vs. mixed-precision (bf16-operand) reference; loose sanity
    # check vs. full-f32 reference (bf16 MXU operands cost ~0.3% rel. error).
    assert jnp.allclose(out, ref_mp, atol=2e-3, rtol=2e-3), (err_mp, err_f32)
    assert jnp.allclose(out, ref_f32, atol=5e-2, rtol=5e-2), (err_mp, err_f32)

    print("KERNEL_OK")
</pallas_src>

<mosaic_0001>
module attributes {stable_mosaic.version = 11 : i64} {
  func.func @_fused_lstm_ffn_kernel(%arg0: memref<128x8xbf16, #tpu.memory_space<vmem>>, %arg1: memref<8x512xbf16, #tpu.memory_space<vmem>>, %arg2: memref<128x512xbf16, #tpu.memory_space<vmem>>, %arg3: memref<1x512xf32, #tpu.memory_space<vmem>>, %arg4: memref<128x512xbf16, #tpu.memory_space<vmem>>, %arg5: memref<128x512xbf16, #tpu.memory_space<vmem>>, %arg6: memref<1x512xf32, #tpu.memory_space<vmem>>, %arg7: memref<128x128xbf16, #tpu.memory_space<vmem>>, %arg8: memref<1x128xf32, #tpu.memory_space<vmem>>, %arg9: memref<128x128xbf16, #tpu.memory_space<vmem>>, %arg10: memref<1x128xf32, #tpu.memory_space<vmem>>, %arg11: memref<128x128xf32, #tpu.memory_space<vmem>>, %arg12: memref<128x512xf32, #tpu.memory_space<vmem>>, %arg13: memref<128x128xbf16, #tpu.memory_space<vmem>>, %arg14: memref<128x128xbf16, #tpu.memory_space<vmem>>) attributes {dimension_semantics = [], scalar_prefetch = 0 : i64, scratch_operands = 3 : i64, tpu.core_type = #tpu.core_type<tc>} {
    %c0 = arith.constant 0 : index
    %c0_0 = arith.constant 0 : index
    %0 = vector.load %arg1[%c0, %c0_0] : memref<8x512xbf16, #tpu.memory_space<vmem>>, vector<8x512xbf16>
    %c0_1 = arith.constant 0 : index
    %c0_2 = arith.constant 0 : index
    %1 = vector.load %arg2[%c0_1, %c0_2] : memref<128x512xbf16, #tpu.memory_space<vmem>>, vector<128x512xbf16>
    %c0_3 = arith.constant 0 : index
    %c0_4 = arith.constant 0 : index
    %2 = vector.load %arg3[%c0_3, %c0_4] : memref<1x512xf32, #tpu.memory_space<vmem>>, vector<1x512xf32>
    %cst = arith.constant 0.000000e+00 : f32
    %3 = vector.broadcast %cst : f32 to vector<16x128xf32>
    %cst_5 = arith.constant 0.000000e+00 : f32
    %4 = vector.broadcast %cst_5 : f32 to vector<16x128xf32>
    %c0_6 = arith.constant 0 : index
    %c0_7 = arith.constant 0 : index
    %5 = vector.load %arg0[%c0_6, %c0_7] : memref<128x8xbf16, #tpu.memory_space<vmem>>, vector<128x8xbf16>
    %cst_8 = arith.constant dense<0.000000e+00> : vector<128x512xf32>
    %6 = tpu.matmul %5, %0, %cst_8 {dimension_numbers = #tpu.dot_dimension_numbers<[1], [0], [0], [1], [0, 0, 1, 1], [], []>} : vector<128x8xbf16>, vector<8x512xbf16>, vector<128x512xf32> -> vector<128x512xf32>
    %7 = vector.broadcast %2 : vector<1x512xf32> to vector<128x512xf32>
    %8 = arith.addf %6, %7 : vector<128x512xf32>
    %c0_9 = arith.constant 0 : index
    %c0_10 = arith.constant 0 : index
    %9 = vector.load %arg12[%c0_9, %c0_10] : memref<128x512xf32, #tpu.memory_space<vmem>>, vector<128x512xf32>
    tpu.vector_store %arg12[%c0_9, %c0_10], %8 {strides = array<i32>} : memref<128x512xf32, #tpu.memory_space<vmem>>, vector<128x512xf32>,
    %c0_i32 = arith.constant 0 : i32
    %c16_i32 = arith.constant 16 : i32
    %10 = arith.muli %c0_i32, %c16_i32 : i32
    %11 = tpu.assume_multiple %10, 16 : i32
    %c16_i32_11 = arith.constant 16 : i32
    %12 = arith.muli %c0_i32, %c16_i32_11 : i32
    %c0_i32_12 = arith.constant 0 : i32
    %13 = arith.addi %c0_i32_12, %12 : i32
    %14 = tpu.assume_multiple %13, 16 : i32
    %15 = arith.index_cast %11 : i32 to index
    %c0_13 = arith.constant 0 : index
    %16 = vector.load %arg12[%15, %c0_13] : memref<128x512xf32, #tpu.memory_space<vmem>>, vector<16x512xf32>
    %17 = arith.truncf %3 : vector<16x128xf32> to vector<16x128xbf16>
    %cst_14 = arith.constant dense<0.000000e+00> : vector<16x512xf32>
    %18 = tpu.matmul %17, %1, %cst_14 {dimension_numbers = #tpu.dot_dimension_numbers<[1], [0], [0], [1], [0, 0, 1, 1], [], []>} : vector<16x128xbf16>, vector<128x512xbf16>, vector<16x512xf32> -> vector<16x512xf32>
    %19 = arith.addf %16, %18 : vector<16x512xf32>
    %20 = vector.extract_strided_slice %19 {offsets = [0, 0], sizes = [16, 128], strides = [1, 1]} : vector<16x512xf32> to vector<16x128xf32>
    %21 = arith.negf %20 : vector<16x128xf32>
    %22 = math.exp %21 : vector<16x128xf32>
    %cst_15 = arith.constant 1.000000e+00 : f32
    %23 = vector.broadcast %cst_15 : f32 to vector<16x128xf32>
    %24 = arith.addf %23, %22 : vector<16x128xf32>
    %25 = arith.divf %23, %24 : vector<16x128xf32>
    %26 = vector.extract_strided_slice %19 {offsets = [0, 128], sizes = [16, 128], strides = [1, 1]} : vector<16x512xf32> to vector<16x128xf32>
    %27 = arith.negf %26 : vector<16x128xf32>
    %28 = math.exp %27 : vector<16x128xf32>
    %cst_16 = arith.constant 1.000000e+00 : f32
    %29 = vector.broadcast %cst_16 : f32 to vector<16x128xf32>
    %30 = arith.addf %29, %28 : vector<16x128xf32>
    %31 = arith.divf %29, %30 : vector<16x128xf32>
    %32 = vector.extract_strided_slice %19 {offsets = [0, 256], sizes = [16, 128], strides = [1, 1]} : vector<16x512xf32> to vector<16x128xf32>
    %33 = math.tanh %32 : vector<16x128xf32>
    %34 = vector.extract_strided_slice %19 {offsets = [0, 384], sizes = [16, 128], strides = [1, 1]} : vector<16x512xf32> to vector<16x128xf32>
    %35 = arith.negf %34 : vector<16x128xf32>
    %36 = math.exp %35 : vector<16x128xf32>
    %cst_17 = arith.constant 1.000000e+00 : f32
    %37 = vector.broadcast %cst_17 : f32 to vector<16x128xf32>
    %38 = arith.addf %37, %36 : vector<16x128xf32>
    %39 = arith.divf %37, %38 : vector<16x128xf32>
    %40 = arith.mulf %31, %4 : vector<16x128xf32>
    %41 = arith.mulf %25, %33 : vector<16x128xf32>
    %42 = arith.addf %40, %41 : vector<16x128xf32>
    %43 = math.tanh %42 : vector<16x128xf32>
    %44 = arith.mulf %39, %43 : vector<16x128xf32>
    %45 = arith.truncf %44 : vector<16x128xf32> to vector<16x128xbf16>
    %46 = arith.index_cast %14 : i32 to index
    %c0_18 = arith.constant 0 : index
    %47 = vector.load %arg13[%46, %c0_18] : memref<128x128xbf16, #tpu.memory_space<vmem>>, vector<16x128xbf16>
    tpu.vector_store %arg13[%46, %c0_18], %45 {strides = array<i32>} : memref<128x128xbf16, #tpu.memory_space<vmem>>, vector<16x128xbf16>,
    %c1_i32 = arith.constant 1 : i32
    %c16_i32_19 = arith.constant 16 : i32
    %48 = arith.muli %c1_i32, %c16_i32_19 : i32
    %49 = tpu.assume_multiple %48, 16 : i32
    %c16_i32_20 = arith.constant 16 : i32
    %50 = arith.muli %c1_i32, %c16_i32_20 : i32
    %c0_i32_21 = arith.constant 0 : i32
    %51 = arith.addi %c0_i32_21, %50 : i32
    %52 = tpu.assume_multiple %51, 16 : i32
    %53 = arith.index_cast %49 : i32 to index
    %c0_22 = arith.constant 0 : index
    %54 = vector.load %arg12[%53, %c0_22] : memref<128x512xf32, #tpu.memory_space<vmem>>, vector<16x512xf32>
    %55 = arith.truncf %44 : vector<16x128xf32> to vector<16x128xbf16>
    %cst_23 = arith.constant dense<0.000000e+00> : vector<16x512xf32>
    %56 = tpu.matmul %55, %1, %cst_23 {dimension_numbers = #tpu.dot_dimension_numbers<[1], [0], [0], [1], [0, 0, 1, 1], [], []>} : vector<16x128xbf16>, vector<128x512xbf16>, vector<16x512xf32> -> vector<16x512xf32>
    %57 = arith.addf %54, %56 : vector<16x512xf32>
    %58 = vector.extract_strided_slice %57 {offsets = [0, 0], sizes = [16, 128], strides = [1, 1]} : vector<16x512xf32> to vector<16x128xf32>
    %59 = arith.negf %58 : vector<16x128xf32>
    %60 = math.exp %59 : vector<16x128xf32>
    %cst_24 = arith.constant 1.000000e+00 : f32
    %61 = vector.broadcast %cst_24 : f32 to vector<16x128xf32>
    %62 = arith.addf %61, %60 : vector<16x128xf32>
    %63 = arith.divf %61, %62 : vector<16x128xf32>
    %64 = vector.extract_strided_slice %57 {offsets = [0, 128], sizes = [16, 128], strides = [1, 1]} : vector<16x512xf32> to vector<16x128xf32>
    %65 = arith.negf %64 : vector<16x128xf32>
    %66 = math.exp %65 : vector<16x128xf32>
    %cst_25 = arith.constant 1.000000e+00 : f32
    %67 = vector.broadcast %cst_25 : f32 to vector<16x128xf32>
    %68 = arith.addf %67, %66 : vector<16x128xf32>
    %69 = arith.divf %67, %68 : vector<16x128xf32>
    %70 = vector.extract_strided_slice %57 {offsets = [0, 256], sizes = [16, 128], strides = [1, 1]} : vector<16x512xf32> to vector<16x128xf32>
    %71 = math.tanh %70 : vector<16x128xf32>
    %72 = vector.extract_strided_slice %57 {offsets = [0, 384], sizes = [16, 128], strides = [1, 1]} : vector<16x512xf32> to vector<16x128xf32>
    %73 = arith.negf %72 : vector<16x128xf32>
    %74 = math.exp %73 : vector<16x128xf32>
    %cst_26 = arith.constant 1.000000e+00 : f32
    %75 = vector.broadcast %cst_26 : f32 to vector<16x128xf32>
    %76 = arith.addf %75, %74 : vector<16x128xf32>
    %77 = arith.divf %75, %76 : vector<16x128xf32>
    %78 = arith.mulf %69, %42 : vector<16x128xf32>
    %79 = arith.mulf %63, %71 : vector<16x128xf32>
    %80 = arith.addf %78, %79 : vector<16x128xf32>
    %81 = math.tanh %80 : vector<16x128xf32>
    %82 = arith.mulf %77, %81 : vector<16x128xf32>
    %83 = arith.truncf %82 : vector<16x128xf32> to vector<16x128xbf16>
    %84 = arith.index_cast %52 : i32 to index
    %c0_27 = arith.constant 0 : index
    %85 = vector.load %arg13[%84, %c0_27] : memref<128x128xbf16, #tpu.memory_space<vmem>>, vector<16x128xbf16>
    tpu.vector_store %arg13[%84, %c0_27], %83 {strides = array<i32>} : memref<128x128xbf16, #tpu.memory_space<vmem>>, vector<16x128xbf16>,
    %c2_i32 = arith.constant 2 : i32
    %c16_i32_28 = arith.constant 16 : i32
    %86 = arith.muli %c2_i32, %c16_i32_28 : i32
    %87 = tpu.assume_multiple %86, 16 : i32
    %c16_i32_29 = arith.constant 16 : i32
    %88 = arith.muli %c2_i32, %c16_i32_29 : i32
    %c0_i32_30 = arith.constant 0 : i32
    %89 = arith.addi %c0_i32_30, %88 : i32
    %90 = tpu.assume_multiple %89, 16 : i32
    %91 = arith.index_cast %87 : i32 to index
    %c0_31 = arith.constant 0 : index
    %92 = vector.load %arg12[%91, %c0_31] : memref<128x512xf32, #tpu.memory_space<vmem>>, vector<16x512xf32>
    %93 = arith.truncf %82 : vector<16x128xf32> to vector<16x128xbf16>
    %cst_32 = arith.constant dense<0.000000e+00> : vector<16x512xf32>
    %94 = tpu.matmul %93, %1, %cst_32 {dimension_numbers = #tpu.dot_dimension_numbers<[1], [0], [0], [1], [0, 0, 1, 1], [], []>} : vector<16x128xbf16>, vector<128x512xbf16>, vector<16x512xf32> -> vector<16x512xf32>
    %95 = arith.addf %92, %94 : vector<16x512xf32>
    %96 = vector.extract_strided_slice %95 {offsets = [0, 0], sizes = [16, 128], strides = [1, 1]} : vector<16x512xf32> to vector<16x128xf32>
    %97 = arith.negf %96 : vector<16x128xf32>
    %98 = math.exp %97 : vector<16x128xf32>
    %cst_33 = arith.constant 1.000000e+00 : f32
    %99 = vector.broadcast %cst_33 : f32 to vector<16x128xf32>
    %100 = arith.addf %99, %98 : vector<16x128xf32>
    %101 = arith.divf %99, %100 : vector<16x128xf32>
    %102 = vector.extract_strided_slice %95 {offsets = [0, 128], sizes = [16, 128], strides = [1, 1]} : vector<16x512xf32> to vector<16x128xf32>
    %103 = arith.negf %102 : vector<16x128xf32>
    %104 = math.exp %103 : vector<16x128xf32>
    %cst_34 = arith.constant 1.000000e+00 : f32
    %105 = vector.broadcast %cst_34 : f32 to vector<16x128xf32>
    %106 = arith.addf %105, %104 : vector<16x128xf32>
    %107 = arith.divf %105, %106 : vector<16x128xf32>
    %108 = vector.extract_strided_slice %95 {offsets = [0, 256], sizes = [16, 128], strides = [1, 1]} : vector<16x512xf32> to vector<16x128xf32>
    %109 = math.tanh %108 : vector<16x128xf32>
    %110 = vector.extract_strided_slice %95 {offsets = [0, 384], sizes = [16, 128], strides = [1, 1]} : vector<16x512xf32> to vector<16x128xf32>
    %111 = arith.negf %110 : vector<16x128xf32>
    %112 = math.exp %111 : vector<16x128xf32>
    %cst_35 = arith.constant 1.000000e+00 : f32
    %113 = vector.broadcast %cst_35 : f32 to vector<16x128xf32>
    %114 = arith.addf %113, %112 : vector<16x128xf32>
    %115 = arith.divf %113, %114 : vector<16x128xf32>
    %116 = arith.mulf %107, %80 : vector<16x128xf32>
    %117 = arith.mulf %101, %109 : vector<16x128xf32>
    %118 = arith.addf %116, %117 : vector<16x128xf32>
    %119 = math.tanh %118 : vector<16x128xf32>
    %120 = arith.mulf %115, %119 : vector<16x128xf32>
    %121 = arith.truncf %120 : vector<16x128xf32> to vector<16x128xbf16>
    %122 = arith.index_cast %90 : i32 to index
    %c0_36 = arith.constant 0 : index
    %123 = vector.load %arg13[%122, %c0_36] : memref<128x128xbf16, #tpu.memory_space<vmem>>, vector<16x128xbf16>
    tpu.vector_store %arg13[%122, %c0_36], %121 {strides = array<i32>} : memref<128x128xbf16, #tpu.memory_space<vmem>>, vector<16x128xbf16>,
    %c3_i32 = arith.constant 3 : i32
    %c16_i32_37 = arith.constant 16 : i32
    %124 = arith.muli %c3_i32, %c16_i32_37 : i32
    %125 = tpu.assume_multiple %124, 16 : i32
    %c16_i32_38 = arith.constant 16 : i32
    %126 = arith.muli %c3_i32, %c16_i32_38 : i32
    %c0_i32_39 = arith.constant 0 : i32
    %127 = arith.addi %c0_i32_39, %126 : i32
    %128 = tpu.assume_multiple %127, 16 : i32
    %129 = arith.index_cast %125 : i32 to index
    %c0_40 = arith.constant 0 : index
    %130 = vector.load %arg12[%129, %c0_40] : memref<128x512xf32, #tpu.memory_space<vmem>>, vector<16x512xf32>
    %131 = arith.truncf %120 : vector<16x128xf32> to vector<16x128xbf16>
    %cst_41 = arith.constant dense<0.000000e+00> : vector<16x512xf32>
    %132 = tpu.matmul %131, %1, %cst_41 {dimension_numbers = #tpu.dot_dimension_numbers<[1], [0], [0], [1], [0, 0, 1, 1], [], []>} : vector<16x128xbf16>, vector<128x512xbf16>, vector<16x512xf32> -> vector<16x512xf32>
    %133 = arith.addf %130, %132 : vector<16x512xf32>
    %134 = vector.extract_strided_slice %133 {offsets = [0, 0], sizes = [16, 128], strides = [1, 1]} : vector<16x512xf32> to vector<16x128xf32>
    %135 = arith.negf %134 : vector<16x128xf32>
    %136 = math.exp %135 : vector<16x128xf32>
    %cst_42 = arith.constant 1.000000e+00 : f32
    %137 = vector.broadcast %cst_42 : f32 to vector<16x128xf32>
    %138 = arith.addf %137, %136 : vector<16x128xf32>
    %139 = arith.divf %137, %138 : vector<16x128xf32>
    %140 = vector.extract_strided_slice %133 {offsets = [0, 128], sizes = [16, 128], strides = [1, 1]} : vector<16x512xf32> to vector<16x128xf32>
    %141 = arith.negf %140 : vector<16x128xf32>
    %142 = math.exp %141 : vector<16x128xf32>
    %cst_43 = arith.constant 1.000000e+00 : f32
    %143 = vector.broadcast %cst_43 : f32 to vector<16x128xf32>
    %144 = arith.addf %143, %142 : vector<16x128xf32>
    %145 = arith.divf %143, %144 : vector<16x128xf32>
    %146 = vector.extract_strided_slice %133 {offsets = [0, 256], sizes = [16, 128], strides = [1, 1]} : vector<16x512xf32> to vector<16x128xf32>
    %147 = math.tanh %146 : vector<16x128xf32>
    %148 = vector.extract_strided_slice %133 {offsets = [0, 384], sizes = [16, 128], strides = [1, 1]} : vector<16x512xf32> to vector<16x128xf32>
    %149 = arith.negf %148 : vector<16x128xf32>
    %150 = math.exp %149 : vector<16x128xf32>
    %cst_44 = arith.constant 1.000000e+00 : f32
    %151 = vector.broadcast %cst_44 : f32 to vector<16x128xf32>
    %152 = arith.addf %151, %150 : vector<16x128xf32>
    %153 = arith.divf %151, %152 : vector<16x128xf32>
    %154 = arith.mulf %145, %118 : vector<16x128xf32>
    %155 = arith.mulf %139, %147 : vector<16x128xf32>
    %156 = arith.addf %154, %155 : vector<16x128xf32>
    %157 = math.tanh %156 : vector<16x128xf32>
    %158 = arith.mulf %153, %157 : vector<16x128xf32>
    %159 = arith.truncf %158 : vector<16x128xf32> to vector<16x128xbf16>
    %160 = arith.index_cast %128 : i32 to index
    %c0_45 = arith.constant 0 : index
    %161 = vector.load %arg13[%160, %c0_45] : memref<128x128xbf16, #tpu.memory_space<vmem>>, vector<16x128xbf16>
    tpu.vector_store %arg13[%160, %c0_45], %159 {strides = array<i32>} : memref<128x128xbf16, #tpu.memory_space<vmem>>, vector<16x128xbf16>,
    %c4_i32 = arith.constant 4 : i32
    %c16_i32_46 = arith.constant 16 : i32
    %162 = arith.muli %c4_i32, %c16_i32_46 : i32
    %163 = tpu.assume_multiple %162, 16 : i32
    %c16_i32_47 = arith.constant 16 : i32
    %164 = arith.muli %c4_i32, %c16_i32_47 : i32
    %c0_i32_48 = arith.constant 0 : i32
    %165 = arith.addi %c0_i32_48, %164 : i32
    %166 = tpu.assume_multiple %165, 16 : i32
    %167 = arith.index_cast %163 : i32 to index
    %c0_49 = arith.constant 0 : index
    %168 = vector.load %arg12[%167, %c0_49] : memref<128x512xf32, #tpu.memory_space<vmem>>, vector<16x512xf32>
    %169 = arith.truncf %158 : vector<16x128xf32> to vector<16x128xbf16>
    %cst_50 = arith.constant dense<0.000000e+00> : vector<16x512xf32>
    %170 = tpu.matmul %169, %1, %cst_50 {dimension_numbers = #tpu.dot_dimension_numbers<[1], [0], [0], [1], [0, 0, 1, 1], [], []>} : vector<16x128xbf16>, vector<128x512xbf16>, vector<16x512xf32> -> vector<16x512xf32>
    %171 = arith.addf %168, %170 : vector<16x512xf32>
    %172 = vector.extract_strided_slice %171 {offsets = [0, 0], sizes = [16, 128], strides = [1, 1]} : vector<16x512xf32> to vector<16x128xf32>
    %173 = arith.negf %172 : vector<16x128xf32>
    %174 = math.exp %173 : vector<16x128xf32>
    %cst_51 = arith.constant 1.000000e+00 : f32
    %175 = vector.broadcast %cst_51 : f32 to vector<16x128xf32>
    %176 = arith.addf %175, %174 : vector<16x128xf32>
    %177 = arith.divf %175, %176 : vector<16x128xf32>
    %178 = vector.extract_strided_slice %171 {offsets = [0, 128], sizes = [16, 128], strides = [1, 1]} : vector<16x512xf32> to vector<16x128xf32>
    %179 = arith.negf %178 : vector<16x128xf32>
    %180 = math.exp %179 : vector<16x128xf32>
    %cst_52 = arith.constant 1.000000e+00 : f32
    %181 = vector.broadcast %cst_52 : f32 to vector<16x128xf32>
    %182 = arith.addf %181, %180 : vector<16x128xf32>
    %183 = arith.divf %181, %182 : vector<16x128xf32>
    %184 = vector.extract_strided_slice %171 {offsets = [0, 256], sizes = [16, 128], strides = [1, 1]} : vector<16x512xf32> to vector<16x128xf32>
    %185 = math.tanh %184 : vector<16x128xf32>
    %186 = vector.extract_strided_slice %171 {offsets = [0, 384], sizes = [16, 128], strides = [1, 1]} : vector<16x512xf32> to vector<16x128xf32>
    %187 = arith.negf %186 : vector<16x128xf32>
    %188 = math.exp %187 : vector<16x128xf32>
    %cst_53 = arith.constant 1.000000e+00 : f32
    %189 = vector.broadcast %cst_53 : f32 to vector<16x128xf32>
    %190 = arith.addf %189, %188 : vector<16x128xf32>
    %191 = arith.divf %189, %190 : vector<16x128xf32>
    %192 = arith.mulf %183, %156 : vector<16x128xf32>
    %193 = arith.mulf %177, %185 : vector<16x128xf32>
    %194 = arith.addf %192, %193 : vector<16x128xf32>
    %195 = math.tanh %194 : vector<16x128xf32>
    %196 = arith.mulf %191, %195 : vector<16x128xf32>
    %197 = arith.truncf %196 : vector<16x128xf32> to vector<16x128xbf16>
    %198 = arith.index_cast %166 : i32 to index
    %c0_54 = arith.constant 0 : index
    %199 = vector.load %arg13[%198, %c0_54] : memref<128x128xbf16, #tpu.memory_space<vmem>>, vector<16x128xbf16>
    tpu.vector_store %arg13[%198, %c0_54], %197 {strides = array<i32>} : memref<128x128xbf16, #tpu.memory_space<vmem>>, vector<16x128xbf16>,
    %c5_i32 = arith.constant 5 : i32
    %c16_i32_55 = arith.constant 16 : i32
    %200 = arith.muli %c5_i32, %c16_i32_55 : i32
    %201 = tpu.assume_multiple %200, 16 : i32
    %c16_i32_56 = arith.constant 16 : i32
    %202 = arith.muli %c5_i32, %c16_i32_56 : i32
    %c0_i32_57 = arith.constant 0 : i32
    %203 = arith.addi %c0_i32_57, %202 : i32
    %204 = tpu.assume_multiple %203, 16 : i32
    %205 = arith.index_cast %201 : i32 to index
    %c0_58 = arith.constant 0 : index
    %206 = vector.load %arg12[%205, %c0_58] : memref<128x512xf32, #tpu.memory_space<vmem>>, vector<16x512xf32>
    %207 = arith.truncf %196 : vector<16x128xf32> to vector<16x128xbf16>
    %cst_59 = arith.constant dense<0.000000e+00> : vector<16x512xf32>
    %208 = tpu.matmul %207, %1, %cst_59 {dimension_numbers = #tpu.dot_dimension_numbers<[1], [0], [0], [1], [0, 0, 1, 1], [], []>} : vector<16x128xbf16>, vector<128x512xbf16>, vector<16x512xf32> -> vector<16x512xf32>
    %209 = arith.addf %206, %208 : vector<16x512xf32>
    %210 = vector.extract_strided_slice %209 {offsets = [0, 0], sizes = [16, 128], strides = [1, 1]} : vector<16x512xf32> to vector<16x128xf32>
    %211 = arith.negf %210 : vector<16x128xf32>
    %212 = math.exp %211 : vector<16x128xf32>
    %cst_60 = arith.constant 1.000000e+00 : f32
    %213 = vector.broadcast %cst_60 : f32 to vector<16x128xf32>
    %214 = arith.addf %213, %212 : vector<16x128xf32>
    %215 = arith.divf %213, %214 : vector<16x128xf32>
    %216 = vector.extract_strided_slice %209 {offsets = [0, 128], sizes = [16, 128], strides = [1, 1]} : vector<16x512xf32> to vector<16x128xf32>
    %217 = arith.negf %216 : vector<16x128xf32>
    %218 = math.exp %217 : vector<16x128xf32>
    %cst_61 = arith.constant 1.000000e+00 : f32
    %219 = vector.broadcast %cst_61 : f32 to vector<16x128xf32>
    %220 = arith.addf %219, %218 : vector<16x128xf32>
    %221 = arith.divf %219, %220 : vector<16x128xf32>
    %222 = vector.extract_strided_slice %209 {offsets = [0, 256], sizes = [16, 128], strides = [1, 1]} : vector<16x512xf32> to vector<16x128xf32>
    %223 = math.tanh %222 : vector<16x128xf32>
    %224 = vector.extract_strided_slice %209 {offsets = [0, 384], sizes = [16, 128], strides = [1, 1]} : vector<16x512xf32> to vector<16x128xf32>
    %225 = arith.negf %224 : vector<16x128xf32>
    %226 = math.exp %225 : vector<16x128xf32>
    %cst_62 = arith.constant 1.000000e+00 : f32
    %227 = vector.broadcast %cst_62 : f32 to vector<16x128xf32>
    %228 = arith.addf %227, %226 : vector<16x128xf32>
    %229 = arith.divf %227, %228 : vector<16x128xf32>
    %230 = arith.mulf %221, %194 : vector<16x128xf32>
    %231 = arith.mulf %215, %223 : vector<16x128xf32>
    %232 = arith.addf %230, %231 : vector<16x128xf32>
    %233 = math.tanh %232 : vector<16x128xf32>
    %234 = arith.mulf %229, %233 : vector<16x128xf32>
    %235 = arith.truncf %234 : vector<16x128xf32> to vector<16x128xbf16>
    %236 = arith.index_cast %204 : i32 to index
    %c0_63 = arith.constant 0 : index
    %237 = vector.load %arg13[%236, %c0_63] : memref<128x128xbf16, #tpu.memory_space<vmem>>, vector<16x128xbf16>
    tpu.vector_store %arg13[%236, %c0_63], %235 {strides = array<i32>} : memref<128x128xbf16, #tpu.memory_space<vmem>>, vector<16x128xbf16>,
    %c6_i32 = arith.constant 6 : i32
    %c16_i32_64 = arith.constant 16 : i32
    %238 = arith.muli %c6_i32, %c16_i32_64 : i32
    %239 = tpu.assume_multiple %238, 16 : i32
    %c16_i32_65 = arith.constant 16 : i32
    %240 = arith.muli %c6_i32, %c16_i32_65 : i32
    %c0_i32_66 = arith.constant 0 : i32
    %241 = arith.addi %c0_i32_66, %240 : i32
    %242 = tpu.assume_multiple %241, 16 : i32
    %243 = arith.index_cast %239 : i32 to index
    %c0_67 = arith.constant 0 : index
    %244 = vector.load %arg12[%243, %c0_67] : memref<128x512xf32, #tpu.memory_space<vmem>>, vector<16x512xf32>
    %245 = arith.truncf %234 : vector<16x128xf32> to vector<16x128xbf16>
    %cst_68 = arith.constant dense<0.000000e+00> : vector<16x512xf32>
    %246 = tpu.matmul %245, %1, %cst_68 {dimension_numbers = #tpu.dot_dimension_numbers<[1], [0], [0], [1], [0, 0, 1, 1], [], []>} : vector<16x128xbf16>, vector<128x512xbf16>, vector<16x512xf32> -> vector<16x512xf32>
    %247 = arith.addf %244, %246 : vector<16x512xf32>
    %248 = vector.extract_strided_slice %247 {offsets = [0, 0], sizes = [16, 128], strides = [1, 1]} : vector<16x512xf32> to vector<16x128xf32>
    %249 = arith.negf %248 : vector<16x128xf32>
    %250 = math.exp %249 : vector<16x128xf32>
    %cst_69 = arith.constant 1.000000e+00 : f32
    %251 = vector.broadcast %cst_69 : f32 to vector<16x128xf32>
    %252 = arith.addf %251, %250 : vector<16x128xf32>
    %253 = arith.divf %251, %252 : vector<16x128xf32>
    %254 = vector.extract_strided_slice %247 {offsets = [0, 128], sizes = [16, 128], strides = [1, 1]} : vector<16x512xf32> to vector<16x128xf32>
    %255 = arith.negf %254 : vector<16x128xf32>
    %256 = math.exp %255 : vector<16x128xf32>
    %cst_70 = arith.constant 1.000000e+00 : f32
    %257 = vector.broadcast %cst_70 : f32 to vector<16x128xf32>
    %258 = arith.addf %257, %256 : vector<16x128xf32>
    %259 = arith.divf %257, %258 : vector<16x128xf32>
    %260 = vector.extract_strided_slice %247 {offsets = [0, 256], sizes = [16, 128], strides = [1, 1]} : vector<16x512xf32> to vector<16x128xf32>
    %261 = math.tanh %260 : vector<16x128xf32>
    %262 = vector.extract_strided_slice %247 {offsets = [0, 384], sizes = [16, 128], strides = [1, 1]} : vector<16x512xf32> to vector<16x128xf32>
    %263 = arith.negf %262 : vector<16x128xf32>
    %264 = math.exp %263 : vector<16x128xf32>
    %cst_71 = arith.constant 1.000000e+00 : f32
    %265 = vector.broadcast %cst_71 : f32 to vector<16x128xf32>
    %266 = arith.addf %265, %264 : vector<16x128xf32>
    %267 = arith.divf %265, %266 : vector<16x128xf32>
    %268 = arith.mulf %259, %232 : vector<16x128xf32>
    %269 = arith.mulf %253, %261 : vector<16x128xf32>
    %270 = arith.addf %268, %269 : vector<16x128xf32>
    %271 = math.tanh %270 : vector<16x128xf32>
    %272 = arith.mulf %267, %271 : vector<16x128xf32>
    %273 = arith.truncf %272 : vector<16x128xf32> to vector<16x128xbf16>
    %274 = arith.index_cast %242 : i32 to index
    %c0_72 = arith.constant 0 : index
    %275 = vector.load %arg13[%274, %c0_72] : memref<128x128xbf16, #tpu.memory_space<vmem>>, vector<16x128xbf16>
    tpu.vector_store %arg13[%274, %c0_72], %273 {strides = array<i32>} : memref<128x128xbf16, #tpu.memory_space<vmem>>, vector<16x128xbf16>,
    %c7_i32 = arith.constant 7 : i32
    %c16_i32_73 = arith.constant 16 : i32
    %276 = arith.muli %c7_i32, %c16_i32_73 : i32
    %277 = tpu.assume_multiple %276, 16 : i32
    %c16_i32_74 = arith.constant 16 : i32
    %278 = arith.muli %c7_i32, %c16_i32_74 : i32
    %c0_i32_75 = arith.constant 0 : i32
    %279 = arith.addi %c0_i32_75, %278 : i32
    %280 = tpu.assume_multiple %279, 16 : i32
    %281 = arith.index_cast %277 : i32 to index
    %c0_76 = arith.constant 0 : index
    %282 = vector.load %arg12[%281, %c0_76] : memref<128x512xf32, #tpu.memory_space<vmem>>, vector<16x512xf32>
    %283 = arith.truncf %272 : vector<16x128xf32> to vector<16x128xbf16>
    %cst_77 = arith.constant dense<0.000000e+00> : vector<16x512xf32>
    %284 = tpu.matmul %283, %1, %cst_77 {dimension_numbers = #tpu.dot_dimension_numbers<[1], [0], [0], [1], [0, 0, 1, 1], [], []>} : vector<16x128xbf16>, vector<128x512xbf16>, vector<16x512xf32> -> vector<16x512xf32>
    %285 = arith.addf %282, %284 : vector<16x512xf32>
    %286 = vector.extract_strided_slice %285 {offsets = [0, 0], sizes = [16, 128], strides = [1, 1]} : vector<16x512xf32> to vector<16x128xf32>
    %287 = arith.negf %286 : vector<16x128xf32>
    %288 = math.exp %287 : vector<16x128xf32>
    %cst_78 = arith.constant 1.000000e+00 : f32
    %289 = vector.broadcast %cst_78 : f32 to vector<16x128xf32>
    %290 = arith.addf %289, %288 : vector<16x128xf32>
    %291 = arith.divf %289, %290 : vector<16x128xf32>
    %292 = vector.extract_strided_slice %285 {offsets = [0, 128], sizes = [16, 128], strides = [1, 1]} : vector<16x512xf32> to vector<16x128xf32>
    %293 = arith.negf %292 : vector<16x128xf32>
    %294 = math.exp %293 : vector<16x128xf32>
    %cst_79 = arith.constant 1.000000e+00 : f32
    %295 = vector.broadcast %cst_79 : f32 to vector<16x128xf32>
    %296 = arith.addf %295, %294 : vector<16x128xf32>
    %297 = arith.divf %295, %296 : vector<16x128xf32>
    %298 = vector.extract_strided_slice %285 {offsets = [0, 256], sizes = [16, 128], strides = [1, 1]} : vector<16x512xf32> to vector<16x128xf32>
    %299 = math.tanh %298 : vector<16x128xf32>
    %300 = vector.extract_strided_slice %285 {offsets = [0, 384], sizes = [16, 128], strides = [1, 1]} : vector<16x512xf32> to vector<16x128xf32>
    %301 = arith.negf %300 : vector<16x128xf32>
    %302 = math.exp %301 : vector<16x128xf32>
    %cst_80 = arith.constant 1.000000e+00 : f32
    %303 = vector.broadcast %cst_80 : f32 to vector<16x128xf32>
    %304 = arith.addf %303, %302 : vector<16x128xf32>
    %305 = arith.divf %303, %304 : vector<16x128xf32>
    %306 = arith.mulf %297, %270 : vector<16x128xf32>
    %307 = arith.mulf %291, %299 : vector<16x128xf32>
    %308 = arith.addf %306, %307 : vector<16x128xf32>
    %309 = math.tanh %308 : vector<16x128xf32>
    %310 = arith.mulf %305, %309 : vector<16x128xf32>
    %311 = arith.truncf %310 : vector<16x128xf32> to vector<16x128xbf16>
    %312 = arith.index_cast %280 : i32 to index
    %c0_81 = arith.constant 0 : index
    %313 = vector.load %arg13[%312, %c0_81] : memref<128x128xbf16, #tpu.memory_space<vmem>>, vector<16x128xbf16>
    tpu.vector_store %arg13[%312, %c0_81], %311 {strides = array<i32>} : memref<128x128xbf16, #tpu.memory_space<vmem>>, vector<16x128xbf16>,
    %c8_i32 = arith.constant 8 : i32
    %c0_82 = arith.constant 0 : index
    %c0_83 = arith.constant 0 : index
    %314 = vector.load %arg4[%c0_82, %c0_83] : memref<128x512xbf16, #tpu.memory_space<vmem>>, vector<128x512xbf16>
    %c0_84 = arith.constant 0 : index
    %c0_85 = arith.constant 0 : index
    %315 = vector.load %arg5[%c0_84, %c0_85] : memref<128x512xbf16, #tpu.memory_space<vmem>>, vector<128x512xbf16>
    %c0_86 = arith.constant 0 : index
    %c0_87 = arith.constant 0 : index
    %316 = vector.load %arg6[%c0_86, %c0_87] : memref<1x512xf32, #tpu.memory_space<vmem>>, vector<1x512xf32>
    %cst_88 = arith.constant 0.000000e+00 : f32
    %317 = vector.broadcast %cst_88 : f32 to vector<16x128xf32>
    %cst_89 = arith.constant 0.000000e+00 : f32
    %318 = vector.broadcast %cst_89 : f32 to vector<16x128xf32>
    %c0_90 = arith.constant 0 : index
    %c0_91 = arith.constant 0 : index
    %319 = vector.load %arg13[%c0_90, %c0_91] : memref<128x128xbf16, #tpu.memory_space<vmem>>, vector<128x128xbf16>
    %cst_92 = arith.constant dense<0.000000e+00> : vector<128x512xf32>
    %320 = tpu.matmul %319, %314, %cst_92 {dimension_numbers = #tpu.dot_dimension_numbers<[1], [0], [0], [1], [0, 0, 1, 1], [], []>} : vector<128x128xbf16>, vector<128x512xbf16>, vector<128x512xf32> -> vector<128x512xf32>
    %321 = vector.broadcast %316 : vector<1x512xf32> to vector<128x512xf32>
    %322 = arith.addf %320, %321 : vector<128x512xf32>
    %c0_93 = arith.constant 0 : index
    %c0_94 = arith.constant 0 : index
    %323 = vector.load %arg12[%c0_93, %c0_94] : memref<128x512xf32, #tpu.memory_space<vmem>>, vector<128x512xf32>
    tpu.vector_store %arg12[%c0_93, %c0_94], %322 {strides = array<i32>} : memref<128x512xf32, #tpu.memory_space<vmem>>, vector<128x512xf32>,
    %c0_i32_95 = arith.constant 0 : i32
    %c16_i32_96 = arith.constant 16 : i32
    %324 = arith.muli %c0_i32_95, %c16_i32_96 : i32
    %325 = tpu.assume_multiple %324, 16 : i32
    %c16_i32_97 = arith.constant 16 : i32
    %326 = arith.muli %c0_i32_95, %c16_i32_97 : i32
    %c0_i32_98 = arith.constant 0 : i32
    %327 = arith.addi %c0_i32_98, %326 : i32
    %328 = tpu.assume_multiple %327, 16 : i32
    %329 = arith.index_cast %325 : i32 to index
    %c0_99 = arith.constant 0 : index
    %330 = vector.load %arg12[%329, %c0_99] : memref<128x512xf32, #tpu.memory_space<vmem>>, vector<16x512xf32>
    %331 = arith.truncf %317 : vector<16x128xf32> to vector<16x128xbf16>
    %cst_100 = arith.constant dense<0.000000e+00> : vector<16x512xf32>
    %332 = tpu.matmul %331, %315, %cst_100 {dimension_numbers = #tpu.dot_dimension_numbers<[1], [0], [0], [1], [0, 0, 1, 1], [], []>} : vector<16x128xbf16>, vector<128x512xbf16>, vector<16x512xf32> -> vector<16x512xf32>
    %333 = arith.addf %330, %332 : vector<16x512xf32>
    %334 = vector.extract_strided_slice %333 {offsets = [0, 0], sizes = [16, 128], strides = [1, 1]} : vector<16x512xf32> to vector<16x128xf32>
    %335 = arith.negf %334 : vector<16x128xf32>
    %336 = math.exp %335 : vector<16x128xf32>
    %cst_101 = arith.constant 1.000000e+00 : f32
    %337 = vector.broadcast %cst_101 : f32 to vector<16x128xf32>
    %338 = arith.addf %337, %336 : vector<16x128xf32>
    %339 = arith.divf %337, %338 : vector<16x128xf32>
    %340 = vector.extract_strided_slice %333 {offsets = [0, 128], sizes = [16, 128], strides = [1, 1]} : vector<16x512xf32> to vector<16x128xf32>
    %341 = arith.negf %340 : vector<16x128xf32>
    %342 = math.exp %341 : vector<16x128xf32>
    %cst_102 = arith.constant 1.000000e+00 : f32
    %343 = vector.broadcast %cst_102 : f32 to vector<16x128xf32>
    %344 = arith.addf %343, %342 : vector<16x128xf32>
    %345 = arith.divf %343, %344 : vector<16x128xf32>
    %346 = vector.extract_strided_slice %333 {offsets = [0, 256], sizes = [16, 128], strides = [1, 1]} : vector<16x512xf32> to vector<16x128xf32>
    %347 = math.tanh %346 : vector<16x128xf32>
    %348 = vector.extract_strided_slice %333 {offsets = [0, 384], sizes = [16, 128], strides = [1, 1]} : vector<16x512xf32> to vector<16x128xf32>
    %349 = arith.negf %348 : vector<16x128xf32>
    %350 = math.exp %349 : vector<16x128xf32>
    %cst_103 = arith.constant 1.000000e+00 : f32
    %351 = vector.broadcast %cst_103 : f32 to vector<16x128xf32>
    %352 = arith.addf %351, %350 : vector<16x128xf32>
    %353 = arith.divf %351, %352 : vector<16x128xf32>
    %354 = arith.mulf %345, %318 : vector<16x128xf32>
    %355 = arith.mulf %339, %347 : vector<16x128xf32>
    %356 = arith.addf %354, %355 : vector<16x128xf32>
    %357 = math.tanh %356 : vector<16x128xf32>
    %358 = arith.mulf %353, %357 : vector<16x128xf32>
    %359 = arith.truncf %358 : vector<16x128xf32> to vector<16x128xbf16>
    %360 = arith.index_cast %328 : i32 to index
    %c0_104 = arith.constant 0 : index
    %361 = vector.load %arg14[%360, %c0_104] : memref<128x128xbf16, #tpu.memory_space<vmem>>, vector<16x128xbf16>
    tpu.vector_store %arg14[%360, %c0_104], %359 {strides = array<i32>} : memref<128x128xbf16, #tpu.memory_space<vmem>>, vector<16x128xbf16>,
    %c1_i32_105 = arith.constant 1 : i32
    %c16_i32_106 = arith.constant 16 : i32
    %362 = arith.muli %c1_i32_105, %c16_i32_106 : i32
    %363 = tpu.assume_multiple %362, 16 : i32
    %c16_i32_107 = arith.constant 16 : i32
    %364 = arith.muli %c1_i32_105, %c16_i32_107 : i32
    %c0_i32_108 = arith.constant 0 : i32
    %365 = arith.addi %c0_i32_108, %364 : i32
    %366 = tpu.assume_multiple %365, 16 : i32
    %367 = arith.index_cast %363 : i32 to index
    %c0_109 = arith.constant 0 : index
    %368 = vector.load %arg12[%367, %c0_109] : memref<128x512xf32, #tpu.memory_space<vmem>>, vector<16x512xf32>
    %369 = arith.truncf %358 : vector<16x128xf32> to vector<16x128xbf16>
    %cst_110 = arith.constant dense<0.000000e+00> : vector<16x512xf32>
    %370 = tpu.matmul %369, %315, %cst_110 {dimension_numbers = #tpu.dot_dimension_numbers<[1], [0], [0], [1], [0, 0, 1, 1], [], []>} : vector<16x128xbf16>, vector<128x512xbf16>, vector<16x512xf32> -> vector<16x512xf32>
    %371 = arith.addf %368, %370 : vector<16x512xf32>
    %372 = vector.extract_strided_slice %371 {offsets = [0, 0], sizes = [16, 128], strides = [1, 1]} : vector<16x512xf32> to vector<16x128xf32>
    %373 = arith.negf %372 : vector<16x128xf32>
    %374 = math.exp %373 : vector<16x128xf32>
    %cst_111 = arith.constant 1.000000e+00 : f32
    %375 = vector.broadcast %cst_111 : f32 to vector<16x128xf32>
    %376 = arith.addf %375, %374 : vector<16x128xf32>
    %377 = arith.divf %375, %376 : vector<16x128xf32>
    %378 = vector.extract_strided_slice %371 {offsets = [0, 128], sizes = [16, 128], strides = [1, 1]} : vector<16x512xf32> to vector<16x128xf32>
    %379 = arith.negf %378 : vector<16x128xf32>
    %380 = math.exp %379 : vector<16x128xf32>
    %cst_112 = arith.constant 1.000000e+00 : f32
    %381 = vector.broadcast %cst_112 : f32 to vector<16x128xf32>
    %382 = arith.addf %381, %380 : vector<16x128xf32>
    %383 = arith.divf %381, %382 : vector<16x128xf32>
    %384 = vector.extract_strided_slice %371 {offsets = [0, 256], sizes = [16, 128], strides = [1, 1]} : vector<16x512xf32> to vector<16x128xf32>
    %385 = math.tanh %384 : vector<16x128xf32>
    %386 = vector.extract_strided_slice %371 {offsets = [0, 384], sizes = [16, 128], strides = [1, 1]} : vector<16x512xf32> to vector<16x128xf32>
    %387 = arith.negf %386 : vector<16x128xf32>
    %388 = math.exp %387 : vector<16x128xf32>
    %cst_113 = arith.constant 1.000000e+00 : f32
    %389 = vector.broadcast %cst_113 : f32 to vector<16x128xf32>
    %390 = arith.addf %389, %388 : vector<16x128xf32>
    %391 = arith.divf %389, %390 : vector<16x128xf32>
    %392 = arith.mulf %383, %356 : vector<16x128xf32>
    %393 = arith.mulf %377, %385 : vector<16x128xf32>
    %394 = arith.addf %392, %393 : vector<16x128xf32>
    %395 = math.tanh %394 : vector<16x128xf32>
    %396 = arith.mulf %391, %395 : vector<16x128xf32>
    %397 = arith.truncf %396 : vector<16x128xf32> to vector<16x128xbf16>
    %398 = arith.index_cast %366 : i32 to index
    %c0_114 = arith.constant 0 : index
    %399 = vector.load %arg14[%398, %c0_114] : memref<128x128xbf16, #tpu.memory_space<vmem>>, vector<16x128xbf16>
    tpu.vector_store %arg14[%398, %c0_114], %397 {strides = array<i32>} : memref<128x128xbf16, #tpu.memory_space<vmem>>, vector<16x128xbf16>,
    %c2_i32_115 = arith.constant 2 : i32
    %c16_i32_116 = arith.constant 16 : i32
    %400 = arith.muli %c2_i32_115, %c16_i32_116 : i32
    %401 = tpu.assume_multiple %400, 16 : i32
    %c16_i32_117 = arith.constant 16 : i32
    %402 = arith.muli %c2_i32_115, %c16_i32_117 : i32
    %c0_i32_118 = arith.constant 0 : i32
    %403 = arith.addi %c0_i32_118, %402 : i32
    %404 = tpu.assume_multiple %403, 16 : i32
    %405 = arith.index_cast %401 : i32 to index
    %c0_119 = arith.constant 0 : index
    %406 = vector.load %arg12[%405, %c0_119] : memref<128x512xf32, #tpu.memory_space<vmem>>, vector<16x512xf32>
    %407 = arith.truncf %396 : vector<16x128xf32> to vector<16x128xbf16>
    %cst_120 = arith.constant dense<0.000000e+00> : vector<16x512xf32>
    %408 = tpu.matmul %407, %315, %cst_120 {dimension_numbers = #tpu.dot_dimension_numbers<[1], [0], [0], [1], [0, 0, 1, 1], [], []>} : vector<16x128xbf16>, vector<128x512xbf16>, vector<16x512xf32> -> vector<16x512xf32>
    %409 = arith.addf %406, %408 : vector<16x512xf32>
    %410 = vector.extract_strided_slice %409 {offsets = [0, 0], sizes = [16, 128], strides = [1, 1]} : vector<16x512xf32> to vector<16x128xf32>
    %411 = arith.negf %410 : vector<16x128xf32>
    %412 = math.exp %411 : vector<16x128xf32>
    %cst_121 = arith.constant 1.000000e+00 : f32
    %413 = vector.broadcast %cst_121 : f32 to vector<16x128xf32>
    %414 = arith.addf %413, %412 : vector<16x128xf32>
    %415 = arith.divf %413, %414 : vector<16x128xf32>
    %416 = vector.extract_strided_slice %409 {offsets = [0, 128], sizes = [16, 128], strides = [1, 1]} : vector<16x512xf32> to vector<16x128xf32>
    %417 = arith.negf %416 : vector<16x128xf32>
    %418 = math.exp %417 : vector<16x128xf32>
    %cst_122 = arith.constant 1.000000e+00 : f32
    %419 = vector.broadcast %cst_122 : f32 to vector<16x128xf32>
    %420 = arith.addf %419, %418 : vector<16x128xf32>
    %421 = arith.divf %419, %420 : vector<16x128xf32>
    %422 = vector.extract_strided_slice %409 {offsets = [0, 256], sizes = [16, 128], strides = [1, 1]} : vector<16x512xf32> to vector<16x128xf32>
    %423 = math.tanh %422 : vector<16x128xf32>
    %424 = vector.extract_strided_slice %409 {offsets = [0, 384], sizes = [16, 128], strides = [1, 1]} : vector<16x512xf32> to vector<16x128xf32>
    %425 = arith.negf %424 : vector<16x128xf32>
    %426 = math.exp %425 : vector<16x128xf32>
    %cst_123 = arith.constant 1.000000e+00 : f32
    %427 = vector.broadcast %cst_123 : f32 to vector<16x128xf32>
    %428 = arith.addf %427, %426 : vector<16x128xf32>
    %429 = arith.divf %427, %428 : vector<16x128xf32>
    %430 = arith.mulf %421, %394 : vector<16x128xf32>
    %431 = arith.mulf %415, %423 : vector<16x128xf32>
    %432 = arith.addf %430, %431 : vector<16x128xf32>
    %433 = math.tanh %432 : vector<16x128xf32>
    %434 = arith.mulf %429, %433 : vector<16x128xf32>
    %435 = arith.truncf %434 : vector<16x128xf32> to vector<16x128xbf16>
    %436 = arith.index_cast %404 : i32 to index
    %c0_124 = arith.constant 0 : index
    %437 = vector.load %arg14[%436, %c0_124] : memref<128x128xbf16, #tpu.memory_space<vmem>>, vector<16x128xbf16>
    tpu.vector_store %arg14[%436, %c0_124], %435 {strides = array<i32>} : memref<128x128xbf16, #tpu.memory_space<vmem>>, vector<16x128xbf16>,
    %c3_i32_125 = arith.constant 3 : i32
    %c16_i32_126 = arith.constant 16 : i32
    %438 = arith.muli %c3_i32_125, %c16_i32_126 : i32
    %439 = tpu.assume_multiple %438, 16 : i32
    %c16_i32_127 = arith.constant 16 : i32
    %440 = arith.muli %c3_i32_125, %c16_i32_127 : i32
    %c0_i32_128 = arith.constant 0 : i32
    %441 = arith.addi %c0_i32_128, %440 : i32
    %442 = tpu.assume_multiple %441, 16 : i32
    %443 = arith.index_cast %439 : i32 to index
    %c0_129 = arith.constant 0 : index
    %444 = vector.load %arg12[%443, %c0_129] : memref<128x512xf32, #tpu.memory_space<vmem>>, vector<16x512xf32>
    %445 = arith.truncf %434 : vector<16x128xf32> to vector<16x128xbf16>
    %cst_130 = arith.constant dense<0.000000e+00> : vector<16x512xf32>
    %446 = tpu.matmul %445, %315, %cst_130 {dimension_numbers = #tpu.dot_dimension_numbers<[1], [0], [0], [1], [0, 0, 1, 1], [], []>} : vector<16x128xbf16>, vector<128x512xbf16>, vector<16x512xf32> -> vector<16x512xf32>
    %447 = arith.addf %444, %446 : vector<16x512xf32>
    %448 = vector.extract_strided_slice %447 {offsets = [0, 0], sizes = [16, 128], strides = [1, 1]} : vector<16x512xf32> to vector<16x128xf32>
    %449 = arith.negf %448 : vector<16x128xf32>
    %450 = math.exp %449 : vector<16x128xf32>
    %cst_131 = arith.constant 1.000000e+00 : f32
    %451 = vector.broadcast %cst_131 : f32 to vector<16x128xf32>
    %452 = arith.addf %451, %450 : vector<16x128xf32>
    %453 = arith.divf %451, %452 : vector<16x128xf32>
    %454 = vector.extract_strided_slice %447 {offsets = [0, 128], sizes = [16, 128], strides = [1, 1]} : vector<16x512xf32> to vector<16x128xf32>
    %455 = arith.negf %454 : vector<16x128xf32>
    %456 = math.exp %455 : vector<16x128xf32>
    %cst_132 = arith.constant 1.000000e+00 : f32
    %457 = vector.broadcast %cst_132 : f32 to vector<16x128xf32>
    %458 = arith.addf %457, %456 : vector<16x128xf32>
    %459 = arith.divf %457, %458 : vector<16x128xf32>
    %460 = vector.extract_strided_slice %447 {offsets = [0, 256], sizes = [16, 128], strides = [1, 1]} : vector<16x512xf32> to vector<16x128xf32>
    %461 = math.tanh %460 : vector<16x128xf32>
    %462 = vector.extract_strided_slice %447 {offsets = [0, 384], sizes = [16, 128], strides = [1, 1]} : vector<16x512xf32> to vector<16x128xf32>
    %463 = arith.negf %462 : vector<16x128xf32>
    %464 = math.exp %463 : vector<16x128xf32>
    %cst_133 = arith.constant 1.000000e+00 : f32
    %465 = vector.broadcast %cst_133 : f32 to vector<16x128xf32>
    %466 = arith.addf %465, %464 : vector<16x128xf32>
    %467 = arith.divf %465, %466 : vector<16x128xf32>
    %468 = arith.mulf %459, %432 : vector<16x128xf32>
    %469 = arith.mulf %453, %461 : vector<16x128xf32>
    %470 = arith.addf %468, %469 : vector<16x128xf32>
    %471 = math.tanh %470 : vector<16x128xf32>
    %472 = arith.mulf %467, %471 : vector<16x128xf32>
    %473 = arith.truncf %472 : vector<16x128xf32> to vector<16x128xbf16>
    %474 = arith.index_cast %442 : i32 to index
    %c0_134 = arith.constant 0 : index
    %475 = vector.load %arg14[%474, %c0_134] : memref<128x128xbf16, #tpu.memory_space<vmem>>, vector<16x128xbf16>
    tpu.vector_store %arg14[%474, %c0_134], %473 {strides = array<i32>} : memref<128x128xbf16, #tpu.memory_space<vmem>>, vector<16x128xbf16>,
    %c4_i32_135 = arith.constant 4 : i32
    %c16_i32_136 = arith.constant 16 : i32
    %476 = arith.muli %c4_i32_135, %c16_i32_136 : i32
    %477 = tpu.assume_multiple %476, 16 : i32
    %c16_i32_137 = arith.constant 16 : i32
    %478 = arith.muli %c4_i32_135, %c16_i32_137 : i32
    %c0_i32_138 = arith.constant 0 : i32
    %479 = arith.addi %c0_i32_138, %478 : i32
    %480 = tpu.assume_multiple %479, 16 : i32
    %481 = arith.index_cast %477 : i32 to index
    %c0_139 = arith.constant 0 : index
    %482 = vector.load %arg12[%481, %c0_139] : memref<128x512xf32, #tpu.memory_space<vmem>>, vector<16x512xf32>
    %483 = arith.truncf %472 : vector<16x128xf32> to vector<16x128xbf16>
    %cst_140 = arith.constant dense<0.000000e+00> : vector<16x512xf32>
    %484 = tpu.matmul %483, %315, %cst_140 {dimension_numbers = #tpu.dot_dimension_numbers<[1], [0], [0], [1], [0, 0, 1, 1], [], []>} : vector<16x128xbf16>, vector<128x512xbf16>, vector<16x512xf32> -> vector<16x512xf32>
    %485 = arith.addf %482, %484 : vector<16x512xf32>
    %486 = vector.extract_strided_slice %485 {offsets = [0, 0], sizes = [16, 128], strides = [1, 1]} : vector<16x512xf32> to vector<16x128xf32>
    %487 = arith.negf %486 : vector<16x128xf32>
    %488 = math.exp %487 : vector<16x128xf32>
    %cst_141 = arith.constant 1.000000e+00 : f32
    %489 = vector.broadcast %cst_141 : f32 to vector<16x128xf32>
    %490 = arith.addf %489, %488 : vector<16x128xf32>
    %491 = arith.divf %489, %490 : vector<16x128xf32>
    %492 = vector.extract_strided_slice %485 {offsets = [0, 128], sizes = [16, 128], strides = [1, 1]} : vector<16x512xf32> to vector<16x128xf32>
    %493 = arith.negf %492 : vector<16x128xf32>
    %494 = math.exp %493 : vector<16x128xf32>
    %cst_142 = arith.constant 1.000000e+00 : f32
    %495 = vector.broadcast %cst_142 : f32 to vector<16x128xf32>
    %496 = arith.addf %495, %494 : vector<16x128xf32>
    %497 = arith.divf %495, %496 : vector<16x128xf32>
    %498 = vector.extract_strided_slice %485 {offsets = [0, 256], sizes = [16, 128], strides = [1, 1]} : vector<16x512xf32> to vector<16x128xf32>
    %499 = math.tanh %498 : vector<16x128xf32>
    %500 = vector.extract_strided_slice %485 {offsets = [0, 384], sizes = [16, 128], strides = [1, 1]} : vector<16x512xf32> to vector<16x128xf32>
    %501 = arith.negf %500 : vector<16x128xf32>
    %502 = math.exp %501 : vector<16x128xf32>
    %cst_143 = arith.constant 1.000000e+00 : f32
    %503 = vector.broadcast %cst_143 : f32 to vector<16x128xf32>
    %504 = arith.addf %503, %502 : vector<16x128xf32>
    %505 = arith.divf %503, %504 : vector<16x128xf32>
    %506 = arith.mulf %497, %470 : vector<16x128xf32>
    %507 = arith.mulf %491, %499 : vector<16x128xf32>
    %508 = arith.addf %506, %507 : vector<16x128xf32>
    %509 = math.tanh %508 : vector<16x128xf32>
    %510 = arith.mulf %505, %509 : vector<16x128xf32>
    %511 = arith.truncf %510 : vector<16x128xf32> to vector<16x128xbf16>
    %512 = arith.index_cast %480 : i32 to index
    %c0_144 = arith.constant 0 : index
    %513 = vector.load %arg14[%512, %c0_144] : memref<128x128xbf16, #tpu.memory_space<vmem>>, vector<16x128xbf16>
    tpu.vector_store %arg14[%512, %c0_144], %511 {strides = array<i32>} : memref<128x128xbf16, #tpu.memory_space<vmem>>, vector<16x128xbf16>,
    %c5_i32_145 = arith.constant 5 : i32
    %c16_i32_146 = arith.constant 16 : i32
    %514 = arith.muli %c5_i32_145, %c16_i32_146 : i32
    %515 = tpu.assume_multiple %514, 16 : i32
    %c16_i32_147 = arith.constant 16 : i32
    %516 = arith.muli %c5_i32_145, %c16_i32_147 : i32
    %c0_i32_148 = arith.constant 0 : i32
    %517 = arith.addi %c0_i32_148, %516 : i32
    %518 = tpu.assume_multiple %517, 16 : i32
    %519 = arith.index_cast %515 : i32 to index
    %c0_149 = arith.constant 0 : index
    %520 = vector.load %arg12[%519, %c0_149] : memref<128x512xf32, #tpu.memory_space<vmem>>, vector<16x512xf32>
    %521 = arith.truncf %510 : vector<16x128xf32> to vector<16x128xbf16>
    %cst_150 = arith.constant dense<0.000000e+00> : vector<16x512xf32>
    %522 = tpu.matmul %521, %315, %cst_150 {dimension_numbers = #tpu.dot_dimension_numbers<[1], [0], [0], [1], [0, 0, 1, 1], [], []>} : vector<16x128xbf16>, vector<128x512xbf16>, vector<16x512xf32> -> vector<16x512xf32>
    %523 = arith.addf %520, %522 : vector<16x512xf32>
    %524 = vector.extract_strided_slice %523 {offsets = [0, 0], sizes = [16, 128], strides = [1, 1]} : vector<16x512xf32> to vector<16x128xf32>
    %525 = arith.negf %524 : vector<16x128xf32>
    %526 = math.exp %525 : vector<16x128xf32>
    %cst_151 = arith.constant 1.000000e+00 : f32
    %527 = vector.broadcast %cst_151 : f32 to vector<16x128xf32>
    %528 = arith.addf %527, %526 : vector<16x128xf32>
    %529 = arith.divf %527, %528 : vector<16x128xf32>
    %530 = vector.extract_strided_slice %523 {offsets = [0, 128], sizes = [16, 128], strides = [1, 1]} : vector<16x512xf32> to vector<16x128xf32>
    %531 = arith.negf %530 : vector<16x128xf32>
    %532 = math.exp %531 : vector<16x128xf32>
    %cst_152 = arith.constant 1.000000e+00 : f32
    %533 = vector.broadcast %cst_152 : f32 to vector<16x128xf32>
    %534 = arith.addf %533, %532 : vector<16x128xf32>
    %535 = arith.divf %533, %534 : vector<16x128xf32>
    %536 = vector.extract_strided_slice %523 {offsets = [0, 256], sizes = [16, 128], strides = [1, 1]} : vector<16x512xf32> to vector<16x128xf32>
    %537 = math.tanh %536 : vector<16x128xf32>
    %538 = vector.extract_strided_slice %523 {offsets = [0, 384], sizes = [16, 128], strides = [1, 1]} : vector<16x512xf32> to vector<16x128xf32>
    %539 = arith.negf %538 : vector<16x128xf32>
    %540 = math.exp %539 : vector<16x128xf32>
    %cst_153 = arith.constant 1.000000e+00 : f32
    %541 = vector.broadcast %cst_153 : f32 to vector<16x128xf32>
    %542 = arith.addf %541, %540 : vector<16x128xf32>
    %543 = arith.divf %541, %542 : vector<16x128xf32>
    %544 = arith.mulf %535, %508 : vector<16x128xf32>
    %545 = arith.mulf %529, %537 : vector<16x128xf32>
    %546 = arith.addf %544, %545 : vector<16x128xf32>
    %547 = math.tanh %546 : vector<16x128xf32>
    %548 = arith.mulf %543, %547 : vector<16x128xf32>
    %549 = arith.truncf %548 : vector<16x128xf32> to vector<16x128xbf16>
    %550 = arith.index_cast %518 : i32 to index
    %c0_154 = arith.constant 0 : index
    %551 = vector.load %arg14[%550, %c0_154] : memref<128x128xbf16, #tpu.memory_space<vmem>>, vector<16x128xbf16>
    tpu.vector_store %arg14[%550, %c0_154], %549 {strides = array<i32>} : memref<128x128xbf16, #tpu.memory_space<vmem>>, vector<16x128xbf16>,
    %c6_i32_155 = arith.constant 6 : i32
    %c16_i32_156 = arith.constant 16 : i32
    %552 = arith.muli %c6_i32_155, %c16_i32_156 : i32
    %553 = tpu.assume_multiple %552, 16 : i32
    %c16_i32_157 = arith.constant 16 : i32
    %554 = arith.muli %c6_i32_155, %c16_i32_157 : i32
    %c0_i32_158 = arith.constant 0 : i32
    %555 = arith.addi %c0_i32_158, %554 : i32
    %556 = tpu.assume_multiple %555, 16 : i32
    %557 = arith.index_cast %553 : i32 to index
    %c0_159 = arith.constant 0 : index
    %558 = vector.load %arg12[%557, %c0_159] : memref<128x512xf32, #tpu.memory_space<vmem>>, vector<16x512xf32>
    %559 = arith.truncf %548 : vector<16x128xf32> to vector<16x128xbf16>
    %cst_160 = arith.constant dense<0.000000e+00> : vector<16x512xf32>
    %560 = tpu.matmul %559, %315, %cst_160 {dimension_numbers = #tpu.dot_dimension_numbers<[1], [0], [0], [1], [0, 0, 1, 1], [], []>} : vector<16x128xbf16>, vector<128x512xbf16>, vector<16x512xf32> -> vector<16x512xf32>
    %561 = arith.addf %558, %560 : vector<16x512xf32>
    %562 = vector.extract_strided_slice %561 {offsets = [0, 0], sizes = [16, 128], strides = [1, 1]} : vector<16x512xf32> to vector<16x128xf32>
    %563 = arith.negf %562 : vector<16x128xf32>
    %564 = math.exp %563 : vector<16x128xf32>
    %cst_161 = arith.constant 1.000000e+00 : f32
    %565 = vector.broadcast %cst_161 : f32 to vector<16x128xf32>
    %566 = arith.addf %565, %564 : vector<16x128xf32>
    %567 = arith.divf %565, %566 : vector<16x128xf32>
    %568 = vector.extract_strided_slice %561 {offsets = [0, 128], sizes = [16, 128], strides = [1, 1]} : vector<16x512xf32> to vector<16x128xf32>
    %569 = arith.negf %568 : vector<16x128xf32>
    %570 = math.exp %569 : vector<16x128xf32>
    %cst_162 = arith.constant 1.000000e+00 : f32
    %571 = vector.broadcast %cst_162 : f32 to vector<16x128xf32>
    %572 = arith.addf %571, %570 : vector<16x128xf32>
    %573 = arith.divf %571, %572 : vector<16x128xf32>
    %574 = vector.extract_strided_slice %561 {offsets = [0, 256], sizes = [16, 128], strides = [1, 1]} : vector<16x512xf32> to vector<16x128xf32>
    %575 = math.tanh %574 : vector<16x128xf32>
    %576 = vector.extract_strided_slice %561 {offsets = [0, 384], sizes = [16, 128], strides = [1, 1]} : vector<16x512xf32> to vector<16x128xf32>
    %577 = arith.negf %576 : vector<16x128xf32>
    %578 = math.exp %577 : vector<16x128xf32>
    %cst_163 = arith.constant 1.000000e+00 : f32
    %579 = vector.broadcast %cst_163 : f32 to vector<16x128xf32>
    %580 = arith.addf %579, %578 : vector<16x128xf32>
    %581 = arith.divf %579, %580 : vector<16x128xf32>
    %582 = arith.mulf %573, %546 : vector<16x128xf32>
    %583 = arith.mulf %567, %575 : vector<16x128xf32>
    %584 = arith.addf %582, %583 : vector<16x128xf32>
    %585 = math.tanh %584 : vector<16x128xf32>
    %586 = arith.mulf %581, %585 : vector<16x128xf32>
    %587 = arith.truncf %586 : vector<16x128xf32> to vector<16x128xbf16>
    %588 = arith.index_cast %556 : i32 to index
    %c0_164 = arith.constant 0 : index
    %589 = vector.load %arg14[%588, %c0_164] : memref<128x128xbf16, #tpu.memory_space<vmem>>, vector<16x128xbf16>
    tpu.vector_store %arg14[%588, %c0_164], %587 {strides = array<i32>} : memref<128x128xbf16, #tpu.memory_space<vmem>>, vector<16x128xbf16>,
    %c7_i32_165 = arith.constant 7 : i32
    %c16_i32_166 = arith.constant 16 : i32
    %590 = arith.muli %c7_i32_165, %c16_i32_166 : i32
    %591 = tpu.assume_multiple %590, 16 : i32
    %c16_i32_167 = arith.constant 16 : i32
    %592 = arith.muli %c7_i32_165, %c16_i32_167 : i32
    %c0_i32_168 = arith.constant 0 : i32
    %593 = arith.addi %c0_i32_168, %592 : i32
    %594 = tpu.assume_multiple %593, 16 : i32
    %595 = arith.index_cast %591 : i32 to index
    %c0_169 = arith.constant 0 : index
    %596 = vector.load %arg12[%595, %c0_169] : memref<128x512xf32, #tpu.memory_space<vmem>>, vector<16x512xf32>
    %597 = arith.truncf %586 : vector<16x128xf32> to vector<16x128xbf16>
    %cst_170 = arith.constant dense<0.000000e+00> : vector<16x512xf32>
    %598 = tpu.matmul %597, %315, %cst_170 {dimension_numbers = #tpu.dot_dimension_numbers<[1], [0], [0], [1], [0, 0, 1, 1], [], []>} : vector<16x128xbf16>, vector<128x512xbf16>, vector<16x512xf32> -> vector<16x512xf32>
    %599 = arith.addf %596, %598 : vector<16x512xf32>
    %600 = vector.extract_strided_slice %599 {offsets = [0, 0], sizes = [16, 128], strides = [1, 1]} : vector<16x512xf32> to vector<16x128xf32>
    %601 = arith.negf %600 : vector<16x128xf32>
    %602 = math.exp %601 : vector<16x128xf32>
    %cst_171 = arith.constant 1.000000e+00 : f32
    %603 = vector.broadcast %cst_171 : f32 to vector<16x128xf32>
    %604 = arith.addf %603, %602 : vector<16x128xf32>
    %605 = arith.divf %603, %604 : vector<16x128xf32>
    %606 = vector.extract_strided_slice %599 {offsets = [0, 128], sizes = [16, 128], strides = [1, 1]} : vector<16x512xf32> to vector<16x128xf32>
    %607 = arith.negf %606 : vector<16x128xf32>
    %608 = math.exp %607 : vector<16x128xf32>
    %cst_172 = arith.constant 1.000000e+00 : f32
    %609 = vector.broadcast %cst_172 : f32 to vector<16x128xf32>
    %610 = arith.addf %609, %608 : vector<16x128xf32>
    %611 = arith.divf %609, %610 : vector<16x128xf32>
    %612 = vector.extract_strided_slice %599 {offsets = [0, 256], sizes = [16, 128], strides = [1, 1]} : vector<16x512xf32> to vector<16x128xf32>
    %613 = math.tanh %612 : vector<16x128xf32>
    %614 = vector.extract_strided_slice %599 {offsets = [0, 384], sizes = [16, 128], strides = [1, 1]} : vector<16x512xf32> to vector<16x128xf32>
    %615 = arith.negf %614 : vector<16x128xf32>
    %616 = math.exp %615 : vector<16x128xf32>
    %cst_173 = arith.constant 1.000000e+00 : f32
    %617 = vector.broadcast %cst_173 : f32 to vector<16x128xf32>
    %618 = arith.addf %617, %616 : vector<16x128xf32>
    %619 = arith.divf %617, %618 : vector<16x128xf32>
    %620 = arith.mulf %611, %584 : vector<16x128xf32>
    %621 = arith.mulf %605, %613 : vector<16x128xf32>
    %622 = arith.addf %620, %621 : vector<16x128xf32>
    %623 = math.tanh %622 : vector<16x128xf32>
    %624 = arith.mulf %619, %623 : vector<16x128xf32>
    %625 = arith.truncf %624 : vector<16x128xf32> to vector<16x128xbf16>
    %626 = arith.index_cast %594 : i32 to index
    %c0_174 = arith.constant 0 : index
    %627 = vector.load %arg14[%626, %c0_174] : memref<128x128xbf16, #tpu.memory_space<vmem>>, vector<16x128xbf16>
    tpu.vector_store %arg14[%626, %c0_174], %625 {strides = array<i32>} : memref<128x128xbf16, #tpu.memory_space<vmem>>, vector<16x128xbf16>,
    %c8_i32_175 = arith.constant 8 : i32
    %c0_176 = arith.constant 0 : index
    %c0_177 = arith.constant 0 : index
    %628 = vector.load %arg7[%c0_176, %c0_177] : memref<128x128xbf16, #tpu.memory_space<vmem>>, vector<128x128xbf16>
    %c0_178 = arith.constant 0 : index
    %c0_179 = arith.constant 0 : index
    %629 = vector.load %arg8[%c0_178, %c0_179] : memref<1x128xf32, #tpu.memory_space<vmem>>, vector<1x128xf32>
    %c0_180 = arith.constant 0 : index
    %c0_181 = arith.constant 0 : index
    %630 = vector.load %arg9[%c0_180, %c0_181] : memref<128x128xbf16, #tpu.memory_space<vmem>>, vector<128x128xbf16>
    %c0_182 = arith.constant 0 : index
    %c0_183 = arith.constant 0 : index
    %631 = vector.load %arg10[%c0_182, %c0_183] : memref<1x128xf32, #tpu.memory_space<vmem>>, vector<1x128xf32>
    %c0_184 = arith.constant 0 : index
    %c0_185 = arith.constant 0 : index
    %632 = vector.load %arg14[%c0_184, %c0_185] : memref<128x128xbf16, #tpu.memory_space<vmem>>, vector<128x128xbf16>
    %cst_186 = arith.constant dense<0.000000e+00> : vector<128x128xf32>
    %633 = tpu.matmul %632, %628, %cst_186 {dimension_numbers = #tpu.dot_dimension_numbers<[1], [0], [0], [1], [0, 0, 1, 1], [], []>} : vector<128x128xbf16>, vector<128x128xbf16>, vector<128x128xf32> -> vector<128x128xf32>
    %634 = vector.broadcast %629 : vector<1x128xf32> to vector<128x128xf32>
    %635 = arith.addf %633, %634 : vector<128x128xf32>
    %cst_187 = arith.constant 0.000000e+00 : f32
    %636 = vector.broadcast %cst_187 : f32 to vector<128x128xf32>
    %637 = arith.maximumf %635, %636 : vector<128x128xf32>
    %638 = arith.truncf %637 : vector<128x128xf32> to vector<128x128xbf16>
    %cst_188 = arith.constant dense<0.000000e+00> : vector<128x128xf32>
    %639 = tpu.matmul %638, %630, %cst_188 {dimension_numbers = #tpu.dot_dimension_numbers<[1], [0], [0], [1], [0, 0, 1, 1], [], []>} : vector<128x128xbf16>, vector<128x128xbf16>, vector<128x128xf32> -> vector<128x128xf32>
    %640 = vector.broadcast %631 : vector<1x128xf32> to vector<128x128xf32>
    %641 = arith.addf %639, %640 : vector<128x128xf32>
    %c0_189 = arith.constant 0 : index
    %c0_190 = arith.constant 0 : index
    %642 = vector.load %arg11[%c0_189, %c0_190] : memref<128x128xf32, #tpu.memory_space<vmem>>, vector<128x128xf32>
    tpu.vector_store %arg11[%c0_189, %c0_190], %641 {strides = array<i32>} : memref<128x128xf32, #tpu.memory_space<vmem>>, vector<128x128xf32>,
    return
  }
}

</mosaic_0001>

<llo_original>
// kernel: model_forward.1
$region0: #{model_forward.1}
  #allocation0 [shape = 'u32[]', space=smem, size = 0x4, offset = 0x4, fixed_abs, tag = 'smem constant byte address 0x4 - core index']
  #allocation1 [shape = 'u32[144,128]{1,0:T(1,128)}', space=vmem, size = 0x12000, scoped, tag = 'internal scratch']
  #allocation2 [shape = 'f32[128,512]{1,0:T(8,128)}', space=vmem, size = 0x40000, scoped, tag = 'scratch operand']
  #allocation3 [shape = 'bf16[128,128]{1,0:T(16,128)(2,1)}', space=vmem, size = 0x8000, scoped, tag = 'scratch operand']
  #allocation4 [shape = 'bf16[128,128]{1,0:T(16,128)(2,1)}', space=vmem, size = 0x8000, scoped, tag = 'scratch operand']
  %s0 = inlined_call_operand.vmem [shape: bf16[128,8], index: 0, kind: input, shape index: {}]
  %s1 = inlined_call_operand.vmem [shape: bf16[8,512], index: 1, kind: input, shape index: {}]
  %s2 = inlined_call_operand.vmem [shape: bf16[128,512], index: 2, kind: input, shape index: {}]
  %s3 = inlined_call_operand.vmem [shape: f32[1,512], index: 3, kind: input, shape index: {}]
  %s4 = inlined_call_operand.vmem [shape: bf16[128,512], index: 4, kind: input, shape index: {}]
  %s5 = inlined_call_operand.vmem [shape: bf16[128,512], index: 5, kind: input, shape index: {}]
  %s6 = inlined_call_operand.vmem [shape: f32[1,512], index: 6, kind: input, shape index: {}]
  %s7 = inlined_call_operand.vmem [shape: bf16[128,128], index: 7, kind: input, shape index: {}]
  %s8 = inlined_call_operand.vmem [shape: f32[1,128], index: 8, kind: input, shape index: {}]
  %s9 = inlined_call_operand.vmem [shape: bf16[128,128], index: 9, kind: input, shape index: {}]
  %s10 = inlined_call_operand.vmem [shape: f32[1,128], index: 10, kind: input, shape index: {}]
  %s11 = inlined_call_operand.vmem [shape: f32[128,128], index: 11, kind: output, shape index: {}]
  %s12 = sld [smem:[#allocation0]]
  $region54: #{model_forward.1} parent=0
    _
  %s14 = ssub.s32 1, %s12
  %s15 = scalar_select 0, %s14, %s12
  // Predicated region
  $region2: #{model_forward.1} parent=0 // pred_check
    _
  $region3: #{model_forward.1} parent=0 // pred_check_branch
    %17 = sbr.rel (0) target = $region5
  $region4: #{model_forward.1} parent=0 // pred_region
    _
  $region5: #{model_forward.1} parent=0 // pred_fallthru
    _
  // Predicated region
  $region6: #{model_forward.1} parent=0 // pred_check
    _
  $region7: #{model_forward.1} parent=0 // pred_check_branch
    %19 = sbr.rel (0) target = $region9
  $region8: #{model_forward.1} parent=0 // pred_region
    _
  $region9: #{model_forward.1} parent=0 // pred_fallthru
    _
  // Predicated region
  $region10: #{model_forward.1} parent=0 // pred_check
    _
  $region11: #{model_forward.1} parent=0 // pred_check_branch
    %21 = sbr.rel (0) target = $region13
  $region12: #{model_forward.1} parent=0 // pred_region
    _
  $region13: #{model_forward.1} parent=0 // pred_fallthru
    _
  // Predicated region
  $region14: #{model_forward.1} parent=0 // pred_check
    _
  $region15: #{model_forward.1} parent=0 // pred_check_branch
    %23 = sbr.rel (0) target = $region17
  $region16: #{model_forward.1} parent=0 // pred_region
    _
  $region17: #{model_forward.1} parent=0 // pred_fallthru
    _
  // Predicated region
  $region18: #{model_forward.1} parent=0 // pred_check
    _
  $region19: #{model_forward.1} parent=0 // pred_check_branch
    %25 = sbr.rel (0) target = $region21
  $region20: #{model_forward.1} parent=0 // pred_region
    _
  $region21: #{model_forward.1} parent=0 // pred_fallthru
    _
  // Predicated region
  $region22: #{model_forward.1} parent=0 // pred_check
    _
  $region23: #{model_forward.1} parent=0 // pred_check_branch
    %27 = sbr.rel (0) target = $region25
  $region24: #{model_forward.1} parent=0 // pred_region
    _
  $region25: #{model_forward.1} parent=0 // pred_fallthru
    _
  // Predicated region
  $region26: #{model_forward.1} parent=0 // pred_check
    _
  $region27: #{model_forward.1} parent=0 // pred_check_branch
    %29 = sbr.rel (0) target = $region29
  $region28: #{model_forward.1} parent=0 // pred_region
    _
  $region29: #{model_forward.1} parent=0 // pred_fallthru
    _
  // Predicated region
  $region30: #{model_forward.1} parent=0 // pred_check
    _
  $region31: #{model_forward.1} parent=0 // pred_check_branch
    %31 = sbr.rel (0) target = $region33
  $region32: #{model_forward.1} parent=0 // pred_region
    _
  $region33: #{model_forward.1} parent=0 // pred_fallthru
    _
  // Predicated region
  $region34: #{model_forward.1} parent=0 // pred_check
    _
  $region35: #{model_forward.1} parent=0 // pred_check_branch
    %33 = sbr.rel (0) target = $region37
  $region36: #{model_forward.1} parent=0 // pred_region
    _
  $region37: #{model_forward.1} parent=0 // pred_fallthru
    _
  // Predicated region
  $region38: #{model_forward.1} parent=0 // pred_check
    _
  $region39: #{model_forward.1} parent=0 // pred_check_branch
    %35 = sbr.rel (0) target = $region41
  $region40: #{model_forward.1} parent=0 // pred_region
    _
  $region41: #{model_forward.1} parent=0 // pred_fallthru
    _
  // Predicated region
  $region42: #{model_forward.1} parent=0 // pred_check
    _
  $region43: #{model_forward.1} parent=0 // pred_check_branch
    %37 = sbr.rel (0) target = $region45
  $region44: #{model_forward.1} parent=0 // pred_region
    _
  $region45: #{model_forward.1} parent=0 // pred_fallthru
    _
  %v39 = vld [vmem:[%s1] sm:$0xff]
  %v40 = vld [vmem:[%s1 + $0x8] sm:$0xff]
  %v41 = vld [vmem:[%s2] sm:$0xff]
  %v42 = vld [vmem:[%s2 + $0x8] sm:$0xff]
  %v43 = vld [vmem:[%s2 + $0x10] sm:$0xff]
  %v44 = vld [vmem:[%s2 + $0x18] sm:$0xff]
  %v45 = vld [vmem:[%s2 + $0x20] sm:$0xff]
  %v46 = vld [vmem:[%s2 + $0x28] sm:$0xff]
  %v47 = vld [vmem:[%s2 + $0x30] sm:$0xff]
  %v48 = vld [vmem:[%s2 + $0x38] sm:$0xff]
  %v49 = vld [vmem:[%s2 + $0x40] sm:$0xff]
  %v50 = vld [vmem:[%s2 + $0x48] sm:$0xff]
  %v51 = vld [vmem:[%s2 + $0x50] sm:$0xff]
  %v52 = vld [vmem:[%s2 + $0x58] sm:$0xff]
  %v53 = vld [vmem:[%s2 + $0x60] sm:$0xff]
  %v54 = vld [vmem:[%s2 + $0x68] sm:$0xff]
  %v55 = vld [vmem:[%s2 + $0x70] sm:$0xff]
  %v56 = vld [vmem:[%s2 + $0x78] sm:$0xff]
  %v57 = vld [vmem:[%s2 + $0x80] sm:$0xff]
  %v58 = vld [vmem:[%s2 + $0x88] sm:$0xff]
  %v59 = vld [vmem:[%s2 + $0x90] sm:$0xff]
  %v60 = vld [vmem:[%s2 + $0x98] sm:$0xff]
  %v61 = vld [vmem:[%s2 + $0xa0] sm:$0xff]
  %v62 = vld [vmem:[%s2 + $0xa8] sm:$0xff]
  %v63 = vld [vmem:[%s2 + $0xb0] sm:$0xff]
  %v64 = vld [vmem:[%s2 + $0xb8] sm:$0xff]
  %v65 = vld [vmem:[%s2 + $0xc0] sm:$0xff]
  %v66 = vld [vmem:[%s2 + $0xc8] sm:$0xff]
  %v67 = vld [vmem:[%s2 + $0xd0] sm:$0xff]
  %v68 = vld [vmem:[%s2 + $0xd8] sm:$0xff]
  %v69 = vld [vmem:[%s2 + $0xe0] sm:$0xff]
  %v70 = vld [vmem:[%s2 + $0xe8] sm:$0xff]
  %v71 = vld [vmem:[%s2 + $0xf0] sm:$0xff]
  %v72 = vld [vmem:[%s2 + $0xf8] sm:$0xff]
  %v73 = vld [vmem:[%s3] sm:$0xf]
  %v74 = vld [vmem:[%s0] sm:$0xf]
  %v75 = vld [vmem:[%s0 + $0x4] sm:$0xf]
  %v76 = vld [vmem:[%s0 + $0x8] sm:$0xf]
  %v77 = vld [vmem:[%s0 + $0xc] sm:$0xf]
  %v78 = vld [vmem:[%s0 + $0x10] sm:$0xf]
  %v79 = vld [vmem:[%s0 + $0x14] sm:$0xf]
  %v80 = vld [vmem:[%s0 + $0x18] sm:$0xf]
  %v81 = vld [vmem:[%s0 + $0x1c] sm:$0xf]
  %v82 = vld [vmem:[%s0 + $0x20] sm:$0xf]
  %v83 = vld [vmem:[%s0 + $0x24] sm:$0xf]
  %v84 = vld [vmem:[%s0 + $0x28] sm:$0xf]
  %v85 = vld [vmem:[%s0 + $0x2c] sm:$0xf]
  %v86 = vld [vmem:[%s0 + $0x30] sm:$0xf]
  %v87 = vld [vmem:[%s0 + $0x34] sm:$0xf]
  %v88 = vld [vmem:[%s0 + $0x38] sm:$0xf]
  %v89 = vld [vmem:[%s0 + $0x3c] sm:$0xf]
  %v91 = vlaneseq
  %v92 = vshrl.u32 %v91, 7
  %v93 = vsub.s32 0, %v92
  %v94 = vrot.slane %v73, %v93
  %v95 = vlaneseq
  %v96 = vshrl.u32 %v95, 7
  %v97 = vsub.s32 1, %v96
  %v98 = vrot.slane %v73, %v97
  %v99 = vlaneseq
  %v100 = vshrl.u32 %v99, 7
  %v101 = vsub.s32 2, %v100
  %v102 = vrot.slane %v73, %v101
  %v103 = vlaneseq
  %v104 = vshrl.u32 %v103, 7
  %v105 = vsub.s32 3, %v104
  %v106 = vrot.slane %v73, %v105
  %v127 = vunpack.c.l.b16 %v74
  %v128 = vunpack.c.l.b16 %v75
  %v129 = vunpack.c.l.b16 %v76
  %v130 = vunpack.c.l.b16 %v77
  %v131 = vunpack.c.l.b16 %v78
  %v132 = vunpack.c.l.b16 %v79
  %v133 = vunpack.c.l.b16 %v80
  %v134 = vunpack.c.l.b16 %v81
  %v135 = vunpack.c.l.b16 %v82
  %v136 = vunpack.c.l.b16 %v83
  %v137 = vunpack.c.l.b16 %v84
  %v138 = vunpack.c.l.b16 %v85
  %v139 = vunpack.c.l.b16 %v86
  %v140 = vunpack.c.l.b16 %v87
  %v141 = vunpack.c.l.b16 %v88
  %v142 = vunpack.c.l.b16 %v89
  %v143 = vpack.c.b16 %v128, %v127
  %v144 = vpack.c.b16 %v130, %v129
  %v145 = vpack.c.b16 %v132, %v131
  %v146 = vpack.c.b16 %v134, %v133
  %v147 = vpack.c.b16 %v136, %v135
  %v148 = vpack.c.b16 %v138, %v137
  %v149 = vpack.c.b16 %v140, %v139
  %v150 = vpack.c.b16 %v142, %v141
  %v153 = vunpack.c.l.b16 %v39
  %v154 = vunpack.c.h.b16 %v39
  %v155 = vunpack.c.l.b16 %v40
  %v156 = vunpack.c.h.b16 %v40
  %v157 = vpack.c.b16 %v153, %v153
  %v158 = vpack.c.b16 %v154, %v154
  %v159 = vpack.c.b16 %v155, %v155
  %v160 = vpack.c.b16 %v156, %v156
  %vm161 = vcmask 64512
  %v163 = vsel %vm161, %v143, 0
  %v166 = vsel %vm161, %v144, 0
  %v169 = vsel %vm161, %v145, 0
  %v172 = vsel %vm161, %v146, 0
  %v175 = vsel %vm161, %v147, 0
  %v178 = vsel %vm161, %v148, 0
  %v181 = vsel %vm161, %v149, 0
  %v184 = vsel %vm161, %v150, 0
  %vm186 = vcmask 1043456
  %v188 = vsel %vm186, %v157, 0
  %v191 = vsel %vm186, %v158, 0
  %v194 = vsel %vm186, %v159, 0
  %v197 = vsel %vm186, %v160, 0
  %199 = vmatprep.subr.bf16.mxu0 %v191
  %200 = vmatpush1.bf16.msra.mxu0 %v188
  %201 = vmatprep.subr.bf16.mxu0 0
  %202 = vmatpush1.bf16.msra.mxu0 0
  %203 = vmatprep.subr.bf16.mxu0 0
  %204 = vmatpush1.bf16.msra.mxu0 0
  %205 = vmatprep.subr.bf16.mxu0 0
  %206 = vmatpush1.bf16.msra.mxu0 0
  %207 = vmatprep.subr.bf16.mxu0 0
  %208 = vmatpush1.bf16.msra.mxu0 0
  %209 = vmatprep.subr.bf16.mxu0 0
  %210 = vmatpush1.bf16.msra.mxu0 0
  %211 = vmatprep.subr.bf16.mxu0 0
  %212 = vmatpush1.bf16.msra.mxu0 0
  %213 = vmatprep.subr.bf16.mxu0 0
  %214 = vmatpush1.bf16.msra.mxu0 0
  %215 = vmatprep.subr.bf16.mxu0 0
  %216 = vmatpush1.bf16.msra.mxu0 0
  %217 = vmatprep.subr.bf16.mxu0 0
  %218 = vmatpush1.bf16.msra.mxu0 0
  %219 = vmatprep.subr.bf16.mxu0 0
  %220 = vmatpush1.bf16.msra.mxu0 0
  %221 = vmatprep.subr.bf16.mxu0 0
  %222 = vmatpush1.bf16.msra.mxu0 0
  %223 = vmatprep.subr.bf16.mxu0 0
  %224 = vmatpush1.bf16.msra.mxu0 0
  %225 = vmatprep.subr.bf16.mxu0 0
  %226 = vmatpush1.bf16.msra.mxu0 0
  %227 = vmatprep.subr.bf16.mxu0 0
  %228 = vmatpush1.bf16.msra.mxu0 0
  %229 = vmatprep.subr.bf16.mxu0 0
  %230 = vmatpush1.bf16.msra.mxu0 0
  %231 = vmatprep.mubr.bf16.mxu0 0
  %232 = vmatmul.mubr.bf16.gmra.mrb[0].mxu0 %v163
  %v233 = vpop.f32.mrb[0].mxu0
  %v234 = vadd.f32 %v94, %v233
  %v235 = vpop.f32.mrb[0].mxu0
  %v236 = vadd.f32 %v98, %v235
  %v237 = vpop.f32.mrb[0].mxu0
  %v238 = vadd.f32 %v94, %v237
  %v239 = vpop.f32.mrb[0].mxu0
  %v240 = vadd.f32 %v98, %v239
  %241 = vmatprep.mubr.bf16.mxu0 0
  %242 = vmatmul.mubr.bf16.gmra.mrb[0].mxu0 %v166
  %v243 = vpop.f32.mrb[0].mxu0
  %v244 = vadd.f32 %v94, %v243
  %v245 = vpop.f32.mrb[0].mxu0
  %v246 = vadd.f32 %v98, %v245
  %v247 = vpop.f32.mrb[0].mxu0
  %v248 = vadd.f32 %v94, %v247
  %v249 = vpop.f32.mrb[0].mxu0
  %v250 = vadd.f32 %v98, %v249
  %251 = vmatprep.mubr.bf16.mxu0 0
  %252 = vmatmul.mubr.bf16.gmra.mrb[0].mxu0 %v169
  %v253 = vpop.f32.mrb[0].mxu0
  %v254 = vadd.f32 %v94, %v253
  %v255 = vpop.f32.mrb[0].mxu0
  %v256 = vadd.f32 %v98, %v255
  %v257 = vpop.f32.mrb[0].mxu0
  %v258 = vadd.f32 %v94, %v257
  %v259 = vpop.f32.mrb[0].mxu0
  %v260 = vadd.f32 %v98, %v259
  %261 = vmatprep.mubr.bf16.mxu0 0
  %262 = vmatmul.mubr.bf16.gmra.mrb[0].mxu0 %v172
  %v263 = vpop.f32.mrb[0].mxu0
  %v264 = vadd.f32 %v94, %v263
  %v265 = vpop.f32.mrb[0].mxu0
  %v266 = vadd.f32 %v98, %v265
  %v267 = vpop.f32.mrb[0].mxu0
  %v268 = vadd.f32 %v94, %v267
  %v269 = vpop.f32.mrb[0].mxu0
  %v270 = vadd.f32 %v98, %v269
  %271 = vmatprep.mubr.bf16.mxu0 0
  %272 = vmatmul.mubr.bf16.gmra.mrb[0].mxu0 %v175
  %v273 = vpop.f32.mrb[0].mxu0
  %v274 = vadd.f32 %v94, %v273
  %v275 = vpop.f32.mrb[0].mxu0
  %v276 = vadd.f32 %v98, %v275
  %v277 = vpop.f32.mrb[0].mxu0
  %v278 = vadd.f32 %v94, %v277
  %v279 = vpop.f32.mrb[0].mxu0
  %v280 = vadd.f32 %v98, %v279
  %281 = vmatprep.mubr.bf16.mxu0 0
  %282 = vmatmul.mubr.bf16.gmra.mrb[0].mxu0 %v178
  %v283 = vpop.f32.mrb[0].mxu0
  %v284 = vadd.f32 %v94, %v283
  %v285 = vpop.f32.mrb[0].mxu0
  %v286 = vadd.f32 %v98, %v285
  %v287 = vpop.f32.mrb[0].mxu0
  %v288 = vadd.f32 %v94, %v287
  %v289 = vpop.f32.mrb[0].mxu0
  %v290 = vadd.f32 %v98, %v289
  %291 = vmatprep.mubr.bf16.mxu0 0
  %292 = vmatmul.mubr.bf16.gmra.mrb[0].mxu0 %v181
  %v293 = vpop.f32.mrb[0].mxu0
  %v294 = vadd.f32 %v94, %v293
  %v295 = vpop.f32.mrb[0].mxu0
  %v296 = vadd.f32 %v98, %v295
  %v297 = vpop.f32.mrb[0].mxu0
  %v298 = vadd.f32 %v94, %v297
  %v299 = vpop.f32.mrb[0].mxu0
  %v300 = vadd.f32 %v98, %v299
  %301 = vmatprep.mubr.bf16.mxu0 0
  %302 = vmatmul.mubr.bf16.gmra.mrb[0].mxu0 %v184
  %v303 = vpop.f32.mrb[0].mxu0
  %v304 = vadd.f32 %v94, %v303
  %v305 = vpop.f32.mrb[0].mxu0
  %v306 = vadd.f32 %v98, %v305
  %v307 = vpop.f32.mrb[0].mxu0
  %v308 = vadd.f32 %v94, %v307
  %v309 = vpop.f32.mrb[0].mxu0
  %v310 = vadd.f32 %v98, %v309
  %311 = vdwg.mxu0
  %312 = vmatprep.subr.bf16.mxu0 %v197
  %313 = vmatpush1.bf16.msra.mxu0 %v194
  %314 = vmatprep.subr.bf16.mxu0 0
  %315 = vmatpush1.bf16.msra.mxu0 0
  %316 = vmatprep.subr.bf16.mxu0 0
  %317 = vmatpush1.bf16.msra.mxu0 0
  %318 = vmatprep.subr.bf16.mxu0 0
  %319 = vmatpush1.bf16.msra.mxu0 0
  %320 = vmatprep.subr.bf16.mxu0 0
  %321 = vmatpush1.bf16.msra.mxu0 0
  %322 = vmatprep.subr.bf16.mxu0 0
  %323 = vmatpush1.bf16.msra.mxu0 0
  %324 = vmatprep.subr.bf16.mxu0 0
  %325 = vmatpush1.bf16.msra.mxu0 0
  %326 = vmatprep.subr.bf16.mxu0 0
  %327 = vmatpush1.bf16.msra.mxu0 0
  %328 = vmatprep.subr.bf16.mxu0 0
  %329 = vmatpush1.bf16.msra.mxu0 0
  %330 = vmatprep.subr.bf16.mxu0 0
  %331 = vmatpush1.bf16.msra.mxu0 0
  %332 = vmatprep.subr.bf16.mxu0 0
  %333 = vmatpush1.bf16.msra.mxu0 0
  %334 = vmatprep.subr.bf16.mxu0 0
  %335 = vmatpush1.bf16.msra.mxu0 0
  %336 = vmatprep.subr.bf16.mxu0 0
  %337 = vmatpush1.bf16.msra.mxu0 0
  %338 = vmatprep.subr.bf16.mxu0 0
  %339 = vmatpush1.bf16.msra.mxu0 0
  %340 = vmatprep.subr.bf16.mxu0 0
  %341 = vmatpush1.bf16.msra.mxu0 0
  %342 = vmatprep.subr.bf16.mxu0 0
  %343 = vmatpush1.bf16.msra.mxu0 0
  %344 = vmatprep.mubr.bf16.mxu0 0
  %345 = vmatmul.mubr.bf16.gmra.mrb[0].mxu0 %v163
  %v346 = vpop.f32.mrb[0].mxu0
  %v347 = vadd.f32 %v102, %v346
  %v348 = vpop.f32.mrb[0].mxu0
  %v349 = vadd.f32 %v106, %v348
  %v350 = vpop.f32.mrb[0].mxu0
  %v351 = vadd.f32 %v102, %v350
  %v352 = vpop.f32.mrb[0].mxu0
  %v353 = vadd.f32 %v106, %v352
  %354 = vmatprep.mubr.bf16.mxu0 0
  %355 = vmatmul.mubr.bf16.gmra.mrb[0].mxu0 %v166
  %v356 = vpop.f32.mrb[0].mxu0
  %v357 = vadd.f32 %v102, %v356
  %v358 = vpop.f32.mrb[0].mxu0
  %v359 = vadd.f32 %v106, %v358
  %v360 = vpop.f32.mrb[0].mxu0
  %v361 = vadd.f32 %v102, %v360
  %v362 = vpop.f32.mrb[0].mxu0
  %v363 = vadd.f32 %v106, %v362
  %364 = vmatprep.mubr.bf16.mxu0 0
  %365 = vmatmul.mubr.bf16.gmra.mrb[0].mxu0 %v169
  %v366 = vpop.f32.mrb[0].mxu0
  %v367 = vadd.f32 %v102, %v366
  %v368 = vpop.f32.mrb[0].mxu0
  %v369 = vadd.f32 %v106, %v368
  %v370 = vpop.f32.mrb[0].mxu0
  %v371 = vadd.f32 %v102, %v370
  %v372 = vpop.f32.mrb[0].mxu0
  %v373 = vadd.f32 %v106, %v372
  %374 = vmatprep.mubr.bf16.mxu0 0
  %375 = vmatmul.mubr.bf16.gmra.mrb[0].mxu0 %v172
  %v376 = vpop.f32.mrb[0].mxu0
  %v377 = vadd.f32 %v102, %v376
  %v378 = vpop.f32.mrb[0].mxu0
  %v379 = vadd.f32 %v106, %v378
  %v380 = vpop.f32.mrb[0].mxu0
  %v381 = vadd.f32 %v102, %v380
  %v382 = vpop.f32.mrb[0].mxu0
  %v383 = vadd.f32 %v106, %v382
  %384 = vmatprep.mubr.bf16.mxu0 0
  %385 = vmatmul.mubr.bf16.gmra.mrb[0].mxu0 %v175
  %v386 = vpop.f32.mrb[0].mxu0
  %v387 = vadd.f32 %v102, %v386
  %v388 = vpop.f32.mrb[0].mxu0
  %v389 = vadd.f32 %v106, %v388
  %v390 = vpop.f32.mrb[0].mxu0
  %v391 = vadd.f32 %v102, %v390
  %v392 = vpop.f32.mrb[0].mxu0
  %v393 = vadd.f32 %v106, %v392
  %394 = vmatprep.mubr.bf16.mxu0 0
  %395 = vmatmul.mubr.bf16.gmra.mrb[0].mxu0 %v178
  %v396 = vpop.f32.mrb[0].mxu0
  %v397 = vadd.f32 %v102, %v396
  %v398 = vpop.f32.mrb[0].mxu0
  %v399 = vadd.f32 %v106, %v398
  %v400 = vpop.f32.mrb[0].mxu0
  %v401 = vadd.f32 %v102, %v400
  %v402 = vpop.f32.mrb[0].mxu0
  %v403 = vadd.f32 %v106, %v402
  %404 = vmatprep.mubr.bf16.mxu0 0
  %405 = vmatmul.mubr.bf16.gmra.mrb[0].mxu0 %v181
  %v406 = vpop.f32.mrb[0].mxu0
  %v407 = vadd.f32 %v102, %v406
  %v408 = vpop.f32.mrb[0].mxu0
  %v409 = vadd.f32 %v106, %v408
  %v410 = vpop.f32.mrb[0].mxu0
  %v411 = vadd.f32 %v102, %v410
  %v412 = vpop.f32.mrb[0].mxu0
  %v413 = vadd.f32 %v106, %v412
  %414 = vmatprep.mubr.bf16.mxu0 0
  %415 = vmatmul.mubr.bf16.gmra.mrb[0].mxu0 %v184
  %v416 = vpop.f32.mrb[0].mxu0
  %v417 = vadd.f32 %v102, %v416
  %v418 = vpop.f32.mrb[0].mxu0
  %v419 = vadd.f32 %v106, %v418
  %v420 = vpop.f32.mrb[0].mxu0
  %v421 = vadd.f32 %v102, %v420
  %v422 = vpop.f32.mrb[0].mxu0
  %v423 = vadd.f32 %v106, %v422
  %424 = vdwg.mxu0
  %425 = vst [vmem:[#allocation2] sm:$0xff] %v234
  %426 = vst [vmem:[#allocation2 + $0x8] sm:$0xff] %v236
  %427 = vst [vmem:[#allocation2 + $0x10] sm:$0xff] %v347
  %428 = vst [vmem:[#allocation2 + $0x18] sm:$0xff] %v349
  %429 = vst [vmem:[#allocation2 + $0x20] sm:$0xff] %v238
  %430 = vst [vmem:[#allocation2 + $0x28] sm:$0xff] %v240
  %431 = vst [vmem:[#allocation2 + $0x30] sm:$0xff] %v351
  %432 = vst [vmem:[#allocation2 + $0x38] sm:$0xff] %v353
  %433 = vst [vmem:[#allocation2 + $0x40] sm:$0xff] %v244
  %434 = vst [vmem:[#allocation2 + $0x48] sm:$0xff] %v246
  %435 = vst [vmem:[#allocation2 + $0x50] sm:$0xff] %v357
  %436 = vst [vmem:[#allocation2 + $0x58] sm:$0xff] %v359
  %437 = vst [vmem:[#allocation2 + $0x60] sm:$0xff] %v248
  %438 = vst [vmem:[#allocation2 + $0x68] sm:$0xff] %v250
  %439 = vst [vmem:[#allocation2 + $0x70] sm:$0xff] %v361
  %440 = vst [vmem:[#allocation2 + $0x78] sm:$0xff] %v363
  %441 = vst [vmem:[#allocation2 + $0x80] sm:$0xff] %v254
  %442 = vst [vmem:[#allocation2 + $0x88] sm:$0xff] %v256
  %443 = vst [vmem:[#allocation2 + $0x90] sm:$0xff] %v367
  %444 = vst [vmem:[#allocation2 + $0x98] sm:$0xff] %v369
  %445 = vst [vmem:[#allocation2 + $0xa0] sm:$0xff] %v258
  %446 = vst [vmem:[#allocation2 + $0xa8] sm:$0xff] %v260
  %447 = vst [vmem:[#allocation2 + $0xb0] sm:$0xff] %v371
  %448 = vst [vmem:[#allocation2 + $0xb8] sm:$0xff] %v373
  %449 = vst [vmem:[#allocation2 + $0xc0] sm:$0xff] %v264
  %450 = vst [vmem:[#allocation2 + $0xc8] sm:$0xff] %v266
  %451 = vst [vmem:[#allocation2 + $0xd0] sm:$0xff] %v377
  %452 = vst [vmem:[#allocation2 + $0xd8] sm:$0xff] %v379
  %453 = vst [vmem:[#allocation2 + $0xe0] sm:$0xff] %v268
  %454 = vst [vmem:[#allocation2 + $0xe8] sm:$0xff] %v270
  %455 = vst [vmem:[#allocation2 + $0xf0] sm:$0xff] %v381
  %456 = vst [vmem:[#allocation2 + $0xf8] sm:$0xff] %v383
  %457 = vst [vmem:[#allocation2 + $0x100] sm:$0xff] %v274
  %458 = vst [vmem:[#allocation2 + $0x108] sm:$0xff] %v276
  %459 = vst [vmem:[#allocation2 + $0x110] sm:$0xff] %v387
  %460 = vst [vmem:[#allocation2 + $0x118] sm:$0xff] %v389
  %461 = vst [vmem:[#allocation2 + $0x120] sm:$0xff] %v278
  %462 = vst [vmem:[#allocation2 + $0x128] sm:$0xff] %v280
  %463 = vst [vmem:[#allocation2 + $0x130] sm:$0xff] %v391
  %464 = vst [vmem:[#allocation2 + $0x138] sm:$0xff] %v393
  %465 = vst [vmem:[#allocation2 + $0x140] sm:$0xff] %v284
  %466 = vst [vmem:[#allocation2 + $0x148] sm:$0xff] %v286
  %467 = vst [vmem:[#allocation2 + $0x150] sm:$0xff] %v397
  %468 = vst [vmem:[#allocation2 + $0x158] sm:$0xff] %v399
  %469 = vst [vmem:[#allocation2 + $0x160] sm:$0xff] %v288
  %470 = vst [vmem:[#allocation2 + $0x168] sm:$0xff] %v290
  %471 = vst [vmem:[#allocation2 + $0x170] sm:$0xff] %v401
  %472 = vst [vmem:[#allocation2 + $0x178] sm:$0xff] %v403
  %473 = vst [vmem:[#allocation2 + $0x180] sm:$0xff] %v294
  %474 = vst [vmem:[#allocation2 + $0x188] sm:$0xff] %v296
  %475 = vst [vmem:[#allocation2 + $0x190] sm:$0xff] %v407
  %476 = vst [vmem:[#allocation2 + $0x198] sm:$0xff] %v409
  %477 = vst [vmem:[#allocation2 + $0x1a0] sm:$0xff] %v298
  %478 = vst [vmem:[#allocation2 + $0x1a8] sm:$0xff] %v300
  %479 = vst [vmem:[#allocation2 + $0x1b0] sm:$0xff] %v411
  %480 = vst [vmem:[#allocation2 + $0x1b8] sm:$0xff] %v413
  %481 = vst [vmem:[#allocation2 + $0x1c0] sm:$0xff] %v304
  %482 = vst [vmem:[#allocation2 + $0x1c8] sm:$0xff] %v306
  %483 = vst [vmem:[#allocation2 + $0x1d0] sm:$0xff] %v417
  %484 = vst [vmem:[#allocation2 + $0x1d8] sm:$0xff] %v419
  %485 = vst [vmem:[#allocation2 + $0x1e0] sm:$0xff] %v308
  %486 = vst [vmem:[#allocation2 + $0x1e8] sm:$0xff] %v310
  %487 = vst [vmem:[#allocation2 + $0x1f0] sm:$0xff] %v421
  %488 = vst [vmem:[#allocation2 + $0x1f8] sm:$0xff] %v423
  %s489 = smul.u32 0, 4
  %s490 = smul.addr %s489, 8
  %s491 = scalar_lea.vmem [#allocation2], %s490
  %v492 = vld [vmem:[%s491] sm:$0xff]
  %v493 = vld [vmem:[%s491 + $0x8] sm:$0xff]
  %v494 = vld [vmem:[%s491 + $0x10] sm:$0xff]
  %v495 = vld [vmem:[%s491 + $0x18] sm:$0xff]
  %v496 = vld [vmem:[%s491 + $0x20] sm:$0xff]
  %v497 = vld [vmem:[%s491 + $0x28] sm:$0xff]
  %v498 = vld [vmem:[%s491 + $0x30] sm:$0xff]
  %v499 = vld [vmem:[%s491 + $0x38] sm:$0xff]
  %v532 = vunpack.c.l.b16 %v41
  %v533 = vunpack.c.h.b16 %v41
  %v534 = vunpack.c.l.b16 %v42
  %v535 = vunpack.c.h.b16 %v42
  %v536 = vunpack.c.l.b16 %v43
  %v537 = vunpack.c.h.b16 %v43
  %v538 = vunpack.c.l.b16 %v44
  %v539 = vunpack.c.h.b16 %v44
  %v540 = vunpack.c.l.b16 %v45
  %v541 = vunpack.c.h.b16 %v45
  %v542 = vunpack.c.l.b16 %v46
  %v543 = vunpack.c.h.b16 %v46
  %v544 = vunpack.c.l.b16 %v47
  %v545 = vunpack.c.h.b16 %v47
  %v546 = vunpack.c.l.b16 %v48
  %v547 = vunpack.c.h.b16 %v48
  %v548 = vunpack.c.l.b16 %v49
  %v549 = vunpack.c.h.b16 %v49
  %v550 = vunpack.c.l.b16 %v50
  %v551 = vunpack.c.h.b16 %v50
  %v552 = vunpack.c.l.b16 %v51
  %v553 = vunpack.c.h.b16 %v51
  %v554 = vunpack.c.l.b16 %v52
  %v555 = vunpack.c.h.b16 %v52
  %v556 = vunpack.c.l.b16 %v53
  %v557 = vunpack.c.h.b16 %v53
  %v558 = vunpack.c.l.b16 %v54
  %v559 = vunpack.c.h.b16 %v54
  %v560 = vunpack.c.l.b16 %v55
  %v561 = vunpack.c.h.b16 %v55
  %v562 = vunpack.c.l.b16 %v56
  %v563 = vunpack.c.h.b16 %v56
  %v564 = vunpack.c.l.b16 %v57
  %v565 = vunpack.c.h.b16 %v57
  %v566 = vunpack.c.l.b16 %v58
  %v567 = vunpack.c.h.b16 %v58
  %v568 = vunpack.c.l.b16 %v59
  %v569 = vunpack.c.h.b16 %v59
  %v570 = vunpack.c.l.b16 %v60
  %v571 = vunpack.c.h.b16 %v60
  %v572 = vunpack.c.l.b16 %v61
  %v573 = vunpack.c.h.b16 %v61
  %v574 = vunpack.c.l.b16 %v62
  %v575 = vunpack.c.h.b16 %v62
  %v576 = vunpack.c.l.b16 %v63
  %v577 = vunpack.c.h.b16 %v63
  %v578 = vunpack.c.l.b16 %v64
  %v579 = vunpack.c.h.b16 %v64
  %v580 = vunpack.c.l.b16 %v65
  %v581 = vunpack.c.h.b16 %v65
  %v582 = vunpack.c.l.b16 %v66
  %v583 = vunpack.c.h.b16 %v66
  %v584 = vunpack.c.l.b16 %v67
  %v585 = vunpack.c.h.b16 %v67
  %v586 = vunpack.c.l.b16 %v68
  %v587 = vunpack.c.h.b16 %v68
  %v588 = vunpack.c.l.b16 %v69
  %v589 = vunpack.c.h.b16 %v69
  %v590 = vunpack.c.l.b16 %v70
  %v591 = vunpack.c.h.b16 %v70
  %v592 = vunpack.c.l.b16 %v71
  %v593 = vunpack.c.h.b16 %v71
  %v594 = vunpack.c.l.b16 %v72
  %v595 = vunpack.c.h.b16 %v72
  %v596 = vpack.c.b16 %v536, %v532
  %v597 = vpack.c.b16 %v537, %v533
  %v598 = vpack.c.b16 %v538, %v534
  %v599 = vpack.c.b16 %v539, %v535
  %v600 = vpack.c.b16 %v544, %v540
  %v601 = vpack.c.b16 %v545, %v541
  %v602 = vpack.c.b16 %v546, %v542
  %v603 = vpack.c.b16 %v547, %v543
  %v604 = vpack.c.b16 %v552, %v548
  %v605 = vpack.c.b16 %v553, %v549
  %v606 = vpack.c.b16 %v554, %v550
  %v607 = vpack.c.b16 %v555, %v551
  %v608 = vpack.c.b16 %v560, %v556
  %v609 = vpack.c.b16 %v561, %v557
  %v610 = vpack.c.b16 %v562, %v558
  %v611 = vpack.c.b16 %v563, %v559
  %v612 = vpack.c.b16 %v568, %v564
  %v613 = vpack.c.b16 %v569, %v565
  %v614 = vpack.c.b16 %v570, %v566
  %v615 = vpack.c.b16 %v571, %v567
  %v616 = vpack.c.b16 %v576, %v572
  %v617 = vpack.c.b16 %v577, %v573
  %v618 = vpack.c.b16 %v578, %v574
  %v619 = vpack.c.b16 %v579, %v575
  %v620 = vpack.c.b16 %v584, %v580
  %v621 = vpack.c.b16 %v585, %v581
  %v622 = vpack.c.b16 %v586, %v582
  %v623 = vpack.c.b16 %v587, %v583
  %v624 = vpack.c.b16 %v592, %v588
  %v625 = vpack.c.b16 %v593, %v589
  %v626 = vpack.c.b16 %v594, %v590
  %v627 = vpack.c.b16 %v595, %v591
  %660 = vmatprep.subr.bf16.mxu0 %v597
  %661 = vmatpush1.bf16.msra.mxu0 %v596
  %662 = vmatprep.subr.bf16.mxu0 %v601
  %663 = vmatpush1.bf16.msra.mxu0 %v600
  %664 = vmatprep.subr.bf16.mxu0 %v605
  %665 = vmatpush1.bf16.msra.mxu0 %v604
  %666 = vmatprep.subr.bf16.mxu0 %v609
  %667 = vmatpush1.bf16.msra.mxu0 %v608
  %668 = vmatprep.subr.bf16.mxu0 %v613
  %669 = vmatpush1.bf16.msra.mxu0 %v612
  %670 = vmatprep.subr.bf16.mxu0 %v617
  %671 = vmatpush1.bf16.msra.mxu0 %v616
  %672 = vmatprep.subr.bf16.mxu0 %v621
  %673 = vmatpush1.bf16.msra.mxu0 %v620
  %674 = vmatprep.subr.bf16.mxu0 %v625
  %675 = vmatpush1.bf16.msra.mxu0 %v624
  %676 = vmatprep.subr.bf16.mxu0 0
  %677 = vmatpush1.bf16.msra.mxu0 0
  %678 = vmatprep.subr.bf16.mxu0 0
  %679 = vmatpush1.bf16.msra.mxu0 0
  %680 = vmatprep.subr.bf16.mxu0 0
  %681 = vmatpush1.bf16.msra.mxu0 0
  %682 = vmatprep.subr.bf16.mxu0 0
  %683 = vmatpush1.bf16.msra.mxu0 0
  %684 = vmatprep.subr.bf16.mxu0 0
  %685 = vmatpush1.bf16.msra.mxu0 0
  %686 = vmatprep.subr.bf16.mxu0 0
  %687 = vmatpush1.bf16.msra.mxu0 0
  %688 = vmatprep.subr.bf16.mxu0 0
  %689 = vmatpush1.bf16.msra.mxu0 0
  %690 = vmatprep.subr.bf16.mxu0 0
  %691 = vmatpush1.bf16.msra.mxu0 0
  %692 = vmatprep.mubr.bf16.mxu0 0
  %693 = vmatmul.mubr.bf16.gmra.mrb[0].mxu0 0
  %v694 = vpop.f32.mrb[0].mxu0
  %v695 = vadd.f32 0.0, %v694
  %v696 = vpop.f32.mrb[0].mxu0
  %v697 = vadd.f32 0.0, %v696
  %v698 = vpop.f32.mrb[0].mxu0
  %v699 = vadd.f32 0.0, %v698
  %v700 = vpop.f32.mrb[0].mxu0
  %v701 = vadd.f32 0.0, %v700
  %702 = vdwg.mxu0
  %703 = vmatprep.subr.bf16.mxu0 %v599
  %704 = vmatpush1.bf16.msra.mxu0 %v598
  %705 = vmatprep.subr.bf16.mxu0 %v603
  %706 = vmatpush1.bf16.msra.mxu0 %v602
  %707 = vmatprep.subr.bf16.mxu0 %v607
  %708 = vmatpush1.bf16.msra.mxu0 %v606
  %709 = vmatprep.subr.bf16.mxu0 %v611
  %710 = vmatpush1.bf16.msra.mxu0 %v610
  %711 = vmatprep.subr.bf16.mxu0 %v615
  %712 = vmatpush1.bf16.msra.mxu0 %v614
  %713 = vmatprep.subr.bf16.mxu0 %v619
  %714 = vmatpush1.bf16.msra.mxu0 %v618
  %715 = vmatprep.subr.bf16.mxu0 %v623
  %716 = vmatpush1.bf16.msra.mxu0 %v622
  %717 = vmatprep.subr.bf16.mxu0 %v627
  %718 = vmatpush1.bf16.msra.mxu0 %v626
  %719 = vmatprep.subr.bf16.mxu0 0
  %720 = vmatpush1.bf16.msra.mxu0 0
  %721 = vmatprep.subr.bf16.mxu0 0
  %722 = vmatpush1.bf16.msra.mxu0 0
  %723 = vmatprep.subr.bf16.mxu0 0
  %724 = vmatpush1.bf16.msra.mxu0 0
  %725 = vmatprep.subr.bf16.mxu0 0
  %726 = vmatpush1.bf16.msra.mxu0 0
  %727 = vmatprep.subr.bf16.mxu0 0
  %728 = vmatpush1.bf16.msra.mxu0 0
  %729 = vmatprep.subr.bf16.mxu0 0
  %730 = vmatpush1.bf16.msra.mxu0 0
  %731 = vmatprep.subr.bf16.mxu0 0
  %732 = vmatpush1.bf16.msra.mxu0 0
  %733 = vmatprep.subr.bf16.mxu0 0
  %734 = vmatpush1.bf16.msra.mxu0 0
  %735 = vmatprep.mubr.bf16.mxu0 0
  %736 = vmatmul.mubr.bf16.gmra.mrb[0].mxu0 0
  %v737 = vpop.f32.mrb[0].mxu0
  %v738 = vadd.f32 0.0, %v737
  %v739 = vpop.f32.mrb[0].mxu0
  %v740 = vadd.f32 0.0, %v739
  %v741 = vpop.f32.mrb[0].mxu0
  %v742 = vadd.f32 0.0, %v741
  %v743 = vpop.f32.mrb[0].mxu0
  %v744 = vadd.f32 0.0, %v743
  %745 = vdwg.mxu0
  %v746 = vadd.f32 %v492, %v695
  %v747 = vadd.f32 %v493, %v697
  %v748 = vadd.f32 %v494, %v738
  %v749 = vadd.f32 %v495, %v740
  %v750 = vadd.f32 %v496, %v699
  %v751 = vadd.f32 %v497, %v701
  %v752 = vadd.f32 %v498, %v742
  %v753 = vadd.f32 %v499, %v744
  %v754 = vxor.u32 %v746, 2147483648
  %v755 = vxor.u32 %v750, 2147483648
  %v756 = vmul.f32 %v754, 1.442695
  %v757 = vpow.pop %v756
  %v758 = vmul.f32 %v755, 1.442695
  %v759 = vpow.pop %v758
  %v760 = vadd.f32 %v757, 1.0
  %v761 = vadd.f32 %v759, 1.0
  %v762 = vrcp.pop %v760
  %v763 = vmul.f32 1.0, %v762
  %v764 = vrcp.pop %v761
  %v765 = vmul.f32 1.0, %v764
  %v766 = vxor.u32 %v747, 2147483648
  %v767 = vxor.u32 %v751, 2147483648
  %v768 = vmul.f32 %v766, 1.442695
  %v769 = vpow.pop %v768
  %v770 = vmul.f32 %v767, 1.442695
  %v771 = vpow.pop %v770
  %v772 = vadd.f32 %v769, 1.0
  %v773 = vadd.f32 %v771, 1.0
  %v774 = vrcp.pop %v772
  %v775 = vmul.f32 1.0, %v774
  %v776 = vrcp.pop %v773
  %v777 = vmul.f32 1.0, %v776
  %v778 = vtanh.pop %v748
  %v779 = vtanh.pop %v752
  %v780 = vxor.u32 %v749, 2147483648
  %v781 = vxor.u32 %v753, 2147483648
  %v782 = vmul.f32 %v780, 1.442695
  %v783 = vpow.pop %v782
  %v784 = vmul.f32 %v781, 1.442695
  %v785 = vpow.pop %v784
  %v786 = vadd.f32 %v783, 1.0
  %v787 = vadd.f32 %v785, 1.0
  %v788 = vrcp.pop %v786
  %v789 = vmul.f32 1.0, %v788
  %v790 = vrcp.pop %v787
  %v791 = vmul.f32 1.0, %v790
  %v792 = vmul.f32 %v775, 0.0
  %v793 = vmul.f32 %v777, 0.0
  %v794 = vmul.f32 %v763, %v778
  %v795 = vmul.f32 %v765, %v779
  %v796 = vadd.f32 %v792, %v794
  %v797 = vadd.f32 %v793, %v795
  %v798 = vtanh.pop %v796
  %v799 = vtanh.pop %v797
  %v800 = vmul.f32 %v789, %v798
  %v801 = vmul.f32 %v791, %v799
  %v802 = vpack.c.bf16 %v801, %v800
  %803 = vst [vmem:[#allocation3] sm:$0xff] %v802
  %s804 = smul.u32 2, 4
  %s805 = smul.addr %s804, 8
  %s806 = scalar_lea.vmem [#allocation2], %s805
  %v807 = vld [vmem:[%s806] sm:$0xff]
  %v808 = vld [vmem:[%s806 + $0x8] sm:$0xff]
  %v809 = vld [vmem:[%s806 + $0x10] sm:$0xff]
  %v810 = vld [vmem:[%s806 + $0x18] sm:$0xff]
  %v811 = vld [vmem:[%s806 + $0x20] sm:$0xff]
  %v812 = vld [vmem:[%s806 + $0x28] sm:$0xff]
  %v813 = vld [vmem:[%s806 + $0x30] sm:$0xff]
  %v814 = vld [vmem:[%s806 + $0x38] sm:$0xff]
  %815 = vmatprep.subr.bf16.mxu0 %v597
  %816 = vmatpush1.bf16.msra.mxu0 %v596
  %817 = vmatprep.subr.bf16.mxu0 %v601
  %818 = vmatpush1.bf16.msra.mxu0 %v600
  %819 = vmatprep.subr.bf16.mxu0 %v605
  %820 = vmatpush1.bf16.msra.mxu0 %v604
  %821 = vmatprep.subr.bf16.mxu0 %v609
  %822 = vmatpush1.bf16.msra.mxu0 %v608
  %823 = vmatprep.subr.bf16.mxu0 %v613
  %824 = vmatpush1.bf16.msra.mxu0 %v612
  %825 = vmatprep.subr.bf16.mxu0 %v617
  %826 = vmatpush1.bf16.msra.mxu0 %v616
  %827 = vmatprep.subr.bf16.mxu0 %v621
  %828 = vmatpush1.bf16.msra.mxu0 %v620
  %829 = vmatprep.subr.bf16.mxu0 %v625
  %830 = vmatpush1.bf16.msra.mxu0 %v624
  %831 = vmatprep.subr.bf16.mxu0 0
  %832 = vmatpush1.bf16.msra.mxu0 0
  %833 = vmatprep.subr.bf16.mxu0 0
  %834 = vmatpush1.bf16.msra.mxu0 0
  %835 = vmatprep.subr.bf16.mxu0 0
  %836 = vmatpush1.bf16.msra.mxu0 0
  %837 = vmatprep.subr.bf16.mxu0 0
  %838 = vmatpush1.bf16.msra.mxu0 0
  %839 = vmatprep.subr.bf16.mxu0 0
  %840 = vmatpush1.bf16.msra.mxu0 0
  %841 = vmatprep.subr.bf16.mxu0 0
  %842 = vmatpush1.bf16.msra.mxu0 0
  %843 = vmatprep.subr.bf16.mxu0 0
  %844 = vmatpush1.bf16.msra.mxu0 0
  %845 = vmatprep.subr.bf16.mxu0 0
  %846 = vmatpush1.bf16.msra.mxu0 0
  %847 = vmatprep.mubr.bf16.mxu0 0
  %848 = vmatmul.mubr.bf16.gmra.mrb[0].mxu0 %v802
  %v849 = vpop.f32.mrb[0].mxu0
  %v850 = vadd.f32 0.0, %v849
  %v851 = vpop.f32.mrb[0].mxu0
  %v852 = vadd.f32 0.0, %v851
  %v853 = vpop.f32.mrb[0].mxu0
  %v854 = vadd.f32 0.0, %v853
  %v855 = vpop.f32.mrb[0].mxu0
  %v856 = vadd.f32 0.0, %v855
  %857 = vdwg.mxu0
  %858 = vmatprep.subr.bf16.mxu0 %v599
  %859 = vmatpush1.bf16.msra.mxu0 %v598
  %860 = vmatprep.subr.bf16.mxu0 %v603
  %861 = vmatpush1.bf16.msra.mxu0 %v602
  %862 = vmatprep.subr.bf16.mxu0 %v607
  %863 = vmatpush1.bf16.msra.mxu0 %v606
  %864 = vmatprep.subr.bf16.mxu0 %v611
  %865 = vmatpush1.bf16.msra.mxu0 %v610
  %866 = vmatprep.subr.bf16.mxu0 %v615
  %867 = vmatpush1.bf16.msra.mxu0 %v614
  %868 = vmatprep.subr.bf16.mxu0 %v619
  %869 = vmatpush1.bf16.msra.mxu0 %v618
  %870 = vmatprep.subr.bf16.mxu0 %v623
  %871 = vmatpush1.bf16.msra.mxu0 %v622
  %872 = vmatprep.subr.bf16.mxu0 %v627
  %873 = vmatpush1.bf16.msra.mxu0 %v626
  %874 = vmatprep.subr.bf16.mxu0 0
  %875 = vmatpush1.bf16.msra.mxu0 0
  %876 = vmatprep.subr.bf16.mxu0 0
  %877 = vmatpush1.bf16.msra.mxu0 0
  %878 = vmatprep.subr.bf16.mxu0 0
  %879 = vmatpush1.bf16.msra.mxu0 0
  %880 = vmatprep.subr.bf16.mxu0 0
  %881 = vmatpush1.bf16.msra.mxu0 0
  %882 = vmatprep.subr.bf16.mxu0 0
  %883 = vmatpush1.bf16.msra.mxu0 0
  %884 = vmatprep.subr.bf16.mxu0 0
  %885 = vmatpush1.bf16.msra.mxu0 0
  %886 = vmatprep.subr.bf16.mxu0 0
  %887 = vmatpush1.bf16.msra.mxu0 0
  %888 = vmatprep.subr.bf16.mxu0 0
  %889 = vmatpush1.bf16.msra.mxu0 0
  %890 = vmatprep.mubr.bf16.mxu0 0
  %891 = vmatmul.mubr.bf16.gmra.mrb[0].mxu0 %v802
  %v892 = vpop.f32.mrb[0].mxu0
  %v893 = vadd.f32 0.0, %v892
  %v894 = vpop.f32.mrb[0].mxu0
  %v895 = vadd.f32 0.0, %v894
  %v896 = vpop.f32.mrb[0].mxu0
  %v897 = vadd.f32 0.0, %v896
  %v898 = vpop.f32.mrb[0].mxu0
  %v899 = vadd.f32 0.0, %v898
  %900 = vdwg.mxu0
  %v901 = vadd.f32 %v807, %v850
  %v902 = vadd.f32 %v808, %v852
  %v903 = vadd.f32 %v809, %v893
  %v904 = vadd.f32 %v810, %v895
  %v905 = vadd.f32 %v811, %v854
  %v906 = vadd.f32 %v812, %v856
  %v907 = vadd.f32 %v813, %v897
  %v908 = vadd.f32 %v814, %v899
  %v909 = vxor.u32 %v901, 2147483648
  %v910 = vxor.u32 %v905, 2147483648
  %v911 = vmul.f32 %v909, 1.442695
  %v912 = vpow.pop %v911
  %v913 = vmul.f32 %v910, 1.442695
  %v914 = vpow.pop %v913
  %v915 = vadd.f32 %v912, 1.0
  %v916 = vadd.f32 %v914, 1.0
  %v917 = vrcp.pop %v915
  %v918 = vmul.f32 1.0, %v917
  %v919 = vrcp.pop %v916
  %v920 = vmul.f32 1.0, %v919
  %v921 = vxor.u32 %v902, 2147483648
  %v922 = vxor.u32 %v906, 2147483648
  %v923 = vmul.f32 %v921, 1.442695
  %v924 = vpow.pop %v923
  %v925 = vmul.f32 %v922, 1.442695
  %v926 = vpow.pop %v925
  %v927 = vadd.f32 %v924, 1.0
  %v928 = vadd.f32 %v926, 1.0
  %v929 = vrcp.pop %v927
  %v930 = vmul.f32 1.0, %v929
  %v931 = vrcp.pop %v928
  %v932 = vmul.f32 1.0, %v931
  %v933 = vtanh.pop %v903
  %v934 = vtanh.pop %v907
  %v935 = vxor.u32 %v904, 2147483648
  %v936 = vxor.u32 %v908, 2147483648
  %v937 = vmul.f32 %v935, 1.442695
  %v938 = vpow.pop %v937
  %v939 = vmul.f32 %v936, 1.442695
  %v940 = vpow.pop %v939
  %v941 = vadd.f32 %v938, 1.0
  %v942 = vadd.f32 %v940, 1.0
  %v943 = vrcp.pop %v941
  %v944 = vmul.f32 1.0, %v943
  %v945 = vrcp.pop %v942
  %v946 = vmul.f32 1.0, %v945
  %v947 = vmul.f32 %v930, %v796
  %v948 = vmul.f32 %v932, %v797
  %v949 = vmul.f32 %v918, %v933
  %v950 = vmul.f32 %v920, %v934
  %v951 = vadd.f32 %v947, %v949
  %v952 = vadd.f32 %v948, %v950
  %v953 = vtanh.pop %v951
  %v954 = vtanh.pop %v952
  %v955 = vmul.f32 %v944, %v953
  %v956 = vmul.f32 %v946, %v954
  %v957 = vpack.c.bf16 %v956, %v955
  %s958 = scalar_lea.vmem [#allocation3], 8
  %959 = vst [vmem:[%s958] sm:$0xff] %v957
  %s960 = smul.u32 4, 4
  %s961 = smul.addr %s960, 8
  %s962 = scalar_lea.vmem [#allocation2], %s961
  %v963 = vld [vmem:[%s962] sm:$0xff]
  %v964 = vld [vmem:[%s962 + $0x8] sm:$0xff]
  %v965 = vld [vmem:[%s962 + $0x10] sm:$0xff]
  %v966 = vld [vmem:[%s962 + $0x18] sm:$0xff]
  %v967 = vld [vmem:[%s962 + $0x20] sm:$0xff]
  %v968 = vld [vmem:[%s962 + $0x28] sm:$0xff]
  %v969 = vld [vmem:[%s962 + $0x30] sm:$0xff]
  %v970 = vld [vmem:[%s962 + $0x38] sm:$0xff]
  %971 = vmatprep.subr.bf16.mxu0 %v597
  %972 = vmatpush1.bf16.msra.mxu0 %v596
  %973 = vmatprep.subr.bf16.mxu0 %v601
  %974 = vmatpush1.bf16.msra.mxu0 %v600
  %975 = vmatprep.subr.bf16.mxu0 %v605
  %976 = vmatpush1.bf16.msra.mxu0 %v604
  %977 = vmatprep.subr.bf16.mxu0 %v609
  %978 = vmatpush1.bf16.msra.mxu0 %v608
  %979 = vmatprep.subr.bf16.mxu0 %v613
  %980 = vmatpush1.bf16.msra.mxu0 %v612
  %981 = vmatprep.subr.bf16.mxu0 %v617
  %982 = vmatpush1.bf16.msra.mxu0 %v616
  %983 = vmatprep.subr.bf16.mxu0 %v621
  %984 = vmatpush1.bf16.msra.mxu0 %v620
  %985 = vmatprep.subr.bf16.mxu0 %v625
  %986 = vmatpush1.bf16.msra.mxu0 %v624
  %987 = vmatprep.subr.bf16.mxu0 0
  %988 = vmatpush1.bf16.msra.mxu0 0
  %989 = vmatprep.subr.bf16.mxu0 0
  %990 = vmatpush1.bf16.msra.mxu0 0
  %991 = vmatprep.subr.bf16.mxu0 0
  %992 = vmatpush1.bf16.msra.mxu0 0
  %993 = vmatprep.subr.bf16.mxu0 0
  %994 = vmatpush1.bf16.msra.mxu0 0
  %995 = vmatprep.subr.bf16.mxu0 0
  %996 = vmatpush1.bf16.msra.mxu0 0
  %997 = vmatprep.subr.bf16.mxu0 0
  %998 = vmatpush1.bf16.msra.mxu0 0
  %999 = vmatprep.subr.bf16.mxu0 0
  %1000 = vmatpush1.bf16.msra.mxu0 0
  %1001 = vmatprep.subr.bf16.mxu0 0
  %1002 = vmatpush1.bf16.msra.mxu0 0
  %1003 = vmatprep.mubr.bf16.mxu0 0
  %1004 = vmatmul.mubr.bf16.gmra.mrb[0].mxu0 %v957
  %v1005 = vpop.f32.mrb[0].mxu0
  %v1006 = vadd.f32 0.0, %v1005
  %v1007 = vpop.f32.mrb[0].mxu0
  %v1008 = vadd.f32 0.0, %v1007
  %v1009 = vpop.f32.mrb[0].mxu0
  %v1010 = vadd.f32 0.0, %v1009
  %v1011 = vpop.f32.mrb[0].mxu0
  %v1012 = vadd.f32 0.0, %v1011
  %1013 = vdwg.mxu0
  %1014 = vmatprep.subr.bf16.mxu0 %v599
  %1015 = vmatpush1.bf16.msra.mxu0 %v598
  %1016 = vmatprep.subr.bf16.mxu0 %v603
  %1017 = vmatpush1.bf16.msra.mxu0 %v602
  %1018 = vmatprep.subr.bf16.mxu0 %v607
  %1019 = vmatpush1.bf16.msra.mxu0 %v606
  %1020 = vmatprep.subr.bf16.mxu0 %v611
  %1021 = vmatpush1.bf16.msra.mxu0 %v610
  %1022 = vmatprep.subr.bf16.mxu0 %v615
  %1023 = vmatpush1.bf16.msra.mxu0 %v614
  %1024 = vmatprep.subr.bf16.mxu0 %v619
  %1025 = vmatpush1.bf16.msra.mxu0 %v618
  %1026 = vmatprep.subr.bf16.mxu0 %v623
  %1027 = vmatpush1.bf16.msra.mxu0 %v622
  %1028 = vmatprep.subr.bf16.mxu0 %v627
  %1029 = vmatpush1.bf16.msra.mxu0 %v626
  %1030 = vmatprep.subr.bf16.mxu0 0
  %1031 = vmatpush1.bf16.msra.mxu0 0
  %1032 = vmatprep.subr.bf16.mxu0 0
  %1033 = vmatpush1.bf16.msra.mxu0 0
  %1034 = vmatprep.subr.bf16.mxu0 0
  %1035 = vmatpush1.bf16.msra.mxu0 0
  %1036 = vmatprep.subr.bf16.mxu0 0
  %1037 = vmatpush1.bf16.msra.mxu0 0
  %1038 = vmatprep.subr.bf16.mxu0 0
  %1039 = vmatpush1.bf16.msra.mxu0 0
  %1040 = vmatprep.subr.bf16.mxu0 0
  %1041 = vmatpush1.bf16.msra.mxu0 0
  %1042 = vmatprep.subr.bf16.mxu0 0
  %1043 = vmatpush1.bf16.msra.mxu0 0
  %1044 = vmatprep.subr.bf16.mxu0 0
  %1045 = vmatpush1.bf16.msra.mxu0 0
  %1046 = vmatprep.mubr.bf16.mxu0 0
  %1047 = vmatmul.mubr.bf16.gmra.mrb[0].mxu0 %v957
  %v1048 = vpop.f32.mrb[0].mxu0
  %v1049 = vadd.f32 0.0, %v1048
  %v1050 = vpop.f32.mrb[0].mxu0
  %v1051 = vadd.f32 0.0, %v1050
  %v1052 = vpop.f32.mrb[0].mxu0
  %v1053 = vadd.f32 0.0, %v1052
  %v1054 = vpop.f32.mrb[0].mxu0
  %v1055 = vadd.f32 0.0, %v1054
  %1056 = vdwg.mxu0
  %v1057 = vadd.f32 %v963, %v1006
  %v1058 = vadd.f32 %v964, %v1008
  %v1059 = vadd.f32 %v965, %v1049
  %v1060 = vadd.f32 %v966, %v1051
  %v1061 = vadd.f32 %v967, %v1010
  %v1062 = vadd.f32 %v968, %v1012
  %v1063 = vadd.f32 %v969, %v1053
  %v1064 = vadd.f32 %v970, %v1055
  %v1065 = vxor.u32 %v1057, 2147483648
  %v1066 = vxor.u32 %v1061, 2147483648
  %v1067 = vmul.f32 %v1065, 1.442695
  %v1068 = vpow.pop %v1067
  %v1069 = vmul.f32 %v1066, 1.442695
  %v1070 = vpow.pop %v1069
  %v1071 = vadd.f32 %v1068, 1.0
  %v1072 = vadd.f32 %v1070, 1.0
  %v1073 = vrcp.pop %v1071
  %v1074 = vmul.f32 1.0, %v1073
  %v1075 = vrcp.pop %v1072
  %v1076 = vmul.f32 1.0, %v1075
  %v1077 = vxor.u32 %v1058, 2147483648
  %v1078 = vxor.u32 %v1062, 2147483648
  %v1079 = vmul.f32 %v1077, 1.442695
  %v1080 = vpow.pop %v1079
  %v1081 = vmul.f32 %v1078, 1.442695
  %v1082 = vpow.pop %v1081
  %v1083 = vadd.f32 %v1080, 1.0
  %v1084 = vadd.f32 %v1082, 1.0
  %v1085 = vrcp.pop %v1083
  %v1086 = vmul.f32 1.0, %v1085
  %v1087 = vrcp.pop %v1084
  %v1088 = vmul.f32 1.0, %v1087
  %v1089 = vtanh.pop %v1059
  %v1090 = vtanh.pop %v1063
  %v1091 = vxor.u32 %v1060, 2147483648
  %v1092 = vxor.u32 %v1064, 2147483648
  %v1093 = vmul.f32 %v1091, 1.442695
  %v1094 = vpow.pop %v1093
  %v1095 = vmul.f32 %v1092, 1.442695
  %v1096 = vpow.pop %v1095
  %v1097 = vadd.f32 %v1094, 1.0
  %v1098 = vadd.f32 %v1096, 1.0
  %v1099 = vrcp.pop %v1097
  %v1100 = vmul.f32 1.0, %v1099
  %v1101 = vrcp.pop %v1098
  %v1102 = vmul.f32 1.0, %v1101
  %v1103 = vmul.f32 %v1086, %v951
  %v1104 = vmul.f32 %v1088, %v952
  %v1105 = vmul.f32 %v1074, %v1089
  %v1106 = vmul.f32 %v1076, %v1090
  %v1107 = vadd.f32 %v1103, %v1105
  %v1108 = vadd.f32 %v1104, %v1106
  %v1109 = vtanh.pop %v1107
  %v1110 = vtanh.pop %v1108
  %v1111 = vmul.f32 %v1100, %v1109
  %v1112 = vmul.f32 %v1102, %v1110
  %v1113 = vpack.c.bf16 %v1112, %v1111
  %s1114 = scalar_lea.vmem [#allocation3], 16
  %1115 = vst [vmem:[%s1114] sm:$0xff] %v1113
  %s1116 = smul.u32 6, 4
  %s1117 = smul.addr %s1116, 8
  %s1118 = scalar_lea.vmem [#allocation2], %s1117
  %v1119 = vld [vmem:[%s1118] sm:$0xff]
  %v1120 = vld [vmem:[%s1118 + $0x8] sm:$0xff]
  %v1121 = vld [vmem:[%s1118 + $0x10] sm:$0xff]
  %v1122 = vld [vmem:[%s1118 + $0x18] sm:$0xff]
  %v1123 = vld [vmem:[%s1118 + $0x20] sm:$0xff]
  %v1124 = vld [vmem:[%s1118 + $0x28] sm:$0xff]
  %v1125 = vld [vmem:[%s1118 + $0x30] sm:$0xff]
  %v1126 = vld [vmem:[%s1118 + $0x38] sm:$0xff]
  %1127 = vmatprep.subr.bf16.mxu0 %v597
  %1128 = vmatpush1.bf16.msra.mxu0 %v596
  %1129 = vmatprep.subr.bf16.mxu0 %v601
  %1130 = vmatpush1.bf16.msra.mxu0 %v600
  %1131 = vmatprep.subr.bf16.mxu0 %v605
  %1132 = vmatpush1.bf16.msra.mxu0 %v604
  %1133 = vmatprep.subr.bf16.mxu0 %v609
  %1134 = vmatpush1.bf16.msra.mxu0 %v608
  %1135 = vmatprep.subr.bf16.mxu0 %v613
  %1136 = vmatpush1.bf16.msra.mxu0 %v612
  %1137 = vmatprep.subr.bf16.mxu0 %v617
  %1138 = vmatpush1.bf16.msra.mxu0 %v616
  %1139 = vmatprep.subr.bf16.mxu0 %v621
  %1140 = vmatpush1.bf16.msra.mxu0 %v620
  %1141 = vmatprep.subr.bf16.mxu0 %v625
  %1142 = vmatpush1.bf16.msra.mxu0 %v624
  %1143 = vmatprep.subr.bf16.mxu0 0
  %1144 = vmatpush1.bf16.msra.mxu0 0
  %1145 = vmatprep.subr.bf16.mxu0 0
  %1146 = vmatpush1.bf16.msra.mxu0 0
  %1147 = vmatprep.subr.bf16.mxu0 0
  %1148 = vmatpush1.bf16.msra.mxu0 0
  %1149 = vmatprep.subr.bf16.mxu0 0
  %1150 = vmatpush1.bf16.msra.mxu0 0
  %1151 = vmatprep.subr.bf16.mxu0 0
  %1152 = vmatpush1.bf16.msra.mxu0 0
  %1153 = vmatprep.subr.bf16.mxu0 0
  %1154 = vmatpush1.bf16.msra.mxu0 0
  %1155 = vmatprep.subr.bf16.mxu0 0
  %1156 = vmatpush1.bf16.msra.mxu0 0
  %1157 = vmatprep.subr.bf16.mxu0 0
  %1158 = vmatpush1.bf16.msra.mxu0 0
  %1159 = vmatprep.mubr.bf16.mxu0 0
  %1160 = vmatmul.mubr.bf16.gmra.mrb[0].mxu0 %v1113
  %v1161 = vpop.f32.mrb[0].mxu0
  %v1162 = vadd.f32 0.0, %v1161
  %v1163 = vpop.f32.mrb[0].mxu0
  %v1164 = vadd.f32 0.0, %v1163
  %v1165 = vpop.f32.mrb[0].mxu0
  %v1166 = vadd.f32 0.0, %v1165
  %v1167 = vpop.f32.mrb[0].mxu0
  %v1168 = vadd.f32 0.0, %v1167
  %1169 = vdwg.mxu0
  %1170 = vmatprep.subr.bf16.mxu0 %v599
  %1171 = vmatpush1.bf16.msra.mxu0 %v598
  %1172 = vmatprep.subr.bf16.mxu0 %v603
  %1173 = vmatpush1.bf16.msra.mxu0 %v602
  %1174 = vmatprep.subr.bf16.mxu0 %v607
  %1175 = vmatpush1.bf16.msra.mxu0 %v606
  %1176 = vmatprep.subr.bf16.mxu0 %v611
  %1177 = vmatpush1.bf16.msra.mxu0 %v610
  %1178 = vmatprep.subr.bf16.mxu0 %v615
  %1179 = vmatpush1.bf16.msra.mxu0 %v614
  %1180 = vmatprep.subr.bf16.mxu0 %v619
  %1181 = vmatpush1.bf16.msra.mxu0 %v618
  %1182 = vmatprep.subr.bf16.mxu0 %v623
  %1183 = vmatpush1.bf16.msra.mxu0 %v622
  %1184 = vmatprep.subr.bf16.mxu0 %v627
  %1185 = vmatpush1.bf16.msra.mxu0 %v626
  %1186 = vmatprep.subr.bf16.mxu0 0
  %1187 = vmatpush1.bf16.msra.mxu0 0
  %1188 = vmatprep.subr.bf16.mxu0 0
  %1189 = vmatpush1.bf16.msra.mxu0 0
  %1190 = vmatprep.subr.bf16.mxu0 0
  %1191 = vmatpush1.bf16.msra.mxu0 0
  %1192 = vmatprep.subr.bf16.mxu0 0
  %1193 = vmatpush1.bf16.msra.mxu0 0
  %1194 = vmatprep.subr.bf16.mxu0 0
  %1195 = vmatpush1.bf16.msra.mxu0 0
  %1196 = vmatprep.subr.bf16.mxu0 0
  %1197 = vmatpush1.bf16.msra.mxu0 0
  %1198 = vmatprep.subr.bf16.mxu0 0
  %1199 = vmatpush1.bf16.msra.mxu0 0
  %1200 = vmatprep.subr.bf16.mxu0 0
  %1201 = vmatpush1.bf16.msra.mxu0 0
  %1202 = vmatprep.mubr.bf16.mxu0 0
  %1203 = vmatmul.mubr.bf16.gmra.mrb[0].mxu0 %v1113
  %v1204 = vpop.f32.mrb[0].mxu0
  %v1205 = vadd.f32 0.0, %v1204
  %v1206 = vpop.f32.mrb[0].mxu0
  %v1207 = vadd.f32 0.0, %v1206
  %v1208 = vpop.f32.mrb[0].mxu0
  %v1209 = vadd.f32 0.0, %v1208
  %v1210 = vpop.f32.mrb[0].mxu0
  %v1211 = vadd.f32 0.0, %v1210
  %1212 = vdwg.mxu0
  %v1213 = vadd.f32 %v1119, %v1162
  %v1214 = vadd.f32 %v1120, %v1164
  %v1215 = vadd.f32 %v1121, %v1205
  %v1216 = vadd.f32 %v1122, %v1207
  %v1217 = vadd.f32 %v1123, %v1166
  %v1218 = vadd.f32 %v1124, %v1168
  %v1219 = vadd.f32 %v1125, %v1209
  %v1220 = vadd.f32 %v1126, %v1211
  %v1221 = vxor.u32 %v1213, 2147483648
  %v1222 = vxor.u32 %v1217, 2147483648
  %v1223 = vmul.f32 %v1221, 1.442695
  %v1224 = vpow.pop %v1223
  %v1225 = vmul.f32 %v1222, 1.442695
  %v1226 = vpow.pop %v1225
  %v1227 = vadd.f32 %v1224, 1.0
  %v1228 = vadd.f32 %v1226, 1.0
  %v1229 = vrcp.pop %v1227
  %v1230 = vmul.f32 1.0, %v1229
  %v1231 = vrcp.pop %v1228
  %v1232 = vmul.f32 1.0, %v1231
  %v1233 = vxor.u32 %v1214, 2147483648
  %v1234 = vxor.u32 %v1218, 2147483648
  %v1235 = vmul.f32 %v1233, 1.442695
  %v1236 = vpow.pop %v1235
  %v1237 = vmul.f32 %v1234, 1.442695
  %v1238 = vpow.pop %v1237
  %v1239 = vadd.f32 %v1236, 1.0
  %v1240 = vadd.f32 %v1238, 1.0
  %v1241 = vrcp.pop %v1239
  %v1242 = vmul.f32 1.0, %v1241
  %v1243 = vrcp.pop %v1240
  %v1244 = vmul.f32 1.0, %v1243
  %v1245 = vtanh.pop %v1215
  %v1246 = vtanh.pop %v1219
  %v1247 = vxor.u32 %v1216, 2147483648
  %v1248 = vxor.u32 %v1220, 2147483648
  %v1249 = vmul.f32 %v1247, 1.442695
  %v1250 = vpow.pop %v1249
  %v1251 = vmul.f32 %v1248, 1.442695
  %v1252 = vpow.pop %v1251
  %v1253 = vadd.f32 %v1250, 1.0
  %v1254 = vadd.f32 %v1252, 1.0
  %v1255 = vrcp.pop %v1253
  %v1256 = vmul.f32 1.0, %v1255
  %v1257 = vrcp.pop %v1254
  %v1258 = vmul.f32 1.0, %v1257
  %v1259 = vmul.f32 %v1242, %v1107
  %v1260 = vmul.f32 %v1244, %v1108
  %v1261 = vmul.f32 %v1230, %v1245
  %v1262 = vmul.f32 %v1232, %v1246
  %v1263 = vadd.f32 %v1259, %v1261
  %v1264 = vadd.f32 %v1260, %v1262
  %v1265 = vtanh.pop %v1263
  %v1266 = vtanh.pop %v1264
  %v1267 = vmul.f32 %v1256, %v1265
  %v1268 = vmul.f32 %v1258, %v1266
  %v1269 = vpack.c.bf16 %v1268, %v1267
  %s1270 = scalar_lea.vmem [#allocation3], 24
  %1271 = vst [vmem:[%s1270] sm:$0xff] %v1269
  %s1272 = smul.u32 8, 4
  %s1273 = smul.addr %s1272, 8
  %s1274 = scalar_lea.vmem [#allocation2], %s1273
  %v1275 = vld [vmem:[%s1274] sm:$0xff]
  %v1276 = vld [vmem:[%s1274 + $0x8] sm:$0xff]
  %v1277 = vld [vmem:[%s1274 + $0x10] sm:$0xff]
  %v1278 = vld [vmem:[%s1274 + $0x18] sm:$0xff]
  %v1279 = vld [vmem:[%s1274 + $0x20] sm:$0xff]
  %v1280 = vld [vmem:[%s1274 + $0x28] sm:$0xff]
  %v1281 = vld [vmem:[%s1274 + $0x30] sm:$0xff]
  %v1282 = vld [vmem:[%s1274 + $0x38] sm:$0xff]
  %1283 = vmatprep.subr.bf16.mxu0 %v597
  %1284 = vmatpush1.bf16.msra.mxu0 %v596
  %1285 = vmatprep.subr.bf16.mxu0 %v601
  %1286 = vmatpush1.bf16.msra.mxu0 %v600
  %1287 = vmatprep.subr.bf16.mxu0 %v605
  %1288 = vmatpush1.bf16.msra.mxu0 %v604
  %1289 = vmatprep.subr.bf16.mxu0 %v609
  %1290 = vmatpush1.bf16.msra.mxu0 %v608
  %1291 = vmatprep.subr.bf16.mxu0 %v613
  %1292 = vmatpush1.bf16.msra.mxu0 %v612
  %1293 = vmatprep.subr.bf16.mxu0 %v617
  %1294 = vmatpush1.bf16.msra.mxu0 %v616
  %1295 = vmatprep.subr.bf16.mxu0 %v621
  %1296 = vmatpush1.bf16.msra.mxu0 %v620
  %1297 = vmatprep.subr.bf16.mxu0 %v625
  %1298 = vmatpush1.bf16.msra.mxu0 %v624
  %1299 = vmatprep.subr.bf16.mxu0 0
  %1300 = vmatpush1.bf16.msra.mxu0 0
  %1301 = vmatprep.subr.bf16.mxu0 0
  %1302 = vmatpush1.bf16.msra.mxu0 0
  %1303 = vmatprep.subr.bf16.mxu0 0
  %1304 = vmatpush1.bf16.msra.mxu0 0
  %1305 = vmatprep.subr.bf16.mxu0 0
  %1306 = vmatpush1.bf16.msra.mxu0 0
  %1307 = vmatprep.subr.bf16.mxu0 0
  %1308 = vmatpush1.bf16.msra.mxu0 0
  %1309 = vmatprep.subr.bf16.mxu0 0
  %1310 = vmatpush1.bf16.msra.mxu0 0
  %1311 = vmatprep.subr.bf16.mxu0 0
  %1312 = vmatpush1.bf16.msra.mxu0 0
  %1313 = vmatprep.subr.bf16.mxu0 0
  %1314 = vmatpush1.bf16.msra.mxu0 0
  %1315 = vmatprep.mubr.bf16.mxu0 0
  %1316 = vmatmul.mubr.bf16.gmra.mrb[0].mxu0 %v1269
  %v1317 = vpop.f32.mrb[0].mxu0
  %v1318 = vadd.f32 0.0, %v1317
  %v1319 = vpop.f32.mrb[0].mxu0
  %v1320 = vadd.f32 0.0, %v1319
  %v1321 = vpop.f32.mrb[0].mxu0
  %v1322 = vadd.f32 0.0, %v1321
  %v1323 = vpop.f32.mrb[0].mxu0
  %v1324 = vadd.f32 0.0, %v1323
  %1325 = vdwg.mxu0
  %1326 = vmatprep.subr.bf16.mxu0 %v599
  %1327 = vmatpush1.bf16.msra.mxu0 %v598
  %1328 = vmatprep.subr.bf16.mxu0 %v603
  %1329 = vmatpush1.bf16.msra.mxu0 %v602
  %1330 = vmatprep.subr.bf16.mxu0 %v607
  %1331 = vmatpush1.bf16.msra.mxu0 %v606
  %1332 = vmatprep.subr.bf16.mxu0 %v611
  %1333 = vmatpush1.bf16.msra.mxu0 %v610
  %1334 = vmatprep.subr.bf16.mxu0 %v615
  %1335 = vmatpush1.bf16.msra.mxu0 %v614
  %1336 = vmatprep.subr.bf16.mxu0 %v619
  %1337 = vmatpush1.bf16.msra.mxu0 %v618
  %1338 = vmatprep.subr.bf16.mxu0 %v623
  %1339 = vmatpush1.bf16.msra.mxu0 %v622
  %1340 = vmatprep.subr.bf16.mxu0 %v627
  %1341 = vmatpush1.bf16.msra.mxu0 %v626
  %1342 = vmatprep.subr.bf16.mxu0 0
  %1343 = vmatpush1.bf16.msra.mxu0 0
  %1344 = vmatprep.subr.bf16.mxu0 0
  %1345 = vmatpush1.bf16.msra.mxu0 0
  %1346 = vmatprep.subr.bf16.mxu0 0
  %1347 = vmatpush1.bf16.msra.mxu0 0
  %1348 = vmatprep.subr.bf16.mxu0 0
  %1349 = vmatpush1.bf16.msra.mxu0 0
  %1350 = vmatprep.subr.bf16.mxu0 0
  %1351 = vmatpush1.bf16.msra.mxu0 0
  %1352 = vmatprep.subr.bf16.mxu0 0
  %1353 = vmatpush1.bf16.msra.mxu0 0
  %1354 = vmatprep.subr.bf16.mxu0 0
  %1355 = vmatpush1.bf16.msra.mxu0 0
  %1356 = vmatprep.subr.bf16.mxu0 0
  %1357 = vmatpush1.bf16.msra.mxu0 0
  %1358 = vmatprep.mubr.bf16.mxu0 0
  %1359 = vmatmul.mubr.bf16.gmra.mrb[0].mxu0 %v1269
  %v1360 = vpop.f32.mrb[0].mxu0
  %v1361 = vadd.f32 0.0, %v1360
  %v1362 = vpop.f32.mrb[0].mxu0
  %v1363 = vadd.f32 0.0, %v1362
  %v1364 = vpop.f32.mrb[0].mxu0
  %v1365 = vadd.f32 0.0, %v1364
  %v1366 = vpop.f32.mrb[0].mxu0
  %v1367 = vadd.f32 0.0, %v1366
  %1368 = vdwg.mxu0
  %v1369 = vadd.f32 %v1275, %v1318
  %v1370 = vadd.f32 %v1276, %v1320
  %v1371 = vadd.f32 %v1277, %v1361
  %v1372 = vadd.f32 %v1278, %v1363
  %v1373 = vadd.f32 %v1279, %v1322
  %v1374 = vadd.f32 %v1280, %v1324
  %v1375 = vadd.f32 %v1281, %v1365
  %v1376 = vadd.f32 %v1282, %v1367
  %v1377 = vxor.u32 %v1369, 2147483648
  %v1378 = vxor.u32 %v1373, 2147483648
  %v1379 = vmul.f32 %v1377, 1.442695
  %v1380 = vpow.pop %v1379
  %v1381 = vmul.f32 %v1378, 1.442695
  %v1382 = vpow.pop %v1381
  %v1383 = vadd.f32 %v1380, 1.0
  %v1384 = vadd.f32 %v1382, 1.0
  %v1385 = vrcp.pop %v1383
  %v1386 = vmul.f32 1.0, %v1385
  %v1387 = vrcp.pop %v1384
  %v1388 = vmul.f32 1.0, %v1387
  %v1389 = vxor.u32 %v1370, 2147483648
  %v1390 = vxor.u32 %v1374, 2147483648
  %v1391 = vmul.f32 %v1389, 1.442695
  %v1392 = vpow.pop %v1391
  %v1393 = vmul.f32 %v1390, 1.442695
  %v1394 = vpow.pop %v1393
  %v1395 = vadd.f32 %v1392, 1.0
  %v1396 = vadd.f32 %v1394, 1.0
  %v1397 = vrcp.pop %v1395
  %v1398 = vmul.f32 1.0, %v1397
  %v1399 = vrcp.pop %v1396
  %v1400 = vmul.f32 1.0, %v1399
  %v1401 = vtanh.pop %v1371
  %v1402 = vtanh.pop %v1375
  %v1403 = vxor.u32 %v1372, 2147483648
  %v1404 = vxor.u32 %v1376, 2147483648
  %v1405 = vmul.f32 %v1403, 1.442695
  %v1406 = vpow.pop %v1405
  %v1407 = vmul.f32 %v1404, 1.442695
  %v1408 = vpow.pop %v1407
  %v1409 = vadd.f32 %v1406, 1.0
  %v1410 = vadd.f32 %v1408, 1.0
  %v1411 = vrcp.pop %v1409
  %v1412 = vmul.f32 1.0, %v1411
  %v1413 = vrcp.pop %v1410
  %v1414 = vmul.f32 1.0, %v1413
  %v1415 = vmul.f32 %v1398, %v1263
  %v1416 = vmul.f32 %v1400, %v1264
  %v1417 = vmul.f32 %v1386, %v1401
  %v1418 = vmul.f32 %v1388, %v1402
  %v1419 = vadd.f32 %v1415, %v1417
  %v1420 = vadd.f32 %v1416, %v1418
  %v1421 = vtanh.pop %v1419
  %v1422 = vtanh.pop %v1420
  %v1423 = vmul.f32 %v1412, %v1421
  %v1424 = vmul.f32 %v1414, %v1422
  %v1425 = vpack.c.bf16 %v1424, %v1423
  %s1426 = scalar_lea.vmem [#allocation3], 32
  %1427 = vst [vmem:[%s1426] sm:$0xff] %v1425
  %s1428 = smul.u32 10, 4
  %s1429 = smul.addr %s1428, 8
  %s1430 = scalar_lea.vmem [#allocation2], %s1429
  %v1431 = vld [vmem:[%s1430] sm:$0xff]
  %v1432 = vld [vmem:[%s1430 + $0x8] sm:$0xff]
  %v1433 = vld [vmem:[%s1430 + $0x10] sm:$0xff]
  %v1434 = vld [vmem:[%s1430 + $0x18] sm:$0xff]
  %v1435 = vld [vmem:[%s1430 + $0x20] sm:$0xff]
  %v1436 = vld [vmem:[%s1430 + $0x28] sm:$0xff]
  %v1437 = vld [vmem:[%s1430 + $0x30] sm:$0xff]
  %v1438 = vld [vmem:[%s1430 + $0x38] sm:$0xff]
  %1439 = vmatprep.subr.bf16.mxu0 %v597
  %1440 = vmatpush1.bf16.msra.mxu0 %v596
  %1441 = vmatprep.subr.bf16.mxu0 %v601
  %1442 = vmatpush1.bf16.msra.mxu0 %v600
  %1443 = vmatprep.subr.bf16.mxu0 %v605
  %1444 = vmatpush1.bf16.msra.mxu0 %v604
  %1445 = vmatprep.subr.bf16.mxu0 %v609
  %1446 = vmatpush1.bf16.msra.mxu0 %v608
  %1447 = vmatprep.subr.bf16.mxu0 %v613
  %1448 = vmatpush1.bf16.msra.mxu0 %v612
  %1449 = vmatprep.subr.bf16.mxu0 %v617
  %1450 = vmatpush1.bf16.msra.mxu0 %v616
  %1451 = vmatprep.subr.bf16.mxu0 %v621
  %1452 = vmatpush1.bf16.msra.mxu0 %v620
  %1453 = vmatprep.subr.bf16.mxu0 %v625
  %1454 = vmatpush1.bf16.msra.mxu0 %v624
  %1455 = vmatprep.subr.bf16.mxu0 0
  %1456 = vmatpush1.bf16.msra.mxu0 0
  %1457 = vmatprep.subr.bf16.mxu0 0
  %1458 = vmatpush1.bf16.msra.mxu0 0
  %1459 = vmatprep.subr.bf16.mxu0 0
  %1460 = vmatpush1.bf16.msra.mxu0 0
  %1461 = vmatprep.subr.bf16.mxu0 0
  %1462 = vmatpush1.bf16.msra.mxu0 0
  %1463 = vmatprep.subr.bf16.mxu0 0
  %1464 = vmatpush1.bf16.msra.mxu0 0
  %1465 = vmatprep.subr.bf16.mxu0 0
  %1466 = vmatpush1.bf16.msra.mxu0 0
  %1467 = vmatprep.subr.bf16.mxu0 0
  %1468 = vmatpush1.bf16.msra.mxu0 0
  %1469 = vmatprep.subr.bf16.mxu0 0
  %1470 = vmatpush1.bf16.msra.mxu0 0
  %1471 = vmatprep.mubr.bf16.mxu0 0
  %1472 = vmatmul.mubr.bf16.gmra.mrb[0].mxu0 %v1425
  %v1473 = vpop.f32.mrb[0].mxu0
  %v1474 = vadd.f32 0.0, %v1473
  %v1475 = vpop.f32.mrb[0].mxu0
  %v1476 = vadd.f32 0.0, %v1475
  %v1477 = vpop.f32.mrb[0].mxu0
  %v1478 = vadd.f32 0.0, %v1477
  %v1479 = vpop.f32.mrb[0].mxu0
  %v1480 = vadd.f32 0.0, %v1479
  %1481 = vdwg.mxu0
  %1482 = vmatprep.subr.bf16.mxu0 %v599
  %1483 = vmatpush1.bf16.msra.mxu0 %v598
  %1484 = vmatprep.subr.bf16.mxu0 %v603
  %1485 = vmatpush1.bf16.msra.mxu0 %v602
  %1486 = vmatprep.subr.bf16.mxu0 %v607
  %1487 = vmatpush1.bf16.msra.mxu0 %v606
  %1488 = vmatprep.subr.bf16.mxu0 %v611
  %1489 = vmatpush1.bf16.msra.mxu0 %v610
  %1490 = vmatprep.subr.bf16.mxu0 %v615
  %1491 = vmatpush1.bf16.msra.mxu0 %v614
  %1492 = vmatprep.subr.bf16.mxu0 %v619
  %1493 = vmatpush1.bf16.msra.mxu0 %v618
  %1494 = vmatprep.subr.bf16.mxu0 %v623
  %1495 = vmatpush1.bf16.msra.mxu0 %v622
  %1496 = vmatprep.subr.bf16.mxu0 %v627
  %1497 = vmatpush1.bf16.msra.mxu0 %v626
  %1498 = vmatprep.subr.bf16.mxu0 0
  %1499 = vmatpush1.bf16.msra.mxu0 0
  %1500 = vmatprep.subr.bf16.mxu0 0
  %1501 = vmatpush1.bf16.msra.mxu0 0
  %1502 = vmatprep.subr.bf16.mxu0 0
  %1503 = vmatpush1.bf16.msra.mxu0 0
  %1504 = vmatprep.subr.bf16.mxu0 0
  %1505 = vmatpush1.bf16.msra.mxu0 0
  %1506 = vmatprep.subr.bf16.mxu0 0
  %1507 = vmatpush1.bf16.msra.mxu0 0
  %1508 = vmatprep.subr.bf16.mxu0 0
  %1509 = vmatpush1.bf16.msra.mxu0 0
  %1510 = vmatprep.subr.bf16.mxu0 0
  %1511 = vmatpush1.bf16.msra.mxu0 0
  %1512 = vmatprep.subr.bf16.mxu0 0
  %1513 = vmatpush1.bf16.msra.mxu0 0
  %1514 = vmatprep.mubr.bf16.mxu0 0
  %1515 = vmatmul.mubr.bf16.gmra.mrb[0].mxu0 %v1425
  %v1516 = vpop.f32.mrb[0].mxu0
  %v1517 = vadd.f32 0.0, %v1516
  %v1518 = vpop.f32.mrb[0].mxu0
  %v1519 = vadd.f32 0.0, %v1518
  %v1520 = vpop.f32.mrb[0].mxu0
  %v1521 = vadd.f32 0.0, %v1520
  %v1522 = vpop.f32.mrb[0].mxu0
  %v1523 = vadd.f32 0.0, %v1522
  %1524 = vdwg.mxu0
  %v1525 = vadd.f32 %v1431, %v1474
  %v1526 = vadd.f32 %v1432, %v1476
  %v1527 = vadd.f32 %v1433, %v1517
  %v1528 = vadd.f32 %v1434, %v1519
  %v1529 = vadd.f32 %v1435, %v1478
  %v1530 = vadd.f32 %v1436, %v1480
  %v1531 = vadd.f32 %v1437, %v1521
  %v1532 = vadd.f32 %v1438, %v1523
  %v1533 = vxor.u32 %v1525, 2147483648
  %v1534 = vxor.u32 %v1529, 2147483648
  %v1535 = vmul.f32 %v1533, 1.442695
  %v1536 = vpow.pop %v1535
  %v1537 = vmul.f32 %v1534, 1.442695
  %v1538 = vpow.pop %v1537
  %v1539 = vadd.f32 %v1536, 1.0
  %v1540 = vadd.f32 %v1538, 1.0
  %v1541 = vrcp.pop %v1539
  %v1542 = vmul.f32 1.0, %v1541
  %v1543 = vrcp.pop %v1540
  %v1544 = vmul.f32 1.0, %v1543
  %v1545 = vxor.u32 %v1526, 2147483648
  %v1546 = vxor.u32 %v1530, 2147483648
  %v1547 = vmul.f32 %v1545, 1.442695
  %v1548 = vpow.pop %v1547
  %v1549 = vmul.f32 %v1546, 1.442695
  %v1550 = vpow.pop %v1549
  %v1551 = vadd.f32 %v1548, 1.0
  %v1552 = vadd.f32 %v1550, 1.0
  %v1553 = vrcp.pop %v1551
  %v1554 = vmul.f32 1.0, %v1553
  %v1555 = vrcp.pop %v1552
  %v1556 = vmul.f32 1.0, %v1555
  %v1557 = vtanh.pop %v1527
  %v1558 = vtanh.pop %v1531
  %v1559 = vxor.u32 %v1528, 2147483648
  %v1560 = vxor.u32 %v1532, 2147483648
  %v1561 = vmul.f32 %v1559, 1.442695
  %v1562 = vpow.pop %v1561
  %v1563 = vmul.f32 %v1560, 1.442695
  %v1564 = vpow.pop %v1563
  %v1565 = vadd.f32 %v1562, 1.0
  %v1566 = vadd.f32 %v1564, 1.0
  %v1567 = vrcp.pop %v1565
  %v1568 = vmul.f32 1.0, %v1567
  %v1569 = vrcp.pop %v1566
  %v1570 = vmul.f32 1.0, %v1569
  %v1571 = vmul.f32 %v1554, %v1419
  %v1572 = vmul.f32 %v1556, %v1420
  %v1573 = vmul.f32 %v1542, %v1557
  %v1574 = vmul.f32 %v1544, %v1558
  %v1575 = vadd.f32 %v1571, %v1573
  %v1576 = vadd.f32 %v1572, %v1574
  %v1577 = vtanh.pop %v1575
  %v1578 = vtanh.pop %v1576
  %v1579 = vmul.f32 %v1568, %v1577
  %v1580 = vmul.f32 %v1570, %v1578
  %v1581 = vpack.c.bf16 %v1580, %v1579
  %s1582 = scalar_lea.vmem [#allocation3], 40
  %1583 = vst [vmem:[%s1582] sm:$0xff] %v1581
  %s1584 = smul.u32 12, 4
  %s1585 = smul.addr %s1584, 8
  %s1586 = scalar_lea.vmem [#allocation2], %s1585
  %v1587 = vld [vmem:[%s1586] sm:$0xff]
  %v1588 = vld [vmem:[%s1586 + $0x8] sm:$0xff]
  %v1589 = vld [vmem:[%s1586 + $0x10] sm:$0xff]
  %v1590 = vld [vmem:[%s1586 + $0x18] sm:$0xff]
  %v1591 = vld [vmem:[%s1586 + $0x20] sm:$0xff]
  %v1592 = vld [vmem:[%s1586 + $0x28] sm:$0xff]
  %v1593 = vld [vmem:[%s1586 + $0x30] sm:$0xff]
  %v1594 = vld [vmem:[%s1586 + $0x38] sm:$0xff]
  %1595 = vmatprep.subr.bf16.mxu0 %v597
  %1596 = vmatpush1.bf16.msra.mxu0 %v596
  %1597 = vmatprep.subr.bf16.mxu0 %v601
  %1598 = vmatpush1.bf16.msra.mxu0 %v600
  %1599 = vmatprep.subr.bf16.mxu0 %v605
  %1600 = vmatpush1.bf16.msra.mxu0 %v604
  %1601 = vmatprep.subr.bf16.mxu0 %v609
  %1602 = vmatpush1.bf16.msra.mxu0 %v608
  %1603 = vmatprep.subr.bf16.mxu0 %v613
  %1604 = vmatpush1.bf16.msra.mxu0 %v612
  %1605 = vmatprep.subr.bf16.mxu0 %v617
  %1606 = vmatpush1.bf16.msra.mxu0 %v616
  %1607 = vmatprep.subr.bf16.mxu0 %v621
  %1608 = vmatpush1.bf16.msra.mxu0 %v620
  %1609 = vmatprep.subr.bf16.mxu0 %v625
  %1610 = vmatpush1.bf16.msra.mxu0 %v624
  %1611 = vmatprep.subr.bf16.mxu0 0
  %1612 = vmatpush1.bf16.msra.mxu0 0
  %1613 = vmatprep.subr.bf16.mxu0 0
  %1614 = vmatpush1.bf16.msra.mxu0 0
  %1615 = vmatprep.subr.bf16.mxu0 0
  %1616 = vmatpush1.bf16.msra.mxu0 0
  %1617 = vmatprep.subr.bf16.mxu0 0
  %1618 = vmatpush1.bf16.msra.mxu0 0
  %1619 = vmatprep.subr.bf16.mxu0 0
  %1620 = vmatpush1.bf16.msra.mxu0 0
  %1621 = vmatprep.subr.bf16.mxu0 0
  %1622 = vmatpush1.bf16.msra.mxu0 0
  %1623 = vmatprep.subr.bf16.mxu0 0
  %1624 = vmatpush1.bf16.msra.mxu0 0
  %1625 = vmatprep.subr.bf16.mxu0 0
  %1626 = vmatpush1.bf16.msra.mxu0 0
  %1627 = vmatprep.mubr.bf16.mxu0 0
  %1628 = vmatmul.mubr.bf16.gmra.mrb[0].mxu0 %v1581
  %v1629 = vpop.f32.mrb[0].mxu0
  %v1630 = vadd.f32 0.0, %v1629
  %v1631 = vpop.f32.mrb[0].mxu0
  %v1632 = vadd.f32 0.0, %v1631
  %v1633 = vpop.f32.mrb[0].mxu0
  %v1634 = vadd.f32 0.0, %v1633
  %v1635 = vpop.f32.mrb[0].mxu0
  %v1636 = vadd.f32 0.0, %v1635
  %1637 = vdwg.mxu0
  %1638 = vmatprep.subr.bf16.mxu0 %v599
  %1639 = vmatpush1.bf16.msra.mxu0 %v598
  %1640 = vmatprep.subr.bf16.mxu0 %v603
  %1641 = vmatpush1.bf16.msra.mxu0 %v602
  %1642 = vmatprep.subr.bf16.mxu0 %v607
  %1643 = vmatpush1.bf16.msra.mxu0 %v606
  %1644 = vmatprep.subr.bf16.mxu0 %v611
  %1645 = vmatpush1.bf16.msra.mxu0 %v610
  %1646 = vmatprep.subr.bf16.mxu0 %v615
  %1647 = vmatpush1.bf16.msra.mxu0 %v614
  %1648 = vmatprep.subr.bf16.mxu0 %v619
  %1649 = vmatpush1.bf16.msra.mxu0 %v618
  %1650 = vmatprep.subr.bf16.mxu0 %v623
  %1651 = vmatpush1.bf16.msra.mxu0 %v622
  %1652 = vmatprep.subr.bf16.mxu0 %v627
  %1653 = vmatpush1.bf16.msra.mxu0 %v626
  %1654 = vmatprep.subr.bf16.mxu0 0
  %1655 = vmatpush1.bf16.msra.mxu0 0
  %1656 = vmatprep.subr.bf16.mxu0 0
  %1657 = vmatpush1.bf16.msra.mxu0 0
  %1658 = vmatprep.subr.bf16.mxu0 0
  %1659 = vmatpush1.bf16.msra.mxu0 0
  %1660 = vmatprep.subr.bf16.mxu0 0
  %1661 = vmatpush1.bf16.msra.mxu0 0
  %1662 = vmatprep.subr.bf16.mxu0 0
  %1663 = vmatpush1.bf16.msra.mxu0 0
  %1664 = vmatprep.subr.bf16.mxu0 0
  %1665 = vmatpush1.bf16.msra.mxu0 0
  %1666 = vmatprep.subr.bf16.mxu0 0
  %1667 = vmatpush1.bf16.msra.mxu0 0
  %1668 = vmatprep.subr.bf16.mxu0 0
  %1669 = vmatpush1.bf16.msra.mxu0 0
  %1670 = vmatprep.mubr.bf16.mxu0 0
  %1671 = vmatmul.mubr.bf16.gmra.mrb[0].mxu0 %v1581
  %v1672 = vpop.f32.mrb[0].mxu0
  %v1673 = vadd.f32 0.0, %v1672
  %v1674 = vpop.f32.mrb[0].mxu0
  %v1675 = vadd.f32 0.0, %v1674
  %v1676 = vpop.f32.mrb[0].mxu0
  %v1677 = vadd.f32 0.0, %v1676
  %v1678 = vpop.f32.mrb[0].mxu0
  %v1679 = vadd.f32 0.0, %v1678
  %1680 = vdwg.mxu0
  %v1681 = vadd.f32 %v1587, %v1630
  %v1682 = vadd.f32 %v1588, %v1632
  %v1683 = vadd.f32 %v1589, %v1673
  %v1684 = vadd.f32 %v1590, %v1675
  %v1685 = vadd.f32 %v1591, %v1634
  %v1686 = vadd.f32 %v1592, %v1636
  %v1687 = vadd.f32 %v1593, %v1677
  %v1688 = vadd.f32 %v1594, %v1679
  %v1689 = vxor.u32 %v1681, 2147483648
  %v1690 = vxor.u32 %v1685, 2147483648
  %v1691 = vmul.f32 %v1689, 1.442695
  %v1692 = vpow.pop %v1691
  %v1693 = vmul.f32 %v1690, 1.442695
  %v1694 = vpow.pop %v1693
  %v1695 = vadd.f32 %v1692, 1.0
  %v1696 = vadd.f32 %v1694, 1.0
  %v1697 = vrcp.pop %v1695
  %v1698 = vmul.f32 1.0, %v1697
  %v1699 = vrcp.pop %v1696
  %v1700 = vmul.f32 1.0, %v1699
  %v1701 = vxor.u32 %v1682, 2147483648
  %v1702 = vxor.u32 %v1686, 2147483648
  %v1703 = vmul.f32 %v1701, 1.442695
  %v1704 = vpow.pop %v1703
  %v1705 = vmul.f32 %v1702, 1.442695
  %v1706 = vpow.pop %v1705
  %v1707 = vadd.f32 %v1704, 1.0
  %v1708 = vadd.f32 %v1706, 1.0
  %v1709 = vrcp.pop %v1707
  %v1710 = vmul.f32 1.0, %v1709
  %v1711 = vrcp.pop %v1708
  %v1712 = vmul.f32 1.0, %v1711
  %v1713 = vtanh.pop %v1683
  %v1714 = vtanh.pop %v1687
  %v1715 = vxor.u32 %v1684, 2147483648
  %v1716 = vxor.u32 %v1688, 2147483648
  %v1717 = vmul.f32 %v1715, 1.442695
  %v1718 = vpow.pop %v1717
  %v1719 = vmul.f32 %v1716, 1.442695
  %v1720 = vpow.pop %v1719
  %v1721 = vadd.f32 %v1718, 1.0
  %v1722 = vadd.f32 %v1720, 1.0
  %v1723 = vrcp.pop %v1721
  %v1724 = vmul.f32 1.0, %v1723
  %v1725 = vrcp.pop %v1722
  %v1726 = vmul.f32 1.0, %v1725
  %v1727 = vmul.f32 %v1710, %v1575
  %v1728 = vmul.f32 %v1712, %v1576
  %v1729 = vmul.f32 %v1698, %v1713
  %v1730 = vmul.f32 %v1700, %v1714
  %v1731 = vadd.f32 %v1727, %v1729
  %v1732 = vadd.f32 %v1728, %v1730
  %v1733 = vtanh.pop %v1731
  %v1734 = vtanh.pop %v1732
  %v1735 = vmul.f32 %v1724, %v1733
  %v1736 = vmul.f32 %v1726, %v1734
  %v1737 = vpack.c.bf16 %v1736, %v1735
  %s1738 = scalar_lea.vmem [#allocation3], 48
  %1739 = vst [vmem:[%s1738] sm:$0xff] %v1737
  %s1740 = smul.u32 14, 4
  %s1741 = smul.addr %s1740, 8
  %s1742 = scalar_lea.vmem [#allocation2], %s1741
  %v1743 = vld [vmem:[%s1742] sm:$0xff]
  %v1744 = vld [vmem:[%s1742 + $0x8] sm:$0xff]
  %v1745 = vld [vmem:[%s1742 + $0x10] sm:$0xff]
  %v1746 = vld [vmem:[%s1742 + $0x18] sm:$0xff]
  %v1747 = vld [vmem:[%s1742 + $0x20] sm:$0xff]
  %v1748 = vld [vmem:[%s1742 + $0x28] sm:$0xff]
  %v1749 = vld [vmem:[%s1742 + $0x30] sm:$0xff]
  %v1750 = vld [vmem:[%s1742 + $0x38] sm:$0xff]
  %1751 = vmatprep.subr.bf16.mxu0 %v597
  %1752 = vmatpush1.bf16.msra.mxu0 %v596
  %1753 = vmatprep.subr.bf16.mxu0 %v601
  %1754 = vmatpush1.bf16.msra.mxu0 %v600
  %1755 = vmatprep.subr.bf16.mxu0 %v605
  %1756 = vmatpush1.bf16.msra.mxu0 %v604
  %1757 = vmatprep.subr.bf16.mxu0 %v609
  %1758 = vmatpush1.bf16.msra.mxu0 %v608
  %1759 = vmatprep.subr.bf16.mxu0 %v613
  %1760 = vmatpush1.bf16.msra.mxu0 %v612
  %1761 = vmatprep.subr.bf16.mxu0 %v617
  %1762 = vmatpush1.bf16.msra.mxu0 %v616
  %1763 = vmatprep.subr.bf16.mxu0 %v621
  %1764 = vmatpush1.bf16.msra.mxu0 %v620
  %1765 = vmatprep.subr.bf16.mxu0 %v625
  %1766 = vmatpush1.bf16.msra.mxu0 %v624
  %1767 = vmatprep.subr.bf16.mxu0 0
  %1768 = vmatpush1.bf16.msra.mxu0 0
  %1769 = vmatprep.subr.bf16.mxu0 0
  %1770 = vmatpush1.bf16.msra.mxu0 0
  %1771 = vmatprep.subr.bf16.mxu0 0
  %1772 = vmatpush1.bf16.msra.mxu0 0
  %1773 = vmatprep.subr.bf16.mxu0 0
  %1774 = vmatpush1.bf16.msra.mxu0 0
  %1775 = vmatprep.subr.bf16.mxu0 0
  %1776 = vmatpush1.bf16.msra.mxu0 0
  %1777 = vmatprep.subr.bf16.mxu0 0
  %1778 = vmatpush1.bf16.msra.mxu0 0
  %1779 = vmatprep.subr.bf16.mxu0 0
  %1780 = vmatpush1.bf16.msra.mxu0 0
  %1781 = vmatprep.subr.bf16.mxu0 0
  %1782 = vmatpush1.bf16.msra.mxu0 0
  %1783 = vmatprep.mubr.bf16.mxu0 0
  %1784 = vmatmul.mubr.bf16.gmra.mrb[0].mxu0 %v1737
  %v1785 = vpop.f32.mrb[0].mxu0
  %v1786 = vadd.f32 0.0, %v1785
  %v1787 = vpop.f32.mrb[0].mxu0
  %v1788 = vadd.f32 0.0, %v1787
  %v1789 = vpop.f32.mrb[0].mxu0
  %v1790 = vadd.f32 0.0, %v1789
  %v1791 = vpop.f32.mrb[0].mxu0
  %v1792 = vadd.f32 0.0, %v1791
  %1793 = vdwg.mxu0
  %1794 = vmatprep.subr.bf16.mxu0 %v599
  %1795 = vmatpush1.bf16.msra.mxu0 %v598
  %1796 = vmatprep.subr.bf16.mxu0 %v603
  %1797 = vmatpush1.bf16.msra.mxu0 %v602
  %1798 = vmatprep.subr.bf16.mxu0 %v607
  %1799 = vmatpush1.bf16.msra.mxu0 %v606
  %1800 = vmatprep.subr.bf16.mxu0 %v611
  %1801 = vmatpush1.bf16.msra.mxu0 %v610
  %1802 = vmatprep.subr.bf16.mxu0 %v615
  %1803 = vmatpush1.bf16.msra.mxu0 %v614
  %1804 = vmatprep.subr.bf16.mxu0 %v619
  %1805 = vmatpush1.bf16.msra.mxu0 %v618
  %1806 = vmatprep.subr.bf16.mxu0 %v623
  %1807 = vmatpush1.bf16.msra.mxu0 %v622
  %1808 = vmatprep.subr.bf16.mxu0 %v627
  %1809 = vmatpush1.bf16.msra.mxu0 %v626
  %1810 = vmatprep.subr.bf16.mxu0 0
  %1811 = vmatpush1.bf16.msra.mxu0 0
  %1812 = vmatprep.subr.bf16.mxu0 0
  %1813 = vmatpush1.bf16.msra.mxu0 0
  %1814 = vmatprep.subr.bf16.mxu0 0
  %1815 = vmatpush1.bf16.msra.mxu0 0
  %1816 = vmatprep.subr.bf16.mxu0 0
  %1817 = vmatpush1.bf16.msra.mxu0 0
  %1818 = vmatprep.subr.bf16.mxu0 0
  %1819 = vmatpush1.bf16.msra.mxu0 0
  %1820 = vmatprep.subr.bf16.mxu0 0
  %1821 = vmatpush1.bf16.msra.mxu0 0
  %1822 = vmatprep.subr.bf16.mxu0 0
  %1823 = vmatpush1.bf16.msra.mxu0 0
  %1824 = vmatprep.subr.bf16.mxu0 0
  %1825 = vmatpush1.bf16.msra.mxu0 0
  %1826 = vmatprep.mubr.bf16.mxu0 0
  %1827 = vmatmul.mubr.bf16.gmra.mrb[0].mxu0 %v1737
  %v1828 = vpop.f32.mrb[0].mxu0
  %v1829 = vadd.f32 0.0, %v1828
  %v1830 = vpop.f32.mrb[0].mxu0
  %v1831 = vadd.f32 0.0, %v1830
  %v1832 = vpop.f32.mrb[0].mxu0
  %v1833 = vadd.f32 0.0, %v1832
  %v1834 = vpop.f32.mrb[0].mxu0
  %v1835 = vadd.f32 0.0, %v1834
  %1836 = vdwg.mxu0
  %v1837 = vadd.f32 %v1743, %v1786
  %v1838 = vadd.f32 %v1744, %v1788
  %v1839 = vadd.f32 %v1745, %v1829
  %v1840 = vadd.f32 %v1746, %v1831
  %v1841 = vadd.f32 %v1747, %v1790
  %v1842 = vadd.f32 %v1748, %v1792
  %v1843 = vadd.f32 %v1749, %v1833
  %v1844 = vadd.f32 %v1750, %v1835
  %v1845 = vxor.u32 %v1837, 2147483648
  %v1846 = vxor.u32 %v1841, 2147483648
  %v1847 = vmul.f32 %v1845, 1.442695
  %v1848 = vpow.pop %v1847
  %v1849 = vmul.f32 %v1846, 1.442695
  %v1850 = vpow.pop %v1849
  %v1851 = vadd.f32 %v1848, 1.0
  %v1852 = vadd.f32 %v1850, 1.0
  %v1853 = vrcp.pop %v1851
  %v1854 = vmul.f32 1.0, %v1853
  %v1855 = vrcp.pop %v1852
  %v1856 = vmul.f32 1.0, %v1855
  %v1857 = vxor.u32 %v1838, 2147483648
  %v1858 = vxor.u32 %v1842, 2147483648
  %v1859 = vmul.f32 %v1857, 1.442695
  %v1860 = vpow.pop %v1859
  %v1861 = vmul.f32 %v1858, 1.442695
  %v1862 = vpow.pop %v1861
  %v1863 = vadd.f32 %v1860, 1.0
  %v1864 = vadd.f32 %v1862, 1.0
  %v1865 = vrcp.pop %v1863
  %v1866 = vmul.f32 1.0, %v1865
  %v1867 = vrcp.pop %v1864
  %v1868 = vmul.f32 1.0, %v1867
  %v1869 = vtanh.pop %v1839
  %v1870 = vtanh.pop %v1843
  %v1871 = vxor.u32 %v1840, 2147483648
  %v1872 = vxor.u32 %v1844, 2147483648
  %v1873 = vmul.f32 %v1871, 1.442695
  %v1874 = vpow.pop %v1873
  %v1875 = vmul.f32 %v1872, 1.442695
  %v1876 = vpow.pop %v1875
  %v1877 = vadd.f32 %v1874, 1.0
  %v1878 = vadd.f32 %v1876, 1.0
  %v1879 = vrcp.pop %v1877
  %v1880 = vmul.f32 1.0, %v1879
  %v1881 = vrcp.pop %v1878
  %v1882 = vmul.f32 1.0, %v1881
  %v1883 = vmul.f32 %v1866, %v1731
  %v1884 = vmul.f32 %v1868, %v1732
  %v1885 = vmul.f32 %v1854, %v1869
  %v1886 = vmul.f32 %v1856, %v1870
  %v1887 = vadd.f32 %v1883, %v1885
  %v1888 = vadd.f32 %v1884, %v1886
  %v1889 = vtanh.pop %v1887
  %v1890 = vtanh.pop %v1888
  %v1891 = vmul.f32 %v1880, %v1889
  %v1892 = vmul.f32 %v1882, %v1890
  %v1893 = vpack.c.bf16 %v1892, %v1891
  %s1894 = scalar_lea.vmem [#allocation3], 56
  %1895 = vst [vmem:[%s1894] sm:$0xff] %v1893
  %v1896 = vld [vmem:[%s4] sm:$0xff]
  %v1897 = vld [vmem:[%s4 + $0x8] sm:$0xff]
  %v1898 = vld [vmem:[%s4 + $0x10] sm:$0xff]
  %v1899 = vld [vmem:[%s4 + $0x18] sm:$0xff]
  %v1900 = vld [vmem:[%s4 + $0x20] sm:$0xff]
  %v1901 = vld [vmem:[%s4 + $0x28] sm:$0xff]
  %v1902 = vld [vmem:[%s4 + $0x30] sm:$0xff]
  %v1903 = vld [vmem:[%s4 + $0x38] sm:$0xff]
  %v1904 = vld [vmem:[%s4 + $0x40] sm:$0xff]
  %v1905 = vld [vmem:[%s4 + $0x48] sm:$0xff]
  %v1906 = vld [vmem:[%s4 + $0x50] sm:$0xff]
  %v1907 = vld [vmem:[%s4 + $0x58] sm:$0xff]
  %v1908 = vld [vmem:[%s4 + $0x60] sm:$0xff]
  %v1909 = vld [vmem:[%s4 + $0x68] sm:$0xff]
  %v1910 = vld [vmem:[%s4 + $0x70] sm:$0xff]
  %v1911 = vld [vmem:[%s4 + $0x78] sm:$0xff]
  %v1912 = vld [vmem:[%s4 + $0x80] sm:$0xff]
  %v1913 = vld [vmem:[%s4 + $0x88] sm:$0xff]
  %v1914 = vld [vmem:[%s4 + $0x90] sm:$0xff]
  %v1915 = vld [vmem:[%s4 + $0x98] sm:$0xff]
  %v1916 = vld [vmem:[%s4 + $0xa0] sm:$0xff]
  %v1917 = vld [vmem:[%s4 + $0xa8] sm:$0xff]
  %v1918 = vld [vmem:[%s4 + $0xb0] sm:$0xff]
  %v1919 = vld [vmem:[%s4 + $0xb8] sm:$0xff]
  %v1920 = vld [vmem:[%s4 + $0xc0] sm:$0xff]
  %v1921 = vld [vmem:[%s4 + $0xc8] sm:$0xff]
  %v1922 = vld [vmem:[%s4 + $0xd0] sm:$0xff]
  %v1923 = vld [vmem:[%s4 + $0xd8] sm:$0xff]
  %v1924 = vld [vmem:[%s4 + $0xe0] sm:$0xff]
  %v1925 = vld [vmem:[%s4 + $0xe8] sm:$0xff]
  %v1926 = vld [vmem:[%s4 + $0xf0] sm:$0xff]
  %v1927 = vld [vmem:[%s4 + $0xf8] sm:$0xff]
  %v1928 = vld [vmem:[%s5] sm:$0xff]
  %v1929 = vld [vmem:[%s5 + $0x8] sm:$0xff]
  %v1930 = vld [vmem:[%s5 + $0x10] sm:$0xff]
  %v1931 = vld [vmem:[%s5 + $0x18] sm:$0xff]
  %v1932 = vld [vmem:[%s5 + $0x20] sm:$0xff]
  %v1933 = vld [vmem:[%s5 + $0x28] sm:$0xff]
  %v1934 = vld [vmem:[%s5 + $0x30] sm:$0xff]
  %v1935 = vld [vmem:[%s5 + $0x38] sm:$0xff]
  %v1936 = vld [vmem:[%s5 + $0x40] sm:$0xff]
  %v1937 = vld [vmem:[%s5 + $0x48] sm:$0xff]
  %v1938 = vld [vmem:[%s5 + $0x50] sm:$0xff]
  %v1939 = vld [vmem:[%s5 + $0x58] sm:$0xff]
  %v1940 = vld [vmem:[%s5 + $0x60] sm:$0xff]
  %v1941 = vld [vmem:[%s5 + $0x68] sm:$0xff]
  %v1942 = vld [vmem:[%s5 + $0x70] sm:$0xff]
  %v1943 = vld [vmem:[%s5 + $0x78] sm:$0xff]
  %v1944 = vld [vmem:[%s5 + $0x80] sm:$0xff]
  %v1945 = vld [vmem:[%s5 + $0x88] sm:$0xff]
  %v1946 = vld [vmem:[%s5 + $0x90] sm:$0xff]
  %v1947 = vld [vmem:[%s5 + $0x98] sm:$0xff]
  %v1948 = vld [vmem:[%s5 + $0xa0] sm:$0xff]
  %v1949 = vld [vmem:[%s5 + $0xa8] sm:$0xff]
  %v1950 = vld [vmem:[%s5 + $0xb0] sm:$0xff]
  %v1951 = vld [vmem:[%s5 + $0xb8] sm:$0xff]
  %v1952 = vld [vmem:[%s5 + $0xc0] sm:$0xff]
  %v1953 = vld [vmem:[%s5 + $0xc8] sm:$0xff]
  %v1954 = vld [vmem:[%s5 + $0xd0] sm:$0xff]
  %v1955 = vld [vmem:[%s5 + $0xd8] sm:$0xff]
  %v1956 = vld [vmem:[%s5 + $0xe0] sm:$0xff]
  %v1957 = vld [vmem:[%s5 + $0xe8] sm:$0xff]
  %v1958 = vld [vmem:[%s5 + $0xf0] sm:$0xff]
  %v1959 = vld [vmem:[%s5 + $0xf8] sm:$0xff]
  %v1960 = vld [vmem:[%s6] sm:$0xf]
  %v1961 = vld [vmem:[#allocation3] sm:$0xff]
  %v1962 = vld [vmem:[#allocation3 + $0x8] sm:$0xff]
  %v1963 = vld [vmem:[#allocation3 + $0x10] sm:$0xff]
  %v1964 = vld [vmem:[#allocation3 + $0x18] sm:$0xff]
  %v1965 = vld [vmem:[#allocation3 + $0x20] sm:$0xff]
  %v1966 = vld [vmem:[#allocation3 + $0x28] sm:$0xff]
  %v1967 = vld [vmem:[#allocation3 + $0x30] sm:$0xff]
  %v1968 = vld [vmem:[#allocation3 + $0x38] sm:$0xff]
  %v1970 = vlaneseq
  %v1971 = vshrl.u32 %v1970, 7
  %v1972 = vsub.s32 0, %v1971
  %v1973 = vrot.slane %v1960, %v1972
  %v1974 = vlaneseq
  %v1975 = vshrl.u32 %v1974, 7
  %v1976 = vsub.s32 1, %v1975
  %v1977 = vrot.slane %v1960, %v1976
  %v1978 = vlaneseq
  %v1979 = vshrl.u32 %v1978, 7
  %v1980 = vsub.s32 2, %v1979
  %v1981 = vrot.slane %v1960, %v1980
  %v1982 = vlaneseq
  %v1983 = vshrl.u32 %v1982, 7
  %v1984 = vsub.s32 3, %v1983
  %v1985 = vrot.slane %v1960, %v1984
  %v2022 = vunpack.c.l.b16 %v1896
  %v2023 = vunpack.c.h.b16 %v1896
  %v2024 = vunpack.c.l.b16 %v1897
  %v2025 = vunpack.c.h.b16 %v1897
  %v2026 = vunpack.c.l.b16 %v1898
  %v2027 = vunpack.c.h.b16 %v1898
  %v2028 = vunpack.c.l.b16 %v1899
  %v2029 = vunpack.c.h.b16 %v1899
  %v2030 = vunpack.c.l.b16 %v1900
  %v2031 = vunpack.c.h.b16 %v1900
  %v2032 = vunpack.c.l.b16 %v1901
  %v2033 = vunpack.c.h.b16 %v1901
  %v2034 = vunpack.c.l.b16 %v1902
  %v2035 = vunpack.c.h.b16 %v1902
  %v2036 = vunpack.c.l.b16 %v1903
  %v2037 = vunpack.c.h.b16 %v1903
  %v2038 = vunpack.c.l.b16 %v1904
  %v2039 = vunpack.c.h.b16 %v1904
  %v2040 = vunpack.c.l.b16 %v1905
  %v2041 = vunpack.c.h.b16 %v1905
  %v2042 = vunpack.c.l.b16 %v1906
  %v2043 = vunpack.c.h.b16 %v1906
  %v2044 = vunpack.c.l.b16 %v1907
  %v2045 = vunpack.c.h.b16 %v1907
  %v2046 = vunpack.c.l.b16 %v1908
  %v2047 = vunpack.c.h.b16 %v1908
  %v2048 = vunpack.c.l.b16 %v1909
  %v2049 = vunpack.c.h.b16 %v1909
  %v2050 = vunpack.c.l.b16 %v1910
  %v2051 = vunpack.c.h.b16 %v1910
  %v2052 = vunpack.c.l.b16 %v1911
  %v2053 = vunpack.c.h.b16 %v1911
  %v2054 = vunpack.c.l.b16 %v1912
  %v2055 = vunpack.c.h.b16 %v1912
  %v2056 = vunpack.c.l.b16 %v1913
  %v2057 = vunpack.c.h.b16 %v1913
  %v2058 = vunpack.c.l.b16 %v1914
  %v2059 = vunpack.c.h.b16 %v1914
  %v2060 = vunpack.c.l.b16 %v1915
  %v2061 = vunpack.c.h.b16 %v1915
  %v2062 = vunpack.c.l.b16 %v1916
  %v2063 = vunpack.c.h.b16 %v1916
  %v2064 = vunpack.c.l.b16 %v1917
  %v2065 = vunpack.c.h.b16 %v1917
  %v2066 = vunpack.c.l.b16 %v1918
  %v2067 = vunpack.c.h.b16 %v1918
  %v2068 = vunpack.c.l.b16 %v1919
  %v2069 = vunpack.c.h.b16 %v1919
  %v2070 = vunpack.c.l.b16 %v1920
  %v2071 = vunpack.c.h.b16 %v1920
  %v2072 = vunpack.c.l.b16 %v1921
  %v2073 = vunpack.c.h.b16 %v1921
  %v2074 = vunpack.c.l.b16 %v1922
  %v2075 = vunpack.c.h.b16 %v1922
  %v2076 = vunpack.c.l.b16 %v1923
  %v2077 = vunpack.c.h.b16 %v1923
  %v2078 = vunpack.c.l.b16 %v1924
  %v2079 = vunpack.c.h.b16 %v1924
  %v2080 = vunpack.c.l.b16 %v1925
  %v2081 = vunpack.c.h.b16 %v1925
  %v2082 = vunpack.c.l.b16 %v1926
  %v2083 = vunpack.c.h.b16 %v1926
  %v2084 = vunpack.c.l.b16 %v1927
  %v2085 = vunpack.c.h.b16 %v1927
  %v2086 = vpack.c.b16 %v2026, %v2022
  %v2087 = vpack.c.b16 %v2027, %v2023
  %v2088 = vpack.c.b16 %v2028, %v2024
  %v2089 = vpack.c.b16 %v2029, %v2025
  %v2090 = vpack.c.b16 %v2034, %v2030
  %v2091 = vpack.c.b16 %v2035, %v2031
  %v2092 = vpack.c.b16 %v2036, %v2032
  %v2093 = vpack.c.b16 %v2037, %v2033
  %v2094 = vpack.c.b16 %v2042, %v2038
  %v2095 = vpack.c.b16 %v2043, %v2039
  %v2096 = vpack.c.b16 %v2044, %v2040
  %v2097 = vpack.c.b16 %v2045, %v2041
  %v2098 = vpack.c.b16 %v2050, %v2046
  %v2099 = vpack.c.b16 %v2051, %v2047
  %v2100 = vpack.c.b16 %v2052, %v2048
  %v2101 = vpack.c.b16 %v2053, %v2049
  %v2102 = vpack.c.b16 %v2058, %v2054
  %v2103 = vpack.c.b16 %v2059, %v2055
  %v2104 = vpack.c.b16 %v2060, %v2056
  %v2105 = vpack.c.b16 %v2061, %v2057
  %v2106 = vpack.c.b16 %v2066, %v2062
  %v2107 = vpack.c.b16 %v2067, %v2063
  %v2108 = vpack.c.b16 %v2068, %v2064
  %v2109 = vpack.c.b16 %v2069, %v2065
  %v2110 = vpack.c.b16 %v2074, %v2070
  %v2111 = vpack.c.b16 %v2075, %v2071
  %v2112 = vpack.c.b16 %v2076, %v2072
  %v2113 = vpack.c.b16 %v2077, %v2073
  %v2114 = vpack.c.b16 %v2082, %v2078
  %v2115 = vpack.c.b16 %v2083, %v2079
  %v2116 = vpack.c.b16 %v2084, %v2080
  %v2117 = vpack.c.b16 %v2085, %v2081
  %2150 = vmatprep.subr.bf16.mxu0 %v2087
  %2151 = vmatpush1.bf16.msra.mxu0 %v2086
  %2152 = vmatprep.subr.bf16.mxu0 %v2091
  %2153 = vmatpush1.bf16.msra.mxu0 %v2090
  %2154 = vmatprep.subr.bf16.mxu0 %v2095
  %2155 = vmatpush1.bf16.msra.mxu0 %v2094
  %2156 = vmatprep.subr.bf16.mxu0 %v2099
  %2157 = vmatpush1.bf16.msra.mxu0 %v2098
  %2158 = vmatprep.subr.bf16.mxu0 %v2103
  %2159 = vmatpush1.bf16.msra.mxu0 %v2102
  %2160 = vmatprep.subr.bf16.mxu0 %v2107
  %2161 = vmatpush1.bf16.msra.mxu0 %v2106
  %2162 = vmatprep.subr.bf16.mxu0 %v2111
  %2163 = vmatpush1.bf16.msra.mxu0 %v2110
  %2164 = vmatprep.subr.bf16.mxu0 %v2115
  %2165 = vmatpush1.bf16.msra.mxu0 %v2114
  %2166 = vmatprep.subr.bf16.mxu0 0
  %2167 = vmatpush1.bf16.msra.mxu0 0
  %2168 = vmatprep.subr.bf16.mxu0 0
  %2169 = vmatpush1.bf16.msra.mxu0 0
  %2170 = vmatprep.subr.bf16.mxu0 0
  %2171 = vmatpush1.bf16.msra.mxu0 0
  %2172 = vmatprep.subr.bf16.mxu0 0
  %2173 = vmatpush1.bf16.msra.mxu0 0
  %2174 = vmatprep.subr.bf16.mxu0 0
  %2175 = vmatpush1.bf16.msra.mxu0 0
  %2176 = vmatprep.subr.bf16.mxu0 0
  %2177 = vmatpush1.bf16.msra.mxu0 0
  %2178 = vmatprep.subr.bf16.mxu0 0
  %2179 = vmatpush1.bf16.msra.mxu0 0
  %2180 = vmatprep.subr.bf16.mxu0 0
  %2181 = vmatpush1.bf16.msra.mxu0 0
  %2182 = vmatprep.mubr.bf16.mxu0 0
  %2183 = vmatmul.mubr.bf16.gmra.mrb[0].mxu0 %v1961
  %v2184 = vpop.f32.mrb[0].mxu0
  %v2185 = vadd.f32 %v1973, %v2184
  %v2186 = vpop.f32.mrb[0].mxu0
  %v2187 = vadd.f32 %v1977, %v2186
  %v2188 = vpop.f32.mrb[0].mxu0
  %v2189 = vadd.f32 %v1973, %v2188
  %v2190 = vpop.f32.mrb[0].mxu0
  %v2191 = vadd.f32 %v1977, %v2190
  %2192 = vmatprep.mubr.bf16.mxu0 0
  %2193 = vmatmul.mubr.bf16.gmra.mrb[0].mxu0 %v1962
  %v2194 = vpop.f32.mrb[0].mxu0
  %v2195 = vadd.f32 %v1973, %v2194
  %v2196 = vpop.f32.mrb[0].mxu0
  %v2197 = vadd.f32 %v1977, %v2196
  %v2198 = vpop.f32.mrb[0].mxu0
  %v2199 = vadd.f32 %v1973, %v2198
  %v2200 = vpop.f32.mrb[0].mxu0
  %v2201 = vadd.f32 %v1977, %v2200
  %2202 = vmatprep.mubr.bf16.mxu0 0
  %2203 = vmatmul.mubr.bf16.gmra.mrb[0].mxu0 %v1963
  %v2204 = vpop.f32.mrb[0].mxu0
  %v2205 = vadd.f32 %v1973, %v2204
  %v2206 = vpop.f32.mrb[0].mxu0
  %v2207 = vadd.f32 %v1977, %v2206
  %v2208 = vpop.f32.mrb[0].mxu0
  %v2209 = vadd.f32 %v1973, %v2208
  %v2210 = vpop.f32.mrb[0].mxu0
  %v2211 = vadd.f32 %v1977, %v2210
  %2212 = vmatprep.mubr.bf16.mxu0 0
  %2213 = vmatmul.mubr.bf16.gmra.mrb[0].mxu0 %v1964
  %v2214 = vpop.f32.mrb[0].mxu0
  %v2215 = vadd.f32 %v1973, %v2214
  %v2216 = vpop.f32.mrb[0].mxu0
  %v2217 = vadd.f32 %v1977, %v2216
  %v2218 = vpop.f32.mrb[0].mxu0
  %v2219 = vadd.f32 %v1973, %v2218
  %v2220 = vpop.f32.mrb[0].mxu0
  %v2221 = vadd.f32 %v1977, %v2220
  %2222 = vmatprep.mubr.bf16.mxu0 0
  %2223 = vmatmul.mubr.bf16.gmra.mrb[0].mxu0 %v1965
  %v2224 = vpop.f32.mrb[0].mxu0
  %v2225 = vadd.f32 %v1973, %v2224
  %v2226 = vpop.f32.mrb[0].mxu0
  %v2227 = vadd.f32 %v1977, %v2226
  %v2228 = vpop.f32.mrb[0].mxu0
  %v2229 = vadd.f32 %v1973, %v2228
  %v2230 = vpop.f32.mrb[0].mxu0
  %v2231 = vadd.f32 %v1977, %v2230
  %2232 = vmatprep.mubr.bf16.mxu0 0
  %2233 = vmatmul.mubr.bf16.gmra.mrb[0].mxu0 %v1966
  %v2234 = vpop.f32.mrb[0].mxu0
  %v2235 = vadd.f32 %v1973, %v2234
  %v2236 = vpop.f32.mrb[0].mxu0
  %v2237 = vadd.f32 %v1977, %v2236
  %v2238 = vpop.f32.mrb[0].mxu0
  %v2239 = vadd.f32 %v1973, %v2238
  %v2240 = vpop.f32.mrb[0].mxu0
  %v2241 = vadd.f32 %v1977, %v2240
  %2242 = vmatprep.mubr.bf16.mxu0 0
  %2243 = vmatmul.mubr.bf16.gmra.mrb[0].mxu0 %v1967
  %v2244 = vpop.f32.mrb[0].mxu0
  %v2245 = vadd.f32 %v1973, %v2244
  %v2246 = vpop.f32.mrb[0].mxu0
  %v2247 = vadd.f32 %v1977, %v2246
  %v2248 = vpop.f32.mrb[0].mxu0
  %v2249 = vadd.f32 %v1973, %v2248
  %v2250 = vpop.f32.mrb[0].mxu0
  %v2251 = vadd.f32 %v1977, %v2250
  %2252 = vmatprep.mubr.bf16.mxu0 0
  %2253 = vmatmul.mubr.bf16.gmra.mrb[0].mxu0 %v1968
  %v2254 = vpop.f32.mrb[0].mxu0
  %v2255 = vadd.f32 %v1973, %v2254
  %v2256 = vpop.f32.mrb[0].mxu0
  %v2257 = vadd.f32 %v1977, %v2256
  %v2258 = vpop.f32.mrb[0].mxu0
  %v2259 = vadd.f32 %v1973, %v2258
  %v2260 = vpop.f32.mrb[0].mxu0
  %v2261 = vadd.f32 %v1977, %v2260
  %2262 = vdwg.mxu0
  %2263 = vmatprep.subr.bf16.mxu0 %v2089
  %2264 = vmatpush1.bf16.msra.mxu0 %v2088
  %2265 = vmatprep.subr.bf16.mxu0 %v2093
  %2266 = vmatpush1.bf16.msra.mxu0 %v2092
  %2267 = vmatprep.subr.bf16.mxu0 %v2097
  %2268 = vmatpush1.bf16.msra.mxu0 %v2096
  %2269 = vmatprep.subr.bf16.mxu0 %v2101
  %2270 = vmatpush1.bf16.msra.mxu0 %v2100
  %2271 = vmatprep.subr.bf16.mxu0 %v2105
  %2272 = vmatpush1.bf16.msra.mxu0 %v2104
  %2273 = vmatprep.subr.bf16.mxu0 %v2109
  %2274 = vmatpush1.bf16.msra.mxu0 %v2108
  %2275 = vmatprep.subr.bf16.mxu0 %v2113
  %2276 = vmatpush1.bf16.msra.mxu0 %v2112
  %2277 = vmatprep.subr.bf16.mxu0 %v2117
  %2278 = vmatpush1.bf16.msra.mxu0 %v2116
  %2279 = vmatprep.subr.bf16.mxu0 0
  %2280 = vmatpush1.bf16.msra.mxu0 0
  %2281 = vmatprep.subr.bf16.mxu0 0
  %2282 = vmatpush1.bf16.msra.mxu0 0
  %2283 = vmatprep.subr.bf16.mxu0 0
  %2284 = vmatpush1.bf16.msra.mxu0 0
  %2285 = vmatprep.subr.bf16.mxu0 0
  %2286 = vmatpush1.bf16.msra.mxu0 0
  %2287 = vmatprep.subr.bf16.mxu0 0
  %2288 = vmatpush1.bf16.msra.mxu0 0
  %2289 = vmatprep.subr.bf16.mxu0 0
  %2290 = vmatpush1.bf16.msra.mxu0 0
  %2291 = vmatprep.subr.bf16.mxu0 0
  %2292 = vmatpush1.bf16.msra.mxu0 0
  %2293 = vmatprep.subr.bf16.mxu0 0
  %2294 = vmatpush1.bf16.msra.mxu0 0
  %2295 = vmatprep.mubr.bf16.mxu0 0
  %2296 = vmatmul.mubr.bf16.gmra.mrb[0].mxu0 %v1961
  %v2297 = vpop.f32.mrb[0].mxu0
  %v2298 = vadd.f32 %v1981, %v2297
  %v2299 = vpop.f32.mrb[0].mxu0
  %v2300 = vadd.f32 %v1985, %v2299
  %v2301 = vpop.f32.mrb[0].mxu0
  %v2302 = vadd.f32 %v1981, %v2301
  %v2303 = vpop.f32.mrb[0].mxu0
  %v2304 = vadd.f32 %v1985, %v2303
  %2305 = vmatprep.mubr.bf16.mxu0 0
  %2306 = vmatmul.mubr.bf16.gmra.mrb[0].mxu0 %v1962
  %v2307 = vpop.f32.mrb[0].mxu0
  %v2308 = vadd.f32 %v1981, %v2307
  %v2309 = vpop.f32.mrb[0].mxu0
  %v2310 = vadd.f32 %v1985, %v2309
  %v2311 = vpop.f32.mrb[0].mxu0
  %v2312 = vadd.f32 %v1981, %v2311
  %v2313 = vpop.f32.mrb[0].mxu0
  %v2314 = vadd.f32 %v1985, %v2313
  %2315 = vmatprep.mubr.bf16.mxu0 0
  %2316 = vmatmul.mubr.bf16.gmra.mrb[0].mxu0 %v1963
  %v2317 = vpop.f32.mrb[0].mxu0
  %v2318 = vadd.f32 %v1981, %v2317
  %v2319 = vpop.f32.mrb[0].mxu0
  %v2320 = vadd.f32 %v1985, %v2319
  %v2321 = vpop.f32.mrb[0].mxu0
  %v2322 = vadd.f32 %v1981, %v2321
  %v2323 = vpop.f32.mrb[0].mxu0
  %v2324 = vadd.f32 %v1985, %v2323
  %2325 = vmatprep.mubr.bf16.mxu0 0
  %2326 = vmatmul.mubr.bf16.gmra.mrb[0].mxu0 %v1964
  %v2327 = vpop.f32.mrb[0].mxu0
  %v2328 = vadd.f32 %v1981, %v2327
  %v2329 = vpop.f32.mrb[0].mxu0
  %v2330 = vadd.f32 %v1985, %v2329
  %v2331 = vpop.f32.mrb[0].mxu0
  %v2332 = vadd.f32 %v1981, %v2331
  %v2333 = vpop.f32.mrb[0].mxu0
  %v2334 = vadd.f32 %v1985, %v2333
  %2335 = vmatprep.mubr.bf16.mxu0 0
  %2336 = vmatmul.mubr.bf16.gmra.mrb[0].mxu0 %v1965
  %v2337 = vpop.f32.mrb[0].mxu0
  %v2338 = vadd.f32 %v1981, %v2337
  %v2339 = vpop.f32.mrb[0].mxu0
  %v2340 = vadd.f32 %v1985, %v2339
  %v2341 = vpop.f32.mrb[0].mxu0
  %v2342 = vadd.f32 %v1981, %v2341
  %v2343 = vpop.f32.mrb[0].mxu0
  %v2344 = vadd.f32 %v1985, %v2343
  %2345 = vmatprep.mubr.bf16.mxu0 0
  %2346 = vmatmul.mubr.bf16.gmra.mrb[0].mxu0 %v1966
  %v2347 = vpop.f32.mrb[0].mxu0
  %v2348 = vadd.f32 %v1981, %v2347
  %v2349 = vpop.f32.mrb[0].mxu0
  %v2350 = vadd.f32 %v1985, %v2349
  %v2351 = vpop.f32.mrb[0].mxu0
  %v2352 = vadd.f32 %v1981, %v2351
  %v2353 = vpop.f32.mrb[0].mxu0
  %v2354 = vadd.f32 %v1985, %v2353
  %2355 = vmatprep.mubr.bf16.mxu0 0
  %2356 = vmatmul.mubr.bf16.gmra.mrb[0].mxu0 %v1967
  %v2357 = vpop.f32.mrb[0].mxu0
  %v2358 = vadd.f32 %v1981, %v2357
  %v2359 = vpop.f32.mrb[0].mxu0
  %v2360 = vadd.f32 %v1985, %v2359
  %v2361 = vpop.f32.mrb[0].mxu0
  %v2362 = vadd.f32 %v1981, %v2361
  %v2363 = vpop.f32.mrb[0].mxu0
  %v2364 = vadd.f32 %v1985, %v2363
  %2365 = vmatprep.mubr.bf16.mxu0 0
  %2366 = vmatmul.mubr.bf16.gmra.mrb[0].mxu0 %v1968
  %v2367 = vpop.f32.mrb[0].mxu0
  %v2368 = vadd.f32 %v1981, %v2367
  %v2369 = vpop.f32.mrb[0].mxu0
  %v2370 = vadd.f32 %v1985, %v2369
  %v2371 = vpop.f32.mrb[0].mxu0
  %v2372 = vadd.f32 %v1981, %v2371
  %v2373 = vpop.f32.mrb[0].mxu0
  %v2374 = vadd.f32 %v1985, %v2373
  %2375 = vdwg.mxu0
  %2376 = vst [vmem:[#allocation2] sm:$0xff] %v2185
  %2377 = vst [vmem:[#allocation2 + $0x8] sm:$0xff] %v2187
  %2378 = vst [vmem:[#allocation2 + $0x10] sm:$0xff] %v2298
  %2379 = vst [vmem:[#allocation2 + $0x18] sm:$0xff] %v2300
  %2380 = vst [vmem:[#allocation2 + $0x20] sm:$0xff] %v2189
  %2381 = vst [vmem:[#allocation2 + $0x28] sm:$0xff] %v2191
  %2382 = vst [vmem:[#allocation2 + $0x30] sm:$0xff] %v2302
  %2383 = vst [vmem:[#allocation2 + $0x38] sm:$0xff] %v2304
  %2384 = vst [vmem:[#allocation2 + $0x40] sm:$0xff] %v2195
  %2385 = vst [vmem:[#allocation2 + $0x48] sm:$0xff] %v2197
  %2386 = vst [vmem:[#allocation2 + $0x50] sm:$0xff] %v2308
  %2387 = vst [vmem:[#allocation2 + $0x58] sm:$0xff] %v2310
  %2388 = vst [vmem:[#allocation2 + $0x60] sm:$0xff] %v2199
  %2389 = vst [vmem:[#allocation2 + $0x68] sm:$0xff] %v2201
  %2390 = vst [vmem:[#allocation2 + $0x70] sm:$0xff] %v2312
  %2391 = vst [vmem:[#allocation2 + $0x78] sm:$0xff] %v2314
  %2392 = vst [vmem:[#allocation2 + $0x80] sm:$0xff] %v2205
  %2393 = vst [vmem:[#allocation2 + $0x88] sm:$0xff] %v2207
  %2394 = vst [vmem:[#allocation2 + $0x90] sm:$0xff] %v2318
  %2395 = vst [vmem:[#allocation2 + $0x98] sm:$0xff] %v2320
  %2396 = vst [vmem:[#allocation2 + $0xa0] sm:$0xff] %v2209
  %2397 = vst [vmem:[#allocation2 + $0xa8] sm:$0xff] %v2211
  %2398 = vst [vmem:[#allocation2 + $0xb0] sm:$0xff] %v2322
  %2399 = vst [vmem:[#allocation2 + $0xb8] sm:$0xff] %v2324
  %2400 = vst [vmem:[#allocation2 + $0xc0] sm:$0xff] %v2215
  %2401 = vst [vmem:[#allocation2 + $0xc8] sm:$0xff] %v2217
  %2402 = vst [vmem:[#allocation2 + $0xd0] sm:$0xff] %v2328
  %2403 = vst [vmem:[#allocation2 + $0xd8] sm:$0xff] %v2330
  %2404 = vst [vmem:[#allocation2 + $0xe0] sm:$0xff] %v2219
  %2405 = vst [vmem:[#allocation2 + $0xe8] sm:$0xff] %v2221
  %2406 = vst [vmem:[#allocation2 + $0xf0] sm:$0xff] %v2332
  %2407 = vst [vmem:[#allocation2 + $0xf8] sm:$0xff] %v2334
  %2408 = vst [vmem:[#allocation2 + $0x100] sm:$0xff] %v2225
  %2409 = vst [vmem:[#allocation2 + $0x108] sm:$0xff] %v2227
  %2410 = vst [vmem:[#allocation2 + $0x110] sm:$0xff] %v2338
  %2411 = vst [vmem:[#allocation2 + $0x118] sm:$0xff] %v2340
  %2412 = vst [vmem:[#allocation2 + $0x120] sm:$0xff] %v2229
  %2413 = vst [vmem:[#allocation2 + $0x128] sm:$0xff] %v2231
  %2414 = vst [vmem:[#allocation2 + $0x130] sm:$0xff] %v2342
  %2415 = vst [vmem:[#allocation2 + $0x138] sm:$0xff] %v2344
  %2416 = vst [vmem:[#allocation2 + $0x140] sm:$0xff] %v2235
  %2417 = vst [vmem:[#allocation2 + $0x148] sm:$0xff] %v2237
  %2418 = vst [vmem:[#allocation2 + $0x150] sm:$0xff] %v2348
  %2419 = vst [vmem:[#allocation2 + $0x158] sm:$0xff] %v2350
  %2420 = vst [vmem:[#allocation2 + $0x160] sm:$0xff] %v2239
  %2421 = vst [vmem:[#allocation2 + $0x168] sm:$0xff] %v2241
  %2422 = vst [vmem:[#allocation2 + $0x170] sm:$0xff] %v2352
  %2423 = vst [vmem:[#allocation2 + $0x178] sm:$0xff] %v2354
  %2424 = vst [vmem:[#allocation2 + $0x180] sm:$0xff] %v2245
  %2425 = vst [vmem:[#allocation2 + $0x188] sm:$0xff] %v2247
  %2426 = vst [vmem:[#allocation2 + $0x190] sm:$0xff] %v2358
  %2427 = vst [vmem:[#allocation2 + $0x198] sm:$0xff] %v2360
  %2428 = vst [vmem:[#allocation2 + $0x1a0] sm:$0xff] %v2249
  %2429 = vst [vmem:[#allocation2 + $0x1a8] sm:$0xff] %v2251
  %2430 = vst [vmem:[#allocation2 + $0x1b0] sm:$0xff] %v2362
  %2431 = vst [vmem:[#allocation2 + $0x1b8] sm:$0xff] %v2364
  %2432 = vst [vmem:[#allocation2 + $0x1c0] sm:$0xff] %v2255
  %2433 = vst [vmem:[#allocation2 + $0x1c8] sm:$0xff] %v2257
  %2434 = vst [vmem:[#allocation2 + $0x1d0] sm:$0xff] %v2368
  %2435 = vst [vmem:[#allocation2 + $0x1d8] sm:$0xff] %v2370
  %2436 = vst [vmem:[#allocation2 + $0x1e0] sm:$0xff] %v2259
  %2437 = vst [vmem:[#allocation2 + $0x1e8] sm:$0xff] %v2261
  %2438 = vst [vmem:[#allocation2 + $0x1f0] sm:$0xff] %v2372
  %2439 = vst [vmem:[#allocation2 + $0x1f8] sm:$0xff] %v2374
  %v2440 = vld [vmem:[%s491] sm:$0xff]
  %v2441 = vld [vmem:[%s491 + $0x8] sm:$0xff]
  %v2442 = vld [vmem:[%s491 + $0x10] sm:$0xff]
  %v2443 = vld [vmem:[%s491 + $0x18] sm:$0xff]
  %v2444 = vld [vmem:[%s491 + $0x20] sm:$0xff]
  %v2445 = vld [vmem:[%s491 + $0x28] sm:$0xff]
  %v2446 = vld [vmem:[%s491 + $0x30] sm:$0xff]
  %v2447 = vld [vmem:[%s491 + $0x38] sm:$0xff]
  %v2480 = vunpack.c.l.b16 %v1928
  %v2481 = vunpack.c.h.b16 %v1928
  %v2482 = vunpack.c.l.b16 %v1929
  %v2483 = vunpack.c.h.b16 %v1929
  %v2484 = vunpack.c.l.b16 %v1930
  %v2485 = vunpack.c.h.b16 %v1930
  %v2486 = vunpack.c.l.b16 %v1931
  %v2487 = vunpack.c.h.b16 %v1931
  %v2488 = vunpack.c.l.b16 %v1932
  %v2489 = vunpack.c.h.b16 %v1932
  %v2490 = vunpack.c.l.b16 %v1933
  %v2491 = vunpack.c.h.b16 %v1933
  %v2492 = vunpack.c.l.b16 %v1934
  %v2493 = vunpack.c.h.b16 %v1934
  %v2494 = vunpack.c.l.b16 %v1935
  %v2495 = vunpack.c.h.b16 %v1935
  %v2496 = vunpack.c.l.b16 %v1936
  %v2497 = vunpack.c.h.b16 %v1936
  %v2498 = vunpack.c.l.b16 %v1937
  %v2499 = vunpack.c.h.b16 %v1937
  %v2500 = vunpack.c.l.b16 %v1938
  %v2501 = vunpack.c.h.b16 %v1938
  %v2502 = vunpack.c.l.b16 %v1939
  %v2503 = vunpack.c.h.b16 %v1939
  %v2504 = vunpack.c.l.b16 %v1940
  %v2505 = vunpack.c.h.b16 %v1940
  %v2506 = vunpack.c.l.b16 %v1941
  %v2507 = vunpack.c.h.b16 %v1941
  %v2508 = vunpack.c.l.b16 %v1942
  %v2509 = vunpack.c.h.b16 %v1942
  %v2510 = vunpack.c.l.b16 %v1943
  %v2511 = vunpack.c.h.b16 %v1943
  %v2512 = vunpack.c.l.b16 %v1944
  %v2513 = vunpack.c.h.b16 %v1944
  %v2514 = vunpack.c.l.b16 %v1945
  %v2515 = vunpack.c.h.b16 %v1945
  %v2516 = vunpack.c.l.b16 %v1946
  %v2517 = vunpack.c.h.b16 %v1946
  %v2518 = vunpack.c.l.b16 %v1947
  %v2519 = vunpack.c.h.b16 %v1947
  %v2520 = vunpack.c.l.b16 %v1948
  %v2521 = vunpack.c.h.b16 %v1948
  %v2522 = vunpack.c.l.b16 %v1949
  %v2523 = vunpack.c.h.b16 %v1949
  %v2524 = vunpack.c.l.b16 %v1950
  %v2525 = vunpack.c.h.b16 %v1950
  %v2526 = vunpack.c.l.b16 %v1951
  %v2527 = vunpack.c.h.b16 %v1951
  %v2528 = vunpack.c.l.b16 %v1952
  %v2529 = vunpack.c.h.b16 %v1952
  %v2530 = vunpack.c.l.b16 %v1953
  %v2531 = vunpack.c.h.b16 %v1953
  %v2532 = vunpack.c.l.b16 %v1954
  %v2533 = vunpack.c.h.b16 %v1954
  %v2534 = vunpack.c.l.b16 %v1955
  %v2535 = vunpack.c.h.b16 %v1955
  %v2536 = vunpack.c.l.b16 %v1956
  %v2537 = vunpack.c.h.b16 %v1956
  %v2538 = vunpack.c.l.b16 %v1957
  %v2539 = vunpack.c.h.b16 %v1957
  %v2540 = vunpack.c.l.b16 %v1958
  %v2541 = vunpack.c.h.b16 %v1958
  %v2542 = vunpack.c.l.b16 %v1959
  %v2543 = vunpack.c.h.b16 %v1959
  %v2544 = vpack.c.b16 %v2484, %v2480
  %v2545 = vpack.c.b16 %v2485, %v2481
  %v2546 = vpack.c.b16 %v2486, %v2482
  %v2547 = vpack.c.b16 %v2487, %v2483
  %v2548 = vpack.c.b16 %v2492, %v2488
  %v2549 = vpack.c.b16 %v2493, %v2489
  %v2550 = vpack.c.b16 %v2494, %v2490
  %v2551 = vpack.c.b16 %v2495, %v2491
  %v2552 = vpack.c.b16 %v2500, %v2496
  %v2553 = vpack.c.b16 %v2501, %v2497
  %v2554 = vpack.c.b16 %v2502, %v2498
  %v2555 = vpack.c.b16 %v2503, %v2499
  %v2556 = vpack.c.b16 %v2508, %v2504
  %v2557 = vpack.c.b16 %v2509, %v2505
  %v2558 = vpack.c.b16 %v2510, %v2506
  %v2559 = vpack.c.b16 %v2511, %v2507
  %v2560 = vpack.c.b16 %v2516, %v2512
  %v2561 = vpack.c.b16 %v2517, %v2513
  %v2562 = vpack.c.b16 %v2518, %v2514
  %v2563 = vpack.c.b16 %v2519, %v2515
  %v2564 = vpack.c.b16 %v2524, %v2520
  %v2565 = vpack.c.b16 %v2525, %v2521
  %v2566 = vpack.c.b16 %v2526, %v2522
  %v2567 = vpack.c.b16 %v2527, %v2523
  %v2568 = vpack.c.b16 %v2532, %v2528
  %v2569 = vpack.c.b16 %v2533, %v2529
  %v2570 = vpack.c.b16 %v2534, %v2530
  %v2571 = vpack.c.b16 %v2535, %v2531
  %v2572 = vpack.c.b16 %v2540, %v2536
  %v2573 = vpack.c.b16 %v2541, %v2537
  %v2574 = vpack.c.b16 %v2542, %v2538
  %v2575 = vpack.c.b16 %v2543, %v2539
  %2608 = vmatprep.subr.bf16.mxu0 %v2545
  %2609 = vmatpush1.bf16.msra.mxu0 %v2544
  %2610 = vmatprep.subr.bf16.mxu0 %v2549
  %2611 = vmatpush1.bf16.msra.mxu0 %v2548
  %2612 = vmatprep.subr.bf16.mxu0 %v2553
  %2613 = vmatpush1.bf16.msra.mxu0 %v2552
  %2614 = vmatprep.subr.bf16.mxu0 %v2557
  %2615 = vmatpush1.bf16.msra.mxu0 %v2556
  %2616 = vmatprep.subr.bf16.mxu0 %v2561
  %2617 = vmatpush1.bf16.msra.mxu0 %v2560
  %2618 = vmatprep.subr.bf16.mxu0 %v2565
  %2619 = vmatpush1.bf16.msra.mxu0 %v2564
  %2620 = vmatprep.subr.bf16.mxu0 %v2569
  %2621 = vmatpush1.bf16.msra.mxu0 %v2568
  %2622 = vmatprep.subr.bf16.mxu0 %v2573
  %2623 = vmatpush1.bf16.msra.mxu0 %v2572
  %2624 = vmatprep.subr.bf16.mxu0 0
  %2625 = vmatpush1.bf16.msra.mxu0 0
  %2626 = vmatprep.subr.bf16.mxu0 0
  %2627 = vmatpush1.bf16.msra.mxu0 0
  %2628 = vmatprep.subr.bf16.mxu0 0
  %2629 = vmatpush1.bf16.msra.mxu0 0
  %2630 = vmatprep.subr.bf16.mxu0 0
  %2631 = vmatpush1.bf16.msra.mxu0 0
  %2632 = vmatprep.subr.bf16.mxu0 0
  %2633 = vmatpush1.bf16.msra.mxu0 0
  %2634 = vmatprep.subr.bf16.mxu0 0
  %2635 = vmatpush1.bf16.msra.mxu0 0
  %2636 = vmatprep.subr.bf16.mxu0 0
  %2637 = vmatpush1.bf16.msra.mxu0 0
  %2638 = vmatprep.subr.bf16.mxu0 0
  %2639 = vmatpush1.bf16.msra.mxu0 0
  %2640 = vmatprep.mubr.bf16.mxu0 0
  %2641 = vmatmul.mubr.bf16.gmra.mrb[0].mxu0 0
  %v2642 = vpop.f32.mrb[0].mxu0
  %v2643 = vadd.f32 0.0, %v2642
  %v2644 = vpop.f32.mrb[0].mxu0
  %v2645 = vadd.f32 0.0, %v2644
  %v2646 = vpop.f32.mrb[0].mxu0
  %v2647 = vadd.f32 0.0, %v2646
  %v2648 = vpop.f32.mrb[0].mxu0
  %v2649 = vadd.f32 0.0, %v2648
  %2650 = vdwg.mxu0
  %2651 = vmatprep.subr.bf16.mxu0 %v2547
  %2652 = vmatpush1.bf16.msra.mxu0 %v2546
  %2653 = vmatprep.subr.bf16.mxu0 %v2551
  %2654 = vmatpush1.bf16.msra.mxu0 %v2550
  %2655 = vmatprep.subr.bf16.mxu0 %v2555
  %2656 = vmatpush1.bf16.msra.mxu0 %v2554
  %2657 = vmatprep.subr.bf16.mxu0 %v2559
  %2658 = vmatpush1.bf16.msra.mxu0 %v2558
  %2659 = vmatprep.subr.bf16.mxu0 %v2563
  %2660 = vmatpush1.bf16.msra.mxu0 %v2562
  %2661 = vmatprep.subr.bf16.mxu0 %v2567
  %2662 = vmatpush1.bf16.msra.mxu0 %v2566
  %2663 = vmatprep.subr.bf16.mxu0 %v2571
  %2664 = vmatpush1.bf16.msra.mxu0 %v2570
  %2665 = vmatprep.subr.bf16.mxu0 %v2575
  %2666 = vmatpush1.bf16.msra.mxu0 %v2574
  %2667 = vmatprep.subr.bf16.mxu0 0
  %2668 = vmatpush1.bf16.msra.mxu0 0
  %2669 = vmatprep.subr.bf16.mxu0 0
  %2670 = vmatpush1.bf16.msra.mxu0 0
  %2671 = vmatprep.subr.bf16.mxu0 0
  %2672 = vmatpush1.bf16.msra.mxu0 0
  %2673 = vmatprep.subr.bf16.mxu0 0
  %2674 = vmatpush1.bf16.msra.mxu0 0
  %2675 = vmatprep.subr.bf16.mxu0 0
  %2676 = vmatpush1.bf16.msra.mxu0 0
  %2677 = vmatprep.subr.bf16.mxu0 0
  %2678 = vmatpush1.bf16.msra.mxu0 0
  %2679 = vmatprep.subr.bf16.mxu0 0
  %2680 = vmatpush1.bf16.msra.mxu0 0
  %2681 = vmatprep.subr.bf16.mxu0 0
  %2682 = vmatpush1.bf16.msra.mxu0 0
  %2683 = vmatprep.mubr.bf16.mxu0 0
  %2684 = vmatmul.mubr.bf16.gmra.mrb[0].mxu0 0
  %v2685 = vpop.f32.mrb[0].mxu0
  %v2686 = vadd.f32 0.0, %v2685
  %v2687 = vpop.f32.mrb[0].mxu0
  %v2688 = vadd.f32 0.0, %v2687
  %v2689 = vpop.f32.mrb[0].mxu0
  %v2690 = vadd.f32 0.0, %v2689
  %v2691 = vpop.f32.mrb[0].mxu0
  %v2692 = vadd.f32 0.0, %v2691
  %2693 = vdwg.mxu0
  %v2694 = vadd.f32 %v2440, %v2643
  %v2695 = vadd.f32 %v2441, %v2645
  %v2696 = vadd.f32 %v2442, %v2686
  %v2697 = vadd.f32 %v2443, %v2688
  %v2698 = vadd.f32 %v2444, %v2647
  %v2699 = vadd.f32 %v2445, %v2649
  %v2700 = vadd.f32 %v2446, %v2690
  %v2701 = vadd.f32 %v2447, %v2692
  %v2702 = vxor.u32 %v2694, 2147483648
  %v2703 = vxor.u32 %v2698, 2147483648
  %v2704 = vmul.f32 %v2702, 1.442695
  %v2705 = vpow.pop %v2704
  %v2706 = vmul.f32 %v2703, 1.442695
  %v2707 = vpow.pop %v2706
  %v2708 = vadd.f32 %v2705, 1.0
  %v2709 = vadd.f32 %v2707, 1.0
  %v2710 = vrcp.pop %v2708
  %v2711 = vmul.f32 1.0, %v2710
  %v2712 = vrcp.pop %v2709
  %v2713 = vmul.f32 1.0, %v2712
  %v2714 = vxor.u32 %v2695, 2147483648
  %v2715 = vxor.u32 %v2699, 2147483648
  %v2716 = vmul.f32 %v2714, 1.442695
  %v2717 = vpow.pop %v2716
  %v2718 = vmul.f32 %v2715, 1.442695
  %v2719 = vpow.pop %v2718
  %v2720 = vadd.f32 %v2717, 1.0
  %v2721 = vadd.f32 %v2719, 1.0
  %v2722 = vrcp.pop %v2720
  %v2723 = vmul.f32 1.0, %v2722
  %v2724 = vrcp.pop %v2721
  %v2725 = vmul.f32 1.0, %v2724
  %v2726 = vtanh.pop %v2696
  %v2727 = vtanh.pop %v2700
  %v2728 = vxor.u32 %v2697, 2147483648
  %v2729 = vxor.u32 %v2701, 2147483648
  %v2730 = vmul.f32 %v2728, 1.442695
  %v2731 = vpow.pop %v2730
  %v2732 = vmul.f32 %v2729, 1.442695
  %v2733 = vpow.pop %v2732
  %v2734 = vadd.f32 %v2731, 1.0
  %v2735 = vadd.f32 %v2733, 1.0
  %v2736 = vrcp.pop %v2734
  %v2737 = vmul.f32 1.0, %v2736
  %v2738 = vrcp.pop %v2735
  %v2739 = vmul.f32 1.0, %v2738
  %v2740 = vmul.f32 %v2723, 0.0
  %v2741 = vmul.f32 %v2725, 0.0
  %v2742 = vmul.f32 %v2711, %v2726
  %v2743 = vmul.f32 %v2713, %v2727
  %v2744 = vadd.f32 %v2740, %v2742
  %v2745 = vadd.f32 %v2741, %v2743
  %v2746 = vtanh.pop %v2744
  %v2747 = vtanh.pop %v2745
  %v2748 = vmul.f32 %v2737, %v2746
  %v2749 = vmul.f32 %v2739, %v2747
  %v2750 = vpack.c.bf16 %v2749, %v2748
  %2751 = vst [vmem:[#allocation4] sm:$0xff] %v2750
  %v2752 = vld [vmem:[%s806] sm:$0xff]
  %v2753 = vld [vmem:[%s806 + $0x8] sm:$0xff]
  %v2754 = vld [vmem:[%s806 + $0x10] sm:$0xff]
  %v2755 = vld [vmem:[%s806 + $0x18] sm:$0xff]
  %v2756 = vld [vmem:[%s806 + $0x20] sm:$0xff]
  %v2757 = vld [vmem:[%s806 + $0x28] sm:$0xff]
  %v2758 = vld [vmem:[%s806 + $0x30] sm:$0xff]
  %v2759 = vld [vmem:[%s806 + $0x38] sm:$0xff]
  %2760 = vmatprep.subr.bf16.mxu0 %v2545
  %2761 = vmatpush1.bf16.msra.mxu0 %v2544
  %2762 = vmatprep.subr.bf16.mxu0 %v2549
  %2763 = vmatpush1.bf16.msra.mxu0 %v2548
  %2764 = vmatprep.subr.bf16.mxu0 %v2553
  %2765 = vmatpush1.bf16.msra.mxu0 %v2552
  %2766 = vmatprep.subr.bf16.mxu0 %v2557
  %2767 = vmatpush1.bf16.msra.mxu0 %v2556
  %2768 = vmatprep.subr.bf16.mxu0 %v2561
  %2769 = vmatpush1.bf16.msra.mxu0 %v2560
  %2770 = vmatprep.subr.bf16.mxu0 %v2565
  %2771 = vmatpush1.bf16.msra.mxu0 %v2564
  %2772 = vmatprep.subr.bf16.mxu0 %v2569
  %2773 = vmatpush1.bf16.msra.mxu0 %v2568
  %2774 = vmatprep.subr.bf16.mxu0 %v2573
  %2775 = vmatpush1.bf16.msra.mxu0 %v2572
  %2776 = vmatprep.subr.bf16.mxu0 0
  %2777 = vmatpush1.bf16.msra.mxu0 0
  %2778 = vmatprep.subr.bf16.mxu0 0
  %2779 = vmatpush1.bf16.msra.mxu0 0
  %2780 = vmatprep.subr.bf16.mxu0 0
  %2781 = vmatpush1.bf16.msra.mxu0 0
  %2782 = vmatprep.subr.bf16.mxu0 0
  %2783 = vmatpush1.bf16.msra.mxu0 0
  %2784 = vmatprep.subr.bf16.mxu0 0
  %2785 = vmatpush1.bf16.msra.mxu0 0
  %2786 = vmatprep.subr.bf16.mxu0 0
  %2787 = vmatpush1.bf16.msra.mxu0 0
  %2788 = vmatprep.subr.bf16.mxu0 0
  %2789 = vmatpush1.bf16.msra.mxu0 0
  %2790 = vmatprep.subr.bf16.mxu0 0
  %2791 = vmatpush1.bf16.msra.mxu0 0
  %2792 = vmatprep.mubr.bf16.mxu0 0
  %2793 = vmatmul.mubr.bf16.gmra.mrb[0].mxu0 %v2750
  %v2794 = vpop.f32.mrb[0].mxu0
  %v2795 = vadd.f32 0.0, %v2794
  %v2796 = vpop.f32.mrb[0].mxu0
  %v2797 = vadd.f32 0.0, %v2796
  %v2798 = vpop.f32.mrb[0].mxu0
  %v2799 = vadd.f32 0.0, %v2798
  %v2800 = vpop.f32.mrb[0].mxu0
  %v2801 = vadd.f32 0.0, %v2800
  %2802 = vdwg.mxu0
  %2803 = vmatprep.subr.bf16.mxu0 %v2547
  %2804 = vmatpush1.bf16.msra.mxu0 %v2546
  %2805 = vmatprep.subr.bf16.mxu0 %v2551
  %2806 = vmatpush1.bf16.msra.mxu0 %v2550
  %2807 = vmatprep.subr.bf16.mxu0 %v2555
  %2808 = vmatpush1.bf16.msra.mxu0 %v2554
  %2809 = vmatprep.subr.bf16.mxu0 %v2559
  %2810 = vmatpush1.bf16.msra.mxu0 %v2558
  %2811 = vmatprep.subr.bf16.mxu0 %v2563
  %2812 = vmatpush1.bf16.msra.mxu0 %v2562
  %2813 = vmatprep.subr.bf16.mxu0 %v2567
  %2814 = vmatpush1.bf16.msra.mxu0 %v2566
  %2815 = vmatprep.subr.bf16.mxu0 %v2571
  %2816 = vmatpush1.bf16.msra.mxu0 %v2570
  %2817 = vmatprep.subr.bf16.mxu0 %v2575
  %2818 = vmatpush1.bf16.msra.mxu0 %v2574
  %2819 = vmatprep.subr.bf16.mxu0 0
  %2820 = vmatpush1.bf16.msra.mxu0 0
  %2821 = vmatprep.subr.bf16.mxu0 0
  %2822 = vmatpush1.bf16.msra.mxu0 0
  %2823 = vmatprep.subr.bf16.mxu0 0
  %2824 = vmatpush1.bf16.msra.mxu0 0
  %2825 = vmatprep.subr.bf16.mxu0 0
  %2826 = vmatpush1.bf16.msra.mxu0 0
  %2827 = vmatprep.subr.bf16.mxu0 0
  %2828 = vmatpush1.bf16.msra.mxu0 0
  %2829 = vmatprep.subr.bf16.mxu0 0
  %2830 = vmatpush1.bf16.msra.mxu0 0
  %2831 = vmatprep.subr.bf16.mxu0 0
  %2832 = vmatpush1.bf16.msra.mxu0 0
  %2833 = vmatprep.subr.bf16.mxu0 0
  %2834 = vmatpush1.bf16.msra.mxu0 0
  %2835 = vmatprep.mubr.bf16.mxu0 0
  %2836 = vmatmul.mubr.bf16.gmra.mrb[0].mxu0 %v2750
  %v2837 = vpop.f32.mrb[0].mxu0
  %v2838 = vadd.f32 0.0, %v2837
  %v2839 = vpop.f32.mrb[0].mxu0
  %v2840 = vadd.f32 0.0, %v2839
  %v2841 = vpop.f32.mrb[0].mxu0
  %v2842 = vadd.f32 0.0, %v2841
  %v2843 = vpop.f32.mrb[0].mxu0
  %v2844 = vadd.f32 0.0, %v2843
  %2845 = vdwg.mxu0
  %v2846 = vadd.f32 %v2752, %v2795
  %v2847 = vadd.f32 %v2753, %v2797
  %v2848 = vadd.f32 %v2754, %v2838
  %v2849 = vadd.f32 %v2755, %v2840
  %v2850 = vadd.f32 %v2756, %v2799
  %v2851 = vadd.f32 %v2757, %v2801
  %v2852 = vadd.f32 %v2758, %v2842
  %v2853 = vadd.f32 %v2759, %v2844
  %v2854 = vxor.u32 %v2846, 2147483648
  %v2855 = vxor.u32 %v2850, 2147483648
  %v2856 = vmul.f32 %v2854, 1.442695
  %v2857 = vpow.pop %v2856
  %v2858 = vmul.f32 %v2855, 1.442695
  %v2859 = vpow.pop %v2858
  %v2860 = vadd.f32 %v2857, 1.0
  %v2861 = vadd.f32 %v2859, 1.0
  %v2862 = vrcp.pop %v2860
  %v2863 = vmul.f32 1.0, %v2862
  %v2864 = vrcp.pop %v2861
  %v2865 = vmul.f32 1.0, %v2864
  %v2866 = vxor.u32 %v2847, 2147483648
  %v2867 = vxor.u32 %v2851, 2147483648
  %v2868 = vmul.f32 %v2866, 1.442695
  %v2869 = vpow.pop %v2868
  %v2870 = vmul.f32 %v2867, 1.442695
  %v2871 = vpow.pop %v2870
  %v2872 = vadd.f32 %v2869, 1.0
  %v2873 = vadd.f32 %v2871, 1.0
  %v2874 = vrcp.pop %v2872
  %v2875 = vmul.f32 1.0, %v2874
  %v2876 = vrcp.pop %v2873
  %v2877 = vmul.f32 1.0, %v2876
  %v2878 = vtanh.pop %v2848
  %v2879 = vtanh.pop %v2852
  %v2880 = vxor.u32 %v2849, 2147483648
  %v2881 = vxor.u32 %v2853, 2147483648
  %v2882 = vmul.f32 %v2880, 1.442695
  %v2883 = vpow.pop %v2882
  %v2884 = vmul.f32 %v2881, 1.442695
  %v2885 = vpow.pop %v2884
  %v2886 = vadd.f32 %v2883, 1.0
  %v2887 = vadd.f32 %v2885, 1.0
  %v2888 = vrcp.pop %v2886
  %v2889 = vmul.f32 1.0, %v2888
  %v2890 = vrcp.pop %v2887
  %v2891 = vmul.f32 1.0, %v2890
  %v2892 = vmul.f32 %v2875, %v2744
  %v2893 = vmul.f32 %v2877, %v2745
  %v2894 = vmul.f32 %v2863, %v2878
  %v2895 = vmul.f32 %v2865, %v2879
  %v2896 = vadd.f32 %v2892, %v2894
  %v2897 = vadd.f32 %v2893, %v2895
  %v2898 = vtanh.pop %v2896
  %v2899 = vtanh.pop %v2897
  %v2900 = vmul.f32 %v2889, %v2898
  %v2901 = vmul.f32 %v2891, %v2899
  %v2902 = vpack.c.bf16 %v2901, %v2900
  %s2903 = scalar_lea.vmem [#allocation4], 8
  %2904 = vst [vmem:[%s2903] sm:$0xff] %v2902
  %v2905 = vld [vmem:[%s962] sm:$0xff]
  %v2906 = vld [vmem:[%s962 + $0x8] sm:$0xff]
  %v2907 = vld [vmem:[%s962 + $0x10] sm:$0xff]
  %v2908 = vld [vmem:[%s962 + $0x18] sm:$0xff]
  %v2909 = vld [vmem:[%s962 + $0x20] sm:$0xff]
  %v2910 = vld [vmem:[%s962 + $0x28] sm:$0xff]
  %v2911 = vld [vmem:[%s962 + $0x30] sm:$0xff]
  %v2912 = vld [vmem:[%s962 + $0x38] sm:$0xff]
  %2913 = vmatprep.subr.bf16.mxu0 %v2545
  %2914 = vmatpush1.bf16.msra.mxu0 %v2544
  %2915 = vmatprep.subr.bf16.mxu0 %v2549
  %2916 = vmatpush1.bf16.msra.mxu0 %v2548
  %2917 = vmatprep.subr.bf16.mxu0 %v2553
  %2918 = vmatpush1.bf16.msra.mxu0 %v2552
  %2919 = vmatprep.subr.bf16.mxu0 %v2557
  %2920 = vmatpush1.bf16.msra.mxu0 %v2556
  %2921 = vmatprep.subr.bf16.mxu0 %v2561
  %2922 = vmatpush1.bf16.msra.mxu0 %v2560
  %2923 = vmatprep.subr.bf16.mxu0 %v2565
  %2924 = vmatpush1.bf16.msra.mxu0 %v2564
  %2925 = vmatprep.subr.bf16.mxu0 %v2569
  %2926 = vmatpush1.bf16.msra.mxu0 %v2568
  %2927 = vmatprep.subr.bf16.mxu0 %v2573
  %2928 = vmatpush1.bf16.msra.mxu0 %v2572
  %2929 = vmatprep.subr.bf16.mxu0 0
  %2930 = vmatpush1.bf16.msra.mxu0 0
  %2931 = vmatprep.subr.bf16.mxu0 0
  %2932 = vmatpush1.bf16.msra.mxu0 0
  %2933 = vmatprep.subr.bf16.mxu0 0
  %2934 = vmatpush1.bf16.msra.mxu0 0
  %2935 = vmatprep.subr.bf16.mxu0 0
  %2936 = vmatpush1.bf16.msra.mxu0 0
  %2937 = vmatprep.subr.bf16.mxu0 0
  %2938 = vmatpush1.bf16.msra.mxu0 0
  %2939 = vmatprep.subr.bf16.mxu0 0
  %2940 = vmatpush1.bf16.msra.mxu0 0
  %2941 = vmatprep.subr.bf16.mxu0 0
  %2942 = vmatpush1.bf16.msra.mxu0 0
  %2943 = vmatprep.subr.bf16.mxu0 0
  %2944 = vmatpush1.bf16.msra.mxu0 0
  %2945 = vmatprep.mubr.bf16.mxu0 0
  %2946 = vmatmul.mubr.bf16.gmra.mrb[0].mxu0 %v2902
  %v2947 = vpop.f32.mrb[0].mxu0
  %v2948 = vadd.f32 0.0, %v2947
  %v2949 = vpop.f32.mrb[0].mxu0
  %v2950 = vadd.f32 0.0, %v2949
  %v2951 = vpop.f32.mrb[0].mxu0
  %v2952 = vadd.f32 0.0, %v2951
  %v2953 = vpop.f32.mrb[0].mxu0
  %v2954 = vadd.f32 0.0, %v2953
  %2955 = vdwg.mxu0
  %2956 = vmatprep.subr.bf16.mxu0 %v2547
  %2957 = vmatpush1.bf16.msra.mxu0 %v2546
  %2958 = vmatprep.subr.bf16.mxu0 %v2551
  %2959 = vmatpush1.bf16.msra.mxu0 %v2550
  %2960 = vmatprep.subr.bf16.mxu0 %v2555
  %2961 = vmatpush1.bf16.msra.mxu0 %v2554
  %2962 = vmatprep.subr.bf16.mxu0 %v2559
  %2963 = vmatpush1.bf16.msra.mxu0 %v2558
  %2964 = vmatprep.subr.bf16.mxu0 %v2563
  %2965 = vmatpush1.bf16.msra.mxu0 %v2562
  %2966 = vmatprep.subr.bf16.mxu0 %v2567
  %2967 = vmatpush1.bf16.msra.mxu0 %v2566
  %2968 = vmatprep.subr.bf16.mxu0 %v2571
  %2969 = vmatpush1.bf16.msra.mxu0 %v2570
  %2970 = vmatprep.subr.bf16.mxu0 %v2575
  %2971 = vmatpush1.bf16.msra.mxu0 %v2574
  %2972 = vmatprep.subr.bf16.mxu0 0
  %2973 = vmatpush1.bf16.msra.mxu0 0
  %2974 = vmatprep.subr.bf16.mxu0 0
  %2975 = vmatpush1.bf16.msra.mxu0 0
  %2976 = vmatprep.subr.bf16.mxu0 0
  %2977 = vmatpush1.bf16.msra.mxu0 0
  %2978 = vmatprep.subr.bf16.mxu0 0
  %2979 = vmatpush1.bf16.msra.mxu0 0
  %2980 = vmatprep.subr.bf16.mxu0 0
  %2981 = vmatpush1.bf16.msra.mxu0 0
  %2982 = vmatprep.subr.bf16.mxu0 0
  %2983 = vmatpush1.bf16.msra.mxu0 0
  %2984 = vmatprep.subr.bf16.mxu0 0
  %2985 = vmatpush1.bf16.msra.mxu0 0
  %2986 = vmatprep.subr.bf16.mxu0 0
  %2987 = vmatpush1.bf16.msra.mxu0 0
  %2988 = vmatprep.mubr.bf16.mxu0 0
  %2989 = vmatmul.mubr.bf16.gmra.mrb[0].mxu0 %v2902
  %v2990 = vpop.f32.mrb[0].mxu0
  %v2991 = vadd.f32 0.0, %v2990
  %v2992 = vpop.f32.mrb[0].mxu0
  %v2993 = vadd.f32 0.0, %v2992
  %v2994 = vpop.f32.mrb[0].mxu0
  %v2995 = vadd.f32 0.0, %v2994
  %v2996 = vpop.f32.mrb[0].mxu0
  %v2997 = vadd.f32 0.0, %v2996
  %2998 = vdwg.mxu0
  %v2999 = vadd.f32 %v2905, %v2948
  %v3000 = vadd.f32 %v2906, %v2950
  %v3001 = vadd.f32 %v2907, %v2991
  %v3002 = vadd.f32 %v2908, %v2993
  %v3003 = vadd.f32 %v2909, %v2952
  %v3004 = vadd.f32 %v2910, %v2954
  %v3005 = vadd.f32 %v2911, %v2995
  %v3006 = vadd.f32 %v2912, %v2997
  %v3007 = vxor.u32 %v2999, 2147483648
  %v3008 = vxor.u32 %v3003, 2147483648
  %v3009 = vmul.f32 %v3007, 1.442695
  %v3010 = vpow.pop %v3009
  %v3011 = vmul.f32 %v3008, 1.442695
  %v3012 = vpow.pop %v3011
  %v3013 = vadd.f32 %v3010, 1.0
  %v3014 = vadd.f32 %v3012, 1.0
  %v3015 = vrcp.pop %v3013
  %v3016 = vmul.f32 1.0, %v3015
  %v3017 = vrcp.pop %v3014
  %v3018 = vmul.f32 1.0, %v3017
  %v3019 = vxor.u32 %v3000, 2147483648
  %v3020 = vxor.u32 %v3004, 2147483648
  %v3021 = vmul.f32 %v3019, 1.442695
  %v3022 = vpow.pop %v3021
  %v3023 = vmul.f32 %v3020, 1.442695
  %v3024 = vpow.pop %v3023
  %v3025 = vadd.f32 %v3022, 1.0
  %v3026 = vadd.f32 %v3024, 1.0
  %v3027 = vrcp.pop %v3025
  %v3028 = vmul.f32 1.0, %v3027
  %v3029 = vrcp.pop %v3026
  %v3030 = vmul.f32 1.0, %v3029
  %v3031 = vtanh.pop %v3001
  %v3032 = vtanh.pop %v3005
  %v3033 = vxor.u32 %v3002, 2147483648
  %v3034 = vxor.u32 %v3006, 2147483648
  %v3035 = vmul.f32 %v3033, 1.442695
  %v3036 = vpow.pop %v3035
  %v3037 = vmul.f32 %v3034, 1.442695
  %v3038 = vpow.pop %v3037
  %v3039 = vadd.f32 %v3036, 1.0
  %v3040 = vadd.f32 %v3038, 1.0
  %v3041 = vrcp.pop %v3039
  %v3042 = vmul.f32 1.0, %v3041
  %v3043 = vrcp.pop %v3040
  %v3044 = vmul.f32 1.0, %v3043
  %v3045 = vmul.f32 %v3028, %v2896
  %v3046 = vmul.f32 %v3030, %v2897
  %v3047 = vmul.f32 %v3016, %v3031
  %v3048 = vmul.f32 %v3018, %v3032
  %v3049 = vadd.f32 %v3045, %v3047
  %v3050 = vadd.f32 %v3046, %v3048
  %v3051 = vtanh.pop %v3049
  %v3052 = vtanh.pop %v3050
  %v3053 = vmul.f32 %v3042, %v3051
  %v3054 = vmul.f32 %v3044, %v3052
  %v3055 = vpack.c.bf16 %v3054, %v3053
  %s3056 = scalar_lea.vmem [#allocation4], 16
  %3057 = vst [vmem:[%s3056] sm:$0xff] %v3055
  %v3058 = vld [vmem:[%s1118] sm:$0xff]
  %v3059 = vld [vmem:[%s1118 + $0x8] sm:$0xff]
  %v3060 = vld [vmem:[%s1118 + $0x10] sm:$0xff]
  %v3061 = vld [vmem:[%s1118 + $0x18] sm:$0xff]
  %v3062 = vld [vmem:[%s1118 + $0x20] sm:$0xff]
  %v3063 = vld [vmem:[%s1118 + $0x28] sm:$0xff]
  %v3064 = vld [vmem:[%s1118 + $0x30] sm:$0xff]
  %v3065 = vld [vmem:[%s1118 + $0x38] sm:$0xff]
  %3066 = vmatprep.subr.bf16.mxu0 %v2545
  %3067 = vmatpush1.bf16.msra.mxu0 %v2544
  %3068 = vmatprep.subr.bf16.mxu0 %v2549
  %3069 = vmatpush1.bf16.msra.mxu0 %v2548
  %3070 = vmatprep.subr.bf16.mxu0 %v2553
  %3071 = vmatpush1.bf16.msra.mxu0 %v2552
  %3072 = vmatprep.subr.bf16.mxu0 %v2557
  %3073 = vmatpush1.bf16.msra.mxu0 %v2556
  %3074 = vmatprep.subr.bf16.mxu0 %v2561
  %3075 = vmatpush1.bf16.msra.mxu0 %v2560
  %3076 = vmatprep.subr.bf16.mxu0 %v2565
  %3077 = vmatpush1.bf16.msra.mxu0 %v2564
  %3078 = vmatprep.subr.bf16.mxu0 %v2569
  %3079 = vmatpush1.bf16.msra.mxu0 %v2568
  %3080 = vmatprep.subr.bf16.mxu0 %v2573
  %3081 = vmatpush1.bf16.msra.mxu0 %v2572
  %3082 = vmatprep.subr.bf16.mxu0 0
  %3083 = vmatpush1.bf16.msra.mxu0 0
  %3084 = vmatprep.subr.bf16.mxu0 0
  %3085 = vmatpush1.bf16.msra.mxu0 0
  %3086 = vmatprep.subr.bf16.mxu0 0
  %3087 = vmatpush1.bf16.msra.mxu0 0
  %3088 = vmatprep.subr.bf16.mxu0 0
  %3089 = vmatpush1.bf16.msra.mxu0 0
  %3090 = vmatprep.subr.bf16.mxu0 0
  %3091 = vmatpush1.bf16.msra.mxu0 0
  %3092 = vmatprep.subr.bf16.mxu0 0
  %3093 = vmatpush1.bf16.msra.mxu0 0
  %3094 = vmatprep.subr.bf16.mxu0 0
  %3095 = vmatpush1.bf16.msra.mxu0 0
  %3096 = vmatprep.subr.bf16.mxu0 0
  %3097 = vmatpush1.bf16.msra.mxu0 0
  %3098 = vmatprep.mubr.bf16.mxu0 0
  %3099 = vmatmul.mubr.bf16.gmra.mrb[0].mxu0 %v3055
  %v3100 = vpop.f32.mrb[0].mxu0
  %v3101 = vadd.f32 0.0, %v3100
  %v3102 = vpop.f32.mrb[0].mxu0
  %v3103 = vadd.f32 0.0, %v3102
  %v3104 = vpop.f32.mrb[0].mxu0
  %v3105 = vadd.f32 0.0, %v3104
  %v3106 = vpop.f32.mrb[0].mxu0
  %v3107 = vadd.f32 0.0, %v3106
  %3108 = vdwg.mxu0
  %3109 = vmatprep.subr.bf16.mxu0 %v2547
  %3110 = vmatpush1.bf16.msra.mxu0 %v2546
  %3111 = vmatprep.subr.bf16.mxu0 %v2551
  %3112 = vmatpush1.bf16.msra.mxu0 %v2550
  %3113 = vmatprep.subr.bf16.mxu0 %v2555
  %3114 = vmatpush1.bf16.msra.mxu0 %v2554
  %3115 = vmatprep.subr.bf16.mxu0 %v2559
  %3116 = vmatpush1.bf16.msra.mxu0 %v2558
  %3117 = vmatprep.subr.bf16.mxu0 %v2563
  %3118 = vmatpush1.bf16.msra.mxu0 %v2562
  %3119 = vmatprep.subr.bf16.mxu0 %v2567
  %3120 = vmatpush1.bf16.msra.mxu0 %v2566
  %3121 = vmatprep.subr.bf16.mxu0 %v2571
  %3122 = vmatpush1.bf16.msra.mxu0 %v2570
  %3123 = vmatprep.subr.bf16.mxu0 %v2575
  %3124 = vmatpush1.bf16.msra.mxu0 %v2574
  %3125 = vmatprep.subr.bf16.mxu0 0
  %3126 = vmatpush1.bf16.msra.mxu0 0
  %3127 = vmatprep.subr.bf16.mxu0 0
  %3128 = vmatpush1.bf16.msra.mxu0 0
  %3129 = vmatprep.subr.bf16.mxu0 0
  %3130 = vmatpush1.bf16.msra.mxu0 0
  %3131 = vmatprep.subr.bf16.mxu0 0
  %3132 = vmatpush1.bf16.msra.mxu0 0
  %3133 = vmatprep.subr.bf16.mxu0 0
  %3134 = vmatpush1.bf16.msra.mxu0 0
  %3135 = vmatprep.subr.bf16.mxu0 0
  %3136 = vmatpush1.bf16.msra.mxu0 0
  %3137 = vmatprep.subr.bf16.mxu0 0
  %3138 = vmatpush1.bf16.msra.mxu0 0
  %3139 = vmatprep.subr.bf16.mxu0 0
  %3140 = vmatpush1.bf16.msra.mxu0 0
  %3141 = vmatprep.mubr.bf16.mxu0 0
  %3142 = vmatmul.mubr.bf16.gmra.mrb[0].mxu0 %v3055
  %v3143 = vpop.f32.mrb[0].mxu0
  %v3144 = vadd.f32 0.0, %v3143
  %v3145 = vpop.f32.mrb[0].mxu0
  %v3146 = vadd.f32 0.0, %v3145
  %v3147 = vpop.f32.mrb[0].mxu0
  %v3148 = vadd.f32 0.0, %v3147
  %v3149 = vpop.f32.mrb[0].mxu0
  %v3150 = vadd.f32 0.0, %v3149
  %3151 = vdwg.mxu0
  %v3152 = vadd.f32 %v3058, %v3101
  %v3153 = vadd.f32 %v3059, %v3103
  %v3154 = vadd.f32 %v3060, %v3144
  %v3155 = vadd.f32 %v3061, %v3146
  %v3156 = vadd.f32 %v3062, %v3105
  %v3157 = vadd.f32 %v3063, %v3107
  %v3158 = vadd.f32 %v3064, %v3148
  %v3159 = vadd.f32 %v3065, %v3150
  %v3160 = vxor.u32 %v3152, 2147483648
  %v3161 = vxor.u32 %v3156, 2147483648
  %v3162 = vmul.f32 %v3160, 1.442695
  %v3163 = vpow.pop %v3162
  %v3164 = vmul.f32 %v3161, 1.442695
  %v3165 = vpow.pop %v3164
  %v3166 = vadd.f32 %v3163, 1.0
  %v3167 = vadd.f32 %v3165, 1.0
  %v3168 = vrcp.pop %v3166
  %v3169 = vmul.f32 1.0, %v3168
  %v3170 = vrcp.pop %v3167
  %v3171 = vmul.f32 1.0, %v3170
  %v3172 = vxor.u32 %v3153, 2147483648
  %v3173 = vxor.u32 %v3157, 2147483648
  %v3174 = vmul.f32 %v3172, 1.442695
  %v3175 = vpow.pop %v3174
  %v3176 = vmul.f32 %v3173, 1.442695
  %v3177 = vpow.pop %v3176
  %v3178 = vadd.f32 %v3175, 1.0
  %v3179 = vadd.f32 %v3177, 1.0
  %v3180 = vrcp.pop %v3178
  %v3181 = vmul.f32 1.0, %v3180
  %v3182 = vrcp.pop %v3179
  %v3183 = vmul.f32 1.0, %v3182
  %v3184 = vtanh.pop %v3154
  %v3185 = vtanh.pop %v3158
  %v3186 = vxor.u32 %v3155, 2147483648
  %v3187 = vxor.u32 %v3159, 2147483648
  %v3188 = vmul.f32 %v3186, 1.442695
  %v3189 = vpow.pop %v3188
  %v3190 = vmul.f32 %v3187, 1.442695
  %v3191 = vpow.pop %v3190
  %v3192 = vadd.f32 %v3189, 1.0
  %v3193 = vadd.f32 %v3191, 1.0
  %v3194 = vrcp.pop %v3192
  %v3195 = vmul.f32 1.0, %v3194
  %v3196 = vrcp.pop %v3193
  %v3197 = vmul.f32 1.0, %v3196
  %v3198 = vmul.f32 %v3181, %v3049
  %v3199 = vmul.f32 %v3183, %v3050
  %v3200 = vmul.f32 %v3169, %v3184
  %v3201 = vmul.f32 %v3171, %v3185
  %v3202 = vadd.f32 %v3198, %v3200
  %v3203 = vadd.f32 %v3199, %v3201
  %v3204 = vtanh.pop %v3202
  %v3205 = vtanh.pop %v3203
  %v3206 = vmul.f32 %v3195, %v3204
  %v3207 = vmul.f32 %v3197, %v3205
  %v3208 = vpack.c.bf16 %v3207, %v3206
  %s3209 = scalar_lea.vmem [#allocation4], 24
  %3210 = vst [vmem:[%s3209] sm:$0xff] %v3208
  %v3211 = vld [vmem:[%s1274] sm:$0xff]
  %v3212 = vld [vmem:[%s1274 + $0x8] sm:$0xff]
  %v3213 = vld [vmem:[%s1274 + $0x10] sm:$0xff]
  %v3214 = vld [vmem:[%s1274 + $0x18] sm:$0xff]
  %v3215 = vld [vmem:[%s1274 + $0x20] sm:$0xff]
  %v3216 = vld [vmem:[%s1274 + $0x28] sm:$0xff]
  %v3217 = vld [vmem:[%s1274 + $0x30] sm:$0xff]
  %v3218 = vld [vmem:[%s1274 + $0x38] sm:$0xff]
  %3219 = vmatprep.subr.bf16.mxu0 %v2545
  %3220 = vmatpush1.bf16.msra.mxu0 %v2544
  %3221 = vmatprep.subr.bf16.mxu0 %v2549
  %3222 = vmatpush1.bf16.msra.mxu0 %v2548
  %3223 = vmatprep.subr.bf16.mxu0 %v2553
  %3224 = vmatpush1.bf16.msra.mxu0 %v2552
  %3225 = vmatprep.subr.bf16.mxu0 %v2557
  %3226 = vmatpush1.bf16.msra.mxu0 %v2556
  %3227 = vmatprep.subr.bf16.mxu0 %v2561
  %3228 = vmatpush1.bf16.msra.mxu0 %v2560
  %3229 = vmatprep.subr.bf16.mxu0 %v2565
  %3230 = vmatpush1.bf16.msra.mxu0 %v2564
  %3231 = vmatprep.subr.bf16.mxu0 %v2569
  %3232 = vmatpush1.bf16.msra.mxu0 %v2568
  %3233 = vmatprep.subr.bf16.mxu0 %v2573
  %3234 = vmatpush1.bf16.msra.mxu0 %v2572
  %3235 = vmatprep.subr.bf16.mxu0 0
  %3236 = vmatpush1.bf16.msra.mxu0 0
  %3237 = vmatprep.subr.bf16.mxu0 0
  %3238 = vmatpush1.bf16.msra.mxu0 0
  %3239 = vmatprep.subr.bf16.mxu0 0
  %3240 = vmatpush1.bf16.msra.mxu0 0
  %3241 = vmatprep.subr.bf16.mxu0 0
  %3242 = vmatpush1.bf16.msra.mxu0 0
  %3243 = vmatprep.subr.bf16.mxu0 0
  %3244 = vmatpush1.bf16.msra.mxu0 0
  %3245 = vmatprep.subr.bf16.mxu0 0
  %3246 = vmatpush1.bf16.msra.mxu0 0
  %3247 = vmatprep.subr.bf16.mxu0 0
  %3248 = vmatpush1.bf16.msra.mxu0 0
  %3249 = vmatprep.subr.bf16.mxu0 0
  %3250 = vmatpush1.bf16.msra.mxu0 0
  %3251 = vmatprep.mubr.bf16.mxu0 0
  %3252 = vmatmul.mubr.bf16.gmra.mrb[0].mxu0 %v3208
  %v3253 = vpop.f32.mrb[0].mxu0
  %v3254 = vadd.f32 0.0, %v3253
  %v3255 = vpop.f32.mrb[0].mxu0
  %v3256 = vadd.f32 0.0, %v3255
  %v3257 = vpop.f32.mrb[0].mxu0
  %v3258 = vadd.f32 0.0, %v3257
  %v3259 = vpop.f32.mrb[0].mxu0
  %v3260 = vadd.f32 0.0, %v3259
  %3261 = vdwg.mxu0
  %3262 = vmatprep.subr.bf16.mxu0 %v2547
  %3263 = vmatpush1.bf16.msra.mxu0 %v2546
  %3264 = vmatprep.subr.bf16.mxu0 %v2551
  %3265 = vmatpush1.bf16.msra.mxu0 %v2550
  %3266 = vmatprep.subr.bf16.mxu0 %v2555
  %3267 = vmatpush1.bf16.msra.mxu0 %v2554
  %3268 = vmatprep.subr.bf16.mxu0 %v2559
  %3269 = vmatpush1.bf16.msra.mxu0 %v2558
  %3270 = vmatprep.subr.bf16.mxu0 %v2563
  %3271 = vmatpush1.bf16.msra.mxu0 %v2562
  %3272 = vmatprep.subr.bf16.mxu0 %v2567
  %3273 = vmatpush1.bf16.msra.mxu0 %v2566
  %3274 = vmatprep.subr.bf16.mxu0 %v2571
  %3275 = vmatpush1.bf16.msra.mxu0 %v2570
  %3276 = vmatprep.subr.bf16.mxu0 %v2575
  %3277 = vmatpush1.bf16.msra.mxu0 %v2574
  %3278 = vmatprep.subr.bf16.mxu0 0
  %3279 = vmatpush1.bf16.msra.mxu0 0
  %3280 = vmatprep.subr.bf16.mxu0 0
  %3281 = vmatpush1.bf16.msra.mxu0 0
  %3282 = vmatprep.subr.bf16.mxu0 0
  %3283 = vmatpush1.bf16.msra.mxu0 0
  %3284 = vmatprep.subr.bf16.mxu0 0
  %3285 = vmatpush1.bf16.msra.mxu0 0
  %3286 = vmatprep.subr.bf16.mxu0 0
  %3287 = vmatpush1.bf16.msra.mxu0 0
  %3288 = vmatprep.subr.bf16.mxu0 0
  %3289 = vmatpush1.bf16.msra.mxu0 0
  %3290 = vmatprep.subr.bf16.mxu0 0
  %3291 = vmatpush1.bf16.msra.mxu0 0
  %3292 = vmatprep.subr.bf16.mxu0 0
  %3293 = vmatpush1.bf16.msra.mxu0 0
  %3294 = vmatprep.mubr.bf16.mxu0 0
  %3295 = vmatmul.mubr.bf16.gmra.mrb[0].mxu0 %v3208
  %v3296 = vpop.f32.mrb[0].mxu0
  %v3297 = vadd.f32 0.0, %v3296
  %v3298 = vpop.f32.mrb[0].mxu0
  %v3299 = vadd.f32 0.0, %v3298
  %v3300 = vpop.f32.mrb[0].mxu0
  %v3301 = vadd.f32 0.0, %v3300
  %v3302 = vpop.f32.mrb[0].mxu0
  %v3303 = vadd.f32 0.0, %v3302
  %3304 = vdwg.mxu0
  %v3305 = vadd.f32 %v3211, %v3254
  %v3306 = vadd.f32 %v3212, %v3256
  %v3307 = vadd.f32 %v3213, %v3297
  %v3308 = vadd.f32 %v3214, %v3299
  %v3309 = vadd.f32 %v3215, %v3258
  %v3310 = vadd.f32 %v3216, %v3260
  %v3311 = vadd.f32 %v3217, %v3301
  %v3312 = vadd.f32 %v3218, %v3303
  %v3313 = vxor.u32 %v3305, 2147483648
  %v3314 = vxor.u32 %v3309, 2147483648
  %v3315 = vmul.f32 %v3313, 1.442695
  %v3316 = vpow.pop %v3315
  %v3317 = vmul.f32 %v3314, 1.442695
  %v3318 = vpow.pop %v3317
  %v3319 = vadd.f32 %v3316, 1.0
  %v3320 = vadd.f32 %v3318, 1.0
  %v3321 = vrcp.pop %v3319
  %v3322 = vmul.f32 1.0, %v3321
  %v3323 = vrcp.pop %v3320
  %v3324 = vmul.f32 1.0, %v3323
  %v3325 = vxor.u32 %v3306, 2147483648
  %v3326 = vxor.u32 %v3310, 2147483648
  %v3327 = vmul.f32 %v3325, 1.442695
  %v3328 = vpow.pop %v3327
  %v3329 = vmul.f32 %v3326, 1.442695
  %v3330 = vpow.pop %v3329
  %v3331 = vadd.f32 %v3328, 1.0
  %v3332 = vadd.f32 %v3330, 1.0
  %v3333 = vrcp.pop %v3331
  %v3334 = vmul.f32 1.0, %v3333
  %v3335 = vrcp.pop %v3332
  %v3336 = vmul.f32 1.0, %v3335
  %v3337 = vtanh.pop %v3307
  %v3338 = vtanh.pop %v3311
  %v3339 = vxor.u32 %v3308, 2147483648
  %v3340 = vxor.u32 %v3312, 2147483648
  %v3341 = vmul.f32 %v3339, 1.442695
  %v3342 = vpow.pop %v3341
  %v3343 = vmul.f32 %v3340, 1.442695
  %v3344 = vpow.pop %v3343
  %v3345 = vadd.f32 %v3342, 1.0
  %v3346 = vadd.f32 %v3344, 1.0
  %v3347 = vrcp.pop %v3345
  %v3348 = vmul.f32 1.0, %v3347
  %v3349 = vrcp.pop %v3346
  %v3350 = vmul.f32 1.0, %v3349
  %v3351 = vmul.f32 %v3334, %v3202
  %v3352 = vmul.f32 %v3336, %v3203
  %v3353 = vmul.f32 %v3322, %v3337
  %v3354 = vmul.f32 %v3324, %v3338
  %v3355 = vadd.f32 %v3351, %v3353
  %v3356 = vadd.f32 %v3352, %v3354
  %v3357 = vtanh.pop %v3355
  %v3358 = vtanh.pop %v3356
  %v3359 = vmul.f32 %v3348, %v3357
  %v3360 = vmul.f32 %v3350, %v3358
  %v3361 = vpack.c.bf16 %v3360, %v3359
  %s3362 = scalar_lea.vmem [#allocation4], 32
  %3363 = vst [vmem:[%s3362] sm:$0xff] %v3361
  %v3364 = vld [vmem:[%s1430] sm:$0xff]
  %v3365 = vld [vmem:[%s1430 + $0x8] sm:$0xff]
  %v3366 = vld [vmem:[%s1430 + $0x10] sm:$0xff]
  %v3367 = vld [vmem:[%s1430 + $0x18] sm:$0xff]
  %v3368 = vld [vmem:[%s1430 + $0x20] sm:$0xff]
  %v3369 = vld [vmem:[%s1430 + $0x28] sm:$0xff]
  %v3370 = vld [vmem:[%s1430 + $0x30] sm:$0xff]
  %v3371 = vld [vmem:[%s1430 + $0x38] sm:$0xff]
  %3372 = vmatprep.subr.bf16.mxu0 %v2545
  %3373 = vmatpush1.bf16.msra.mxu0 %v2544
  %3374 = vmatprep.subr.bf16.mxu0 %v2549
  %3375 = vmatpush1.bf16.msra.mxu0 %v2548
  %3376 = vmatprep.subr.bf16.mxu0 %v2553
  %3377 = vmatpush1.bf16.msra.mxu0 %v2552
  %3378 = vmatprep.subr.bf16.mxu0 %v2557
  %3379 = vmatpush1.bf16.msra.mxu0 %v2556
  %3380 = vmatprep.subr.bf16.mxu0 %v2561
  %3381 = vmatpush1.bf16.msra.mxu0 %v2560
  %3382 = vmatprep.subr.bf16.mxu0 %v2565
  %3383 = vmatpush1.bf16.msra.mxu0 %v2564
  %3384 = vmatprep.subr.bf16.mxu0 %v2569
  %3385 = vmatpush1.bf16.msra.mxu0 %v2568
  %3386 = vmatprep.subr.bf16.mxu0 %v2573
  %3387 = vmatpush1.bf16.msra.mxu0 %v2572
  %3388 = vmatprep.subr.bf16.mxu0 0
  %3389 = vmatpush1.bf16.msra.mxu0 0
  %3390 = vmatprep.subr.bf16.mxu0 0
  %3391 = vmatpush1.bf16.msra.mxu0 0
  %3392 = vmatprep.subr.bf16.mxu0 0
  %3393 = vmatpush1.bf16.msra.mxu0 0
  %3394 = vmatprep.subr.bf16.mxu0 0
  %3395 = vmatpush1.bf16.msra.mxu0 0
  %3396 = vmatprep.subr.bf16.mxu0 0
  %3397 = vmatpush1.bf16.msra.mxu0 0
  %3398 = vmatprep.subr.bf16.mxu0 0
  %3399 = vmatpush1.bf16.msra.mxu0 0
  %3400 = vmatprep.subr.bf16.mxu0 0
  %3401 = vmatpush1.bf16.msra.mxu0 0
  %3402 = vmatprep.subr.bf16.mxu0 0
  %3403 = vmatpush1.bf16.msra.mxu0 0
  %3404 = vmatprep.mubr.bf16.mxu0 0
  %3405 = vmatmul.mubr.bf16.gmra.mrb[0].mxu0 %v3361
  %v3406 = vpop.f32.mrb[0].mxu0
  %v3407 = vadd.f32 0.0, %v3406
  %v3408 = vpop.f32.mrb[0].mxu0
  %v3409 = vadd.f32 0.0, %v3408
  %v3410 = vpop.f32.mrb[0].mxu0
  %v3411 = vadd.f32 0.0, %v3410
  %v3412 = vpop.f32.mrb[0].mxu0
  %v3413 = vadd.f32 0.0, %v3412
  %3414 = vdwg.mxu0
  %3415 = vmatprep.subr.bf16.mxu0 %v2547
  %3416 = vmatpush1.bf16.msra.mxu0 %v2546
  %3417 = vmatprep.subr.bf16.mxu0 %v2551
  %3418 = vmatpush1.bf16.msra.mxu0 %v2550
  %3419 = vmatprep.subr.bf16.mxu0 %v2555
  %3420 = vmatpush1.bf16.msra.mxu0 %v2554
  %3421 = vmatprep.subr.bf16.mxu0 %v2559
  %3422 = vmatpush1.bf16.msra.mxu0 %v2558
  %3423 = vmatprep.subr.bf16.mxu0 %v2563
  %3424 = vmatpush1.bf16.msra.mxu0 %v2562
  %3425 = vmatprep.subr.bf16.mxu0 %v2567
  %3426 = vmatpush1.bf16.msra.mxu0 %v2566
  %3427 = vmatprep.subr.bf16.mxu0 %v2571
  %3428 = vmatpush1.bf16.msra.mxu0 %v2570
  %3429 = vmatprep.subr.bf16.mxu0 %v2575
  %3430 = vmatpush1.bf16.msra.mxu0 %v2574
  %3431 = vmatprep.subr.bf16.mxu0 0
  %3432 = vmatpush1.bf16.msra.mxu0 0
  %3433 = vmatprep.subr.bf16.mxu0 0
  %3434 = vmatpush1.bf16.msra.mxu0 0
  %3435 = vmatprep.subr.bf16.mxu0 0
  %3436 = vmatpush1.bf16.msra.mxu0 0
  %3437 = vmatprep.subr.bf16.mxu0 0
  %3438 = vmatpush1.bf16.msra.mxu0 0
  %3439 = vmatprep.subr.bf16.mxu0 0
  %3440 = vmatpush1.bf16.msra.mxu0 0
  %3441 = vmatprep.subr.bf16.mxu0 0
  %3442 = vmatpush1.bf16.msra.mxu0 0
  %3443 = vmatprep.subr.bf16.mxu0 0
  %3444 = vmatpush1.bf16.msra.mxu0 0
  %3445 = vmatprep.subr.bf16.mxu0 0
  %3446 = vmatpush1.bf16.msra.mxu0 0
  %3447 = vmatprep.mubr.bf16.mxu0 0
  %3448 = vmatmul.mubr.bf16.gmra.mrb[0].mxu0 %v3361
  %v3449 = vpop.f32.mrb[0].mxu0
  %v3450 = vadd.f32 0.0, %v3449
  %v3451 = vpop.f32.mrb[0].mxu0
  %v3452 = vadd.f32 0.0, %v3451
  %v3453 = vpop.f32.mrb[0].mxu0
  %v3454 = vadd.f32 0.0, %v3453
  %v3455 = vpop.f32.mrb[0].mxu0
  %v3456 = vadd.f32 0.0, %v3455
  %3457 = vdwg.mxu0
  %v3458 = vadd.f32 %v3364, %v3407
  %v3459 = vadd.f32 %v3365, %v3409
  %v3460 = vadd.f32 %v3366, %v3450
  %v3461 = vadd.f32 %v3367, %v3452
  %v3462 = vadd.f32 %v3368, %v3411
  %v3463 = vadd.f32 %v3369, %v3413
  %v3464 = vadd.f32 %v3370, %v3454
  %v3465 = vadd.f32 %v3371, %v3456
  %v3466 = vxor.u32 %v3458, 2147483648
  %v3467 = vxor.u32 %v3462, 2147483648
  %v3468 = vmul.f32 %v3466, 1.442695
  %v3469 = vpow.pop %v3468
  %v3470 = vmul.f32 %v3467, 1.442695
  %v3471 = vpow.pop %v3470
  %v3472 = vadd.f32 %v3469, 1.0
  %v3473 = vadd.f32 %v3471, 1.0
  %v3474 = vrcp.pop %v3472
  %v3475 = vmul.f32 1.0, %v3474
  %v3476 = vrcp.pop %v3473
  %v3477 = vmul.f32 1.0, %v3476
  %v3478 = vxor.u32 %v3459, 2147483648
  %v3479 = vxor.u32 %v3463, 2147483648
  %v3480 = vmul.f32 %v3478, 1.442695
  %v3481 = vpow.pop %v3480
  %v3482 = vmul.f32 %v3479, 1.442695
  %v3483 = vpow.pop %v3482
  %v3484 = vadd.f32 %v3481, 1.0
  %v3485 = vadd.f32 %v3483, 1.0
  %v3486 = vrcp.pop %v3484
  %v3487 = vmul.f32 1.0, %v3486
  %v3488 = vrcp.pop %v3485
  %v3489 = vmul.f32 1.0, %v3488
  %v3490 = vtanh.pop %v3460
  %v3491 = vtanh.pop %v3464
  %v3492 = vxor.u32 %v3461, 2147483648
  %v3493 = vxor.u32 %v3465, 2147483648
  %v3494 = vmul.f32 %v3492, 1.442695
  %v3495 = vpow.pop %v3494
  %v3496 = vmul.f32 %v3493, 1.442695
  %v3497 = vpow.pop %v3496
  %v3498 = vadd.f32 %v3495, 1.0
  %v3499 = vadd.f32 %v3497, 1.0
  %v3500 = vrcp.pop %v3498
  %v3501 = vmul.f32 1.0, %v3500
  %v3502 = vrcp.pop %v3499
  %v3503 = vmul.f32 1.0, %v3502
  %v3504 = vmul.f32 %v3487, %v3355
  %v3505 = vmul.f32 %v3489, %v3356
  %v3506 = vmul.f32 %v3475, %v3490
  %v3507 = vmul.f32 %v3477, %v3491
  %v3508 = vadd.f32 %v3504, %v3506
  %v3509 = vadd.f32 %v3505, %v3507
  %v3510 = vtanh.pop %v3508
  %v3511 = vtanh.pop %v3509
  %v3512 = vmul.f32 %v3501, %v3510
  %v3513 = vmul.f32 %v3503, %v3511
  %v3514 = vpack.c.bf16 %v3513, %v3512
  %s3515 = scalar_lea.vmem [#allocation4], 40
  %3516 = vst [vmem:[%s3515] sm:$0xff] %v3514
  %v3517 = vld [vmem:[%s1586] sm:$0xff]
  %v3518 = vld [vmem:[%s1586 + $0x8] sm:$0xff]
  %v3519 = vld [vmem:[%s1586 + $0x10] sm:$0xff]
  %v3520 = vld [vmem:[%s1586 + $0x18] sm:$0xff]
  %v3521 = vld [vmem:[%s1586 + $0x20] sm:$0xff]
  %v3522 = vld [vmem:[%s1586 + $0x28] sm:$0xff]
  %v3523 = vld [vmem:[%s1586 + $0x30] sm:$0xff]
  %v3524 = vld [vmem:[%s1586 + $0x38] sm:$0xff]
  %3525 = vmatprep.subr.bf16.mxu0 %v2545
  %3526 = vmatpush1.bf16.msra.mxu0 %v2544
  %3527 = vmatprep.subr.bf16.mxu0 %v2549
  %3528 = vmatpush1.bf16.msra.mxu0 %v2548
  %3529 = vmatprep.subr.bf16.mxu0 %v2553
  %3530 = vmatpush1.bf16.msra.mxu0 %v2552
  %3531 = vmatprep.subr.bf16.mxu0 %v2557
  %3532 = vmatpush1.bf16.msra.mxu0 %v2556
  %3533 = vmatprep.subr.bf16.mxu0 %v2561
  %3534 = vmatpush1.bf16.msra.mxu0 %v2560
  %3535 = vmatprep.subr.bf16.mxu0 %v2565
  %3536 = vmatpush1.bf16.msra.mxu0 %v2564
  %3537 = vmatprep.subr.bf16.mxu0 %v2569
  %3538 = vmatpush1.bf16.msra.mxu0 %v2568
  %3539 = vmatprep.subr.bf16.mxu0 %v2573
  %3540 = vmatpush1.bf16.msra.mxu0 %v2572
  %3541 = vmatprep.subr.bf16.mxu0 0
  %3542 = vmatpush1.bf16.msra.mxu0 0
  %3543 = vmatprep.subr.bf16.mxu0 0
  %3544 = vmatpush1.bf16.msra.mxu0 0
  %3545 = vmatprep.subr.bf16.mxu0 0
  %3546 = vmatpush1.bf16.msra.mxu0 0
  %3547 = vmatprep.subr.bf16.mxu0 0
  %3548 = vmatpush1.bf16.msra.mxu0 0
  %3549 = vmatprep.subr.bf16.mxu0 0
  %3550 = vmatpush1.bf16.msra.mxu0 0
  %3551 = vmatprep.subr.bf16.mxu0 0
  %3552 = vmatpush1.bf16.msra.mxu0 0
  %3553 = vmatprep.subr.bf16.mxu0 0
  %3554 = vmatpush1.bf16.msra.mxu0 0
  %3555 = vmatprep.subr.bf16.mxu0 0
  %3556 = vmatpush1.bf16.msra.mxu0 0
  %3557 = vmatprep.mubr.bf16.mxu0 0
  %3558 = vmatmul.mubr.bf16.gmra.mrb[0].mxu0 %v3514
  %v3559 = vpop.f32.mrb[0].mxu0
  %v3560 = vadd.f32 0.0, %v3559
  %v3561 = vpop.f32.mrb[0].mxu0
  %v3562 = vadd.f32 0.0, %v3561
  %v3563 = vpop.f32.mrb[0].mxu0
  %v3564 = vadd.f32 0.0, %v3563
  %v3565 = vpop.f32.mrb[0].mxu0
  %v3566 = vadd.f32 0.0, %v3565
  %3567 = vdwg.mxu0
  %3568 = vmatprep.subr.bf16.mxu0 %v2547
  %3569 = vmatpush1.bf16.msra.mxu0 %v2546
  %3570 = vmatprep.subr.bf16.mxu0 %v2551
  %3571 = vmatpush1.bf16.msra.mxu0 %v2550
  %3572 = vmatprep.subr.bf16.mxu0 %v2555
  %3573 = vmatpush1.bf16.msra.mxu0 %v2554
  %3574 = vmatprep.subr.bf16.mxu0 %v2559
  %3575 = vmatpush1.bf16.msra.mxu0 %v2558
  %3576 = vmatprep.subr.bf16.mxu0 %v2563
  %3577 = vmatpush1.bf16.msra.mxu0 %v2562
  %3578 = vmatprep.subr.bf16.mxu0 %v2567
  %3579 = vmatpush1.bf16.msra.mxu0 %v2566
  %3580 = vmatprep.subr.bf16.mxu0 %v2571
  %3581 = vmatpush1.bf16.msra.mxu0 %v2570
  %3582 = vmatprep.subr.bf16.mxu0 %v2575
  %3583 = vmatpush1.bf16.msra.mxu0 %v2574
  %3584 = vmatprep.subr.bf16.mxu0 0
  %3585 = vmatpush1.bf16.msra.mxu0 0
  %3586 = vmatprep.subr.bf16.mxu0 0
  %3587 = vmatpush1.bf16.msra.mxu0 0
  %3588 = vmatprep.subr.bf16.mxu0 0
  %3589 = vmatpush1.bf16.msra.mxu0 0
  %3590 = vmatprep.subr.bf16.mxu0 0
  %3591 = vmatpush1.bf16.msra.mxu0 0
  %3592 = vmatprep.subr.bf16.mxu0 0
  %3593 = vmatpush1.bf16.msra.mxu0 0
  %3594 = vmatprep.subr.bf16.mxu0 0
  %3595 = vmatpush1.bf16.msra.mxu0 0
  %3596 = vmatprep.subr.bf16.mxu0 0
  %3597 = vmatpush1.bf16.msra.mxu0 0
  %3598 = vmatprep.subr.bf16.mxu0 0
  %3599 = vmatpush1.bf16.msra.mxu0 0
  %3600 = vmatprep.mubr.bf16.mxu0 0
  %3601 = vmatmul.mubr.bf16.gmra.mrb[0].mxu0 %v3514
  %v3602 = vpop.f32.mrb[0].mxu0
  %v3603 = vadd.f32 0.0, %v3602
  %v3604 = vpop.f32.mrb[0].mxu0
  %v3605 = vadd.f32 0.0, %v3604
  %v3606 = vpop.f32.mrb[0].mxu0
  %v3607 = vadd.f32 0.0, %v3606
  %v3608 = vpop.f32.mrb[0].mxu0
  %v3609 = vadd.f32 0.0, %v3608
  %3610 = vdwg.mxu0
  %v3611 = vadd.f32 %v3517, %v3560
  %v3612 = vadd.f32 %v3518, %v3562
  %v3613 = vadd.f32 %v3519, %v3603
  %v3614 = vadd.f32 %v3520, %v3605
  %v3615 = vadd.f32 %v3521, %v3564
  %v3616 = vadd.f32 %v3522, %v3566
  %v3617 = vadd.f32 %v3523, %v3607
  %v3618 = vadd.f32 %v3524, %v3609
  %v3619 = vxor.u32 %v3611, 2147483648
  %v3620 = vxor.u32 %v3615, 2147483648
  %v3621 = vmul.f32 %v3619, 1.442695
  %v3622 = vpow.pop %v3621
  %v3623 = vmul.f32 %v3620, 1.442695
  %v3624 = vpow.pop %v3623
  %v3625 = vadd.f32 %v3622, 1.0
  %v3626 = vadd.f32 %v3624, 1.0
  %v3627 = vrcp.pop %v3625
  %v3628 = vmul.f32 1.0, %v3627
  %v3629 = vrcp.pop %v3626
  %v3630 = vmul.f32 1.0, %v3629
  %v3631 = vxor.u32 %v3612, 2147483648
  %v3632 = vxor.u32 %v3616, 2147483648
  %v3633 = vmul.f32 %v3631, 1.442695
  %v3634 = vpow.pop %v3633
  %v3635 = vmul.f32 %v3632, 1.442695
  %v3636 = vpow.pop %v3635
  %v3637 = vadd.f32 %v3634, 1.0
  %v3638 = vadd.f32 %v3636, 1.0
  %v3639 = vrcp.pop %v3637
  %v3640 = vmul.f32 1.0, %v3639
  %v3641 = vrcp.pop %v3638
  %v3642 = vmul.f32 1.0, %v3641
  %v3643 = vtanh.pop %v3613
  %v3644 = vtanh.pop %v3617
  %v3645 = vxor.u32 %v3614, 2147483648
  %v3646 = vxor.u32 %v3618, 2147483648
  %v3647 = vmul.f32 %v3645, 1.442695
  %v3648 = vpow.pop %v3647
  %v3649 = vmul.f32 %v3646, 1.442695
  %v3650 = vpow.pop %v3649
  %v3651 = vadd.f32 %v3648, 1.0
  %v3652 = vadd.f32 %v3650, 1.0
  %v3653 = vrcp.pop %v3651
  %v3654 = vmul.f32 1.0, %v3653
  %v3655 = vrcp.pop %v3652
  %v3656 = vmul.f32 1.0, %v3655
  %v3657 = vmul.f32 %v3640, %v3508
  %v3658 = vmul.f32 %v3642, %v3509
  %v3659 = vmul.f32 %v3628, %v3643
  %v3660 = vmul.f32 %v3630, %v3644
  %v3661 = vadd.f32 %v3657, %v3659
  %v3662 = vadd.f32 %v3658, %v3660
  %v3663 = vtanh.pop %v3661
  %v3664 = vtanh.pop %v3662
  %v3665 = vmul.f32 %v3654, %v3663
  %v3666 = vmul.f32 %v3656, %v3664
  %v3667 = vpack.c.bf16 %v3666, %v3665
  %s3668 = scalar_lea.vmem [#allocation4], 48
  %3669 = vst [vmem:[%s3668] sm:$0xff] %v3667
  %v3670 = vld [vmem:[%s1742] sm:$0xff]
  %v3671 = vld [vmem:[%s1742 + $0x8] sm:$0xff]
  %v3672 = vld [vmem:[%s1742 + $0x10] sm:$0xff]
  %v3673 = vld [vmem:[%s1742 + $0x18] sm:$0xff]
  %v3674 = vld [vmem:[%s1742 + $0x20] sm:$0xff]
  %v3675 = vld [vmem:[%s1742 + $0x28] sm:$0xff]
  %v3676 = vld [vmem:[%s1742 + $0x30] sm:$0xff]
  %v3677 = vld [vmem:[%s1742 + $0x38] sm:$0xff]
  %3678 = vmatprep.subr.bf16.mxu0 %v2545
  %3679 = vmatpush1.bf16.msra.mxu0 %v2544
  %3680 = vmatprep.subr.bf16.mxu0 %v2549
  %3681 = vmatpush1.bf16.msra.mxu0 %v2548
  %3682 = vmatprep.subr.bf16.mxu0 %v2553
  %3683 = vmatpush1.bf16.msra.mxu0 %v2552
  %3684 = vmatprep.subr.bf16.mxu0 %v2557
  %3685 = vmatpush1.bf16.msra.mxu0 %v2556
  %3686 = vmatprep.subr.bf16.mxu0 %v2561
  %3687 = vmatpush1.bf16.msra.mxu0 %v2560
  %3688 = vmatprep.subr.bf16.mxu0 %v2565
  %3689 = vmatpush1.bf16.msra.mxu0 %v2564
  %3690 = vmatprep.subr.bf16.mxu0 %v2569
  %3691 = vmatpush1.bf16.msra.mxu0 %v2568
  %3692 = vmatprep.subr.bf16.mxu0 %v2573
  %3693 = vmatpush1.bf16.msra.mxu0 %v2572
  %3694 = vmatprep.subr.bf16.mxu0 0
  %3695 = vmatpush1.bf16.msra.mxu0 0
  %3696 = vmatprep.subr.bf16.mxu0 0
  %3697 = vmatpush1.bf16.msra.mxu0 0
  %3698 = vmatprep.subr.bf16.mxu0 0
  %3699 = vmatpush1.bf16.msra.mxu0 0
  %3700 = vmatprep.subr.bf16.mxu0 0
  %3701 = vmatpush1.bf16.msra.mxu0 0
  %3702 = vmatprep.subr.bf16.mxu0 0
  %3703 = vmatpush1.bf16.msra.mxu0 0
  %3704 = vmatprep.subr.bf16.mxu0 0
  %3705 = vmatpush1.bf16.msra.mxu0 0
  %3706 = vmatprep.subr.bf16.mxu0 0
  %3707 = vmatpush1.bf16.msra.mxu0 0
  %3708 = vmatprep.subr.bf16.mxu0 0
  %3709 = vmatpush1.bf16.msra.mxu0 0
  %3710 = vmatprep.mubr.bf16.mxu0 0
  %3711 = vmatmul.mubr.bf16.gmra.mrb[0].mxu0 %v3667
  %v3712 = vpop.f32.mrb[0].mxu0
  %v3713 = vadd.f32 0.0, %v3712
  %v3714 = vpop.f32.mrb[0].mxu0
  %v3715 = vadd.f32 0.0, %v3714
  %v3716 = vpop.f32.mrb[0].mxu0
  %v3717 = vadd.f32 0.0, %v3716
  %v3718 = vpop.f32.mrb[0].mxu0
  %v3719 = vadd.f32 0.0, %v3718
  %3720 = vdwg.mxu0
  %3721 = vmatprep.subr.bf16.mxu0 %v2547
  %3722 = vmatpush1.bf16.msra.mxu0 %v2546
  %3723 = vmatprep.subr.bf16.mxu0 %v2551
  %3724 = vmatpush1.bf16.msra.mxu0 %v2550
  %3725 = vmatprep.subr.bf16.mxu0 %v2555
  %3726 = vmatpush1.bf16.msra.mxu0 %v2554
  %3727 = vmatprep.subr.bf16.mxu0 %v2559
  %3728 = vmatpush1.bf16.msra.mxu0 %v2558
  %3729 = vmatprep.subr.bf16.mxu0 %v2563
  %3730 = vmatpush1.bf16.msra.mxu0 %v2562
  %3731 = vmatprep.subr.bf16.mxu0 %v2567
  %3732 = vmatpush1.bf16.msra.mxu0 %v2566
  %3733 = vmatprep.subr.bf16.mxu0 %v2571
  %3734 = vmatpush1.bf16.msra.mxu0 %v2570
  %3735 = vmatprep.subr.bf16.mxu0 %v2575
  %3736 = vmatpush1.bf16.msra.mxu0 %v2574
  %3737 = vmatprep.subr.bf16.mxu0 0
  %3738 = vmatpush1.bf16.msra.mxu0 0
  %3739 = vmatprep.subr.bf16.mxu0 0
  %3740 = vmatpush1.bf16.msra.mxu0 0
  %3741 = vmatprep.subr.bf16.mxu0 0
  %3742 = vmatpush1.bf16.msra.mxu0 0
  %3743 = vmatprep.subr.bf16.mxu0 0
  %3744 = vmatpush1.bf16.msra.mxu0 0
  %3745 = vmatprep.subr.bf16.mxu0 0
  %3746 = vmatpush1.bf16.msra.mxu0 0
  %3747 = vmatprep.subr.bf16.mxu0 0
  %3748 = vmatpush1.bf16.msra.mxu0 0
  %3749 = vmatprep.subr.bf16.mxu0 0
  %3750 = vmatpush1.bf16.msra.mxu0 0
  %3751 = vmatprep.subr.bf16.mxu0 0
  %3752 = vmatpush1.bf16.msra.mxu0 0
  %3753 = vmatprep.mubr.bf16.mxu0 0
  %3754 = vmatmul.mubr.bf16.gmra.mrb[0].mxu0 %v3667
  %v3755 = vpop.f32.mrb[0].mxu0
  %v3756 = vadd.f32 0.0, %v3755
  %v3757 = vpop.f32.mrb[0].mxu0
  %v3758 = vadd.f32 0.0, %v3757
  %v3759 = vpop.f32.mrb[0].mxu0
  %v3760 = vadd.f32 0.0, %v3759
  %v3761 = vpop.f32.mrb[0].mxu0
  %v3762 = vadd.f32 0.0, %v3761
  %3763 = vdwg.mxu0
  %v3764 = vadd.f32 %v3670, %v3713
  %v3765 = vadd.f32 %v3671, %v3715
  %v3766 = vadd.f32 %v3672, %v3756
  %v3767 = vadd.f32 %v3673, %v3758
  %v3768 = vadd.f32 %v3674, %v3717
  %v3769 = vadd.f32 %v3675, %v3719
  %v3770 = vadd.f32 %v3676, %v3760
  %v3771 = vadd.f32 %v3677, %v3762
  %v3772 = vxor.u32 %v3764, 2147483648
  %v3773 = vxor.u32 %v3768, 2147483648
  %v3774 = vmul.f32 %v3772, 1.442695
  %v3775 = vpow.pop %v3774
  %v3776 = vmul.f32 %v3773, 1.442695
  %v3777 = vpow.pop %v3776
  %v3778 = vadd.f32 %v3775, 1.0
  %v3779 = vadd.f32 %v3777, 1.0
  %v3780 = vrcp.pop %v3778
  %v3781 = vmul.f32 1.0, %v3780
  %v3782 = vrcp.pop %v3779
  %v3783 = vmul.f32 1.0, %v3782
  %v3784 = vxor.u32 %v3765, 2147483648
  %v3785 = vxor.u32 %v3769, 2147483648
  %v3786 = vmul.f32 %v3784, 1.442695
  %v3787 = vpow.pop %v3786
  %v3788 = vmul.f32 %v3785, 1.442695
  %v3789 = vpow.pop %v3788
  %v3790 = vadd.f32 %v3787, 1.0
  %v3791 = vadd.f32 %v3789, 1.0
  %v3792 = vrcp.pop %v3790
  %v3793 = vmul.f32 1.0, %v3792
  %v3794 = vrcp.pop %v3791
  %v3795 = vmul.f32 1.0, %v3794
  %v3796 = vtanh.pop %v3766
  %v3797 = vtanh.pop %v3770
  %v3798 = vxor.u32 %v3767, 2147483648
  %v3799 = vxor.u32 %v3771, 2147483648
  %v3800 = vmul.f32 %v3798, 1.442695
  %v3801 = vpow.pop %v3800
  %v3802 = vmul.f32 %v3799, 1.442695
  %v3803 = vpow.pop %v3802
  %v3804 = vadd.f32 %v3801, 1.0
  %v3805 = vadd.f32 %v3803, 1.0
  %v3806 = vrcp.pop %v3804
  %v3807 = vmul.f32 1.0, %v3806
  %v3808 = vrcp.pop %v3805
  %v3809 = vmul.f32 1.0, %v3808
  %v3810 = vmul.f32 %v3793, %v3661
  %v3811 = vmul.f32 %v3795, %v3662
  %v3812 = vmul.f32 %v3781, %v3796
  %v3813 = vmul.f32 %v3783, %v3797
  %v3814 = vadd.f32 %v3810, %v3812
  %v3815 = vadd.f32 %v3811, %v3813
  %v3816 = vtanh.pop %v3814
  %v3817 = vtanh.pop %v3815
  %v3818 = vmul.f32 %v3807, %v3816
  %v3819 = vmul.f32 %v3809, %v3817
  %v3820 = vpack.c.bf16 %v3819, %v3818
  %s3821 = scalar_lea.vmem [#allocation4], 56
  %3822 = vst [vmem:[%s3821] sm:$0xff] %v3820
  %v3823 = vld [vmem:[%s7] sm:$0xf]
  %v3824 = vld [vmem:[%s7 + $0x4] sm:$0xf]
  %v3825 = vld [vmem:[%s7 + $0x8] sm:$0xf]
  %v3826 = vld [vmem:[%s7 + $0xc] sm:$0xf]
  %v3827 = vld [vmem:[%s7 + $0x10] sm:$0xf]
  %v3828 = vld [vmem:[%s7 + $0x14] sm:$0xf]
  %v3829 = vld [vmem:[%s7 + $0x18] sm:$0xf]
  %v3830 = vld [vmem:[%s7 + $0x1c] sm:$0xf]
  %v3831 = vld [vmem:[%s7 + $0x20] sm:$0xf]
  %v3832 = vld [vmem:[%s7 + $0x24] sm:$0xf]
  %v3833 = vld [vmem:[%s7 + $0x28] sm:$0xf]
  %v3834 = vld [vmem:[%s7 + $0x2c] sm:$0xf]
  %v3835 = vld [vmem:[%s7 + $0x30] sm:$0xf]
  %v3836 = vld [vmem:[%s7 + $0x34] sm:$0xf]
  %v3837 = vld [vmem:[%s7 + $0x38] sm:$0xf]
  %v3838 = vld [vmem:[%s7 + $0x3c] sm:$0xf]
  %v3839 = vld [vmem:[%s8] sm:$0x1]
  %v3840 = vld [vmem:[%s9] sm:$0xf]
  %v3841 = vld [vmem:[%s9 + $0x4] sm:$0xf]
  %v3842 = vld [vmem:[%s9 + $0x8] sm:$0xf]
  %v3843 = vld [vmem:[%s9 + $0xc] sm:$0xf]
  %v3844 = vld [vmem:[%s9 + $0x10] sm:$0xf]
  %v3845 = vld [vmem:[%s9 + $0x14] sm:$0xf]
  %v3846 = vld [vmem:[%s9 + $0x18] sm:$0xf]
  %v3847 = vld [vmem:[%s9 + $0x1c] sm:$0xf]
  %v3848 = vld [vmem:[%s9 + $0x20] sm:$0xf]
  %v3849 = vld [vmem:[%s9 + $0x24] sm:$0xf]
  %v3850 = vld [vmem:[%s9 + $0x28] sm:$0xf]
  %v3851 = vld [vmem:[%s9 + $0x2c] sm:$0xf]
  %v3852 = vld [vmem:[%s9 + $0x30] sm:$0xf]
  %v3853 = vld [vmem:[%s9 + $0x34] sm:$0xf]
  %v3854 = vld [vmem:[%s9 + $0x38] sm:$0xf]
  %v3855 = vld [vmem:[%s9 + $0x3c] sm:$0xf]
  %v3856 = vld [vmem:[%s10] sm:$0x1]
  %v3857 = vld [vmem:[#allocation4] sm:$0xff]
  %v3858 = vld [vmem:[#allocation4 + $0x8] sm:$0xff]
  %v3859 = vld [vmem:[#allocation4 + $0x10] sm:$0xff]
  %v3860 = vld [vmem:[#allocation4 + $0x18] sm:$0xff]
  %v3861 = vld [vmem:[#allocation4 + $0x20] sm:$0xff]
  %v3862 = vld [vmem:[#allocation4 + $0x28] sm:$0xff]
  %v3863 = vld [vmem:[#allocation4 + $0x30] sm:$0xff]
  %v3864 = vld [vmem:[#allocation4 + $0x38] sm:$0xff]
  %v3866 = vlaneseq
  %v3867 = vshrl.u32 %v3866, 7
  %v3868 = vsub.s32 0, %v3867
  %v3869 = vrot.slane %v3839, %v3868
  %v3887 = vunpack.c.l.b16 %v3823
  %v3888 = vunpack.c.l.b16 %v3824
  %v3889 = vunpack.c.l.b16 %v3825
  %v3890 = vunpack.c.l.b16 %v3826
  %v3891 = vunpack.c.l.b16 %v3827
  %v3892 = vunpack.c.l.b16 %v3828
  %v3893 = vunpack.c.l.b16 %v3829
  %v3894 = vunpack.c.l.b16 %v3830
  %v3895 = vunpack.c.l.b16 %v3831
  %v3896 = vunpack.c.l.b16 %v3832
  %v3897 = vunpack.c.l.b16 %v3833
  %v3898 = vunpack.c.l.b16 %v3834
  %v3899 = vunpack.c.l.b16 %v3835
  %v3900 = vunpack.c.l.b16 %v3836
  %v3901 = vunpack.c.l.b16 %v3837
  %v3902 = vunpack.c.l.b16 %v3838
  %v3903 = vpack.c.b16 %v3888, %v3887
  %v3904 = vpack.c.b16 %v3890, %v3889
  %v3905 = vpack.c.b16 %v3892, %v3891
  %v3906 = vpack.c.b16 %v3894, %v3893
  %v3907 = vpack.c.b16 %v3896, %v3895
  %v3908 = vpack.c.b16 %v3898, %v3897
  %v3909 = vpack.c.b16 %v3900, %v3899
  %v3910 = vpack.c.b16 %v3902, %v3901
  %3919 = vmatprep.subr.bf16.mxu0 0
  %3920 = vmatpush1.bf16.msra.mxu0 %v3903
  %3921 = vmatprep.subr.bf16.mxu0 0
  %3922 = vmatpush1.bf16.msra.mxu0 %v3904
  %3923 = vmatprep.subr.bf16.mxu0 0
  %3924 = vmatpush1.bf16.msra.mxu0 %v3905
  %3925 = vmatprep.subr.bf16.mxu0 0
  %3926 = vmatpush1.bf16.msra.mxu0 %v3906
  %3927 = vmatprep.subr.bf16.mxu0 0
  %3928 = vmatpush1.bf16.msra.mxu0 %v3907
  %3929 = vmatprep.subr.bf16.mxu0 0
  %3930 = vmatpush1.bf16.msra.mxu0 %v3908
  %3931 = vmatprep.subr.bf16.mxu0 0
  %3932 = vmatpush1.bf16.msra.mxu0 %v3909
  %3933 = vmatprep.subr.bf16.mxu0 0
  %3934 = vmatpush1.bf16.msra.mxu0 %v3910
  %3935 = vmatprep.subr.bf16.mxu0 0
  %3936 = vmatpush1.bf16.msra.mxu0 0
  %3937 = vmatprep.subr.bf16.mxu0 0
  %3938 = vmatpush1.bf16.msra.mxu0 0
  %3939 = vmatprep.subr.bf16.mxu0 0
  %3940 = vmatpush1.bf16.msra.mxu0 0
  %3941 = vmatprep.subr.bf16.mxu0 0
  %3942 = vmatpush1.bf16.msra.mxu0 0
  %3943 = vmatprep.subr.bf16.mxu0 0
  %3944 = vmatpush1.bf16.msra.mxu0 0
  %3945 = vmatprep.subr.bf16.mxu0 0
  %3946 = vmatpush1.bf16.msra.mxu0 0
  %3947 = vmatprep.subr.bf16.mxu0 0
  %3948 = vmatpush1.bf16.msra.mxu0 0
  %3949 = vmatprep.subr.bf16.mxu0 0
  %3950 = vmatpush1.bf16.msra.mxu0 0
  %3951 = vmatprep.mubr.bf16.mxu0 0
  %3952 = vmatmul.mubr.bf16.gmra.mrb[0].mxu0 %v3857
  %v3953 = vpop.f32.mrb[0].mxu0
  %v3954 = vadd.f32 %v3869, %v3953
  %v3955 = vpop.f32.mrb[0].mxu0
  %v3956 = vpop.f32.mrb[0].mxu0
  %v3957 = vadd.f32 %v3869, %v3956
  %v3958 = vpop.f32.mrb[0].mxu0
  %3959 = vmatprep.mubr.bf16.mxu0 0
  %3960 = vmatmul.mubr.bf16.gmra.mrb[0].mxu0 %v3858
  %v3961 = vpop.f32.mrb[0].mxu0
  %v3962 = vadd.f32 %v3869, %v3961
  %v3963 = vpop.f32.mrb[0].mxu0
  %v3964 = vpop.f32.mrb[0].mxu0
  %v3965 = vadd.f32 %v3869, %v3964
  %v3966 = vpop.f32.mrb[0].mxu0
  %3967 = vmatprep.mubr.bf16.mxu0 0
  %3968 = vmatmul.mubr.bf16.gmra.mrb[0].mxu0 %v3859
  %v3969 = vpop.f32.mrb[0].mxu0
  %v3970 = vadd.f32 %v3869, %v3969
  %v3971 = vpop.f32.mrb[0].mxu0
  %v3972 = vpop.f32.mrb[0].mxu0
  %v3973 = vadd.f32 %v3869, %v3972
  %v3974 = vpop.f32.mrb[0].mxu0
  %3975 = vmatprep.mubr.bf16.mxu0 0
  %3976 = vmatmul.mubr.bf16.gmra.mrb[0].mxu0 %v3860
  %v3977 = vpop.f32.mrb[0].mxu0
  %v3978 = vadd.f32 %v3869, %v3977
  %v3979 = vpop.f32.mrb[0].mxu0
  %v3980 = vpop.f32.mrb[0].mxu0
  %v3981 = vadd.f32 %v3869, %v3980
  %v3982 = vpop.f32.mrb[0].mxu0
  %3983 = vmatprep.mubr.bf16.mxu0 0
  %3984 = vmatmul.mubr.bf16.gmra.mrb[0].mxu0 %v3861
  %v3985 = vpop.f32.mrb[0].mxu0
  %v3986 = vadd.f32 %v3869, %v3985
  %v3987 = vpop.f32.mrb[0].mxu0
  %v3988 = vpop.f32.mrb[0].mxu0
  %v3989 = vadd.f32 %v3869, %v3988
  %v3990 = vpop.f32.mrb[0].mxu0
  %3991 = vmatprep.mubr.bf16.mxu0 0
  %3992 = vmatmul.mubr.bf16.gmra.mrb[0].mxu0 %v3862
  %v3993 = vpop.f32.mrb[0].mxu0
  %v3994 = vadd.f32 %v3869, %v3993
  %v3995 = vpop.f32.mrb[0].mxu0
  %v3996 = vpop.f32.mrb[0].mxu0
  %v3997 = vadd.f32 %v3869, %v3996
  %v3998 = vpop.f32.mrb[0].mxu0
  %3999 = vmatprep.mubr.bf16.mxu0 0
  %4000 = vmatmul.mubr.bf16.gmra.mrb[0].mxu0 %v3863
  %v4001 = vpop.f32.mrb[0].mxu0
  %v4002 = vadd.f32 %v3869, %v4001
  %v4003 = vpop.f32.mrb[0].mxu0
  %v4004 = vpop.f32.mrb[0].mxu0
  %v4005 = vadd.f32 %v3869, %v4004
  %v4006 = vpop.f32.mrb[0].mxu0
  %4007 = vmatprep.mubr.bf16.mxu0 0
  %4008 = vmatmul.mubr.bf16.gmra.mrb[0].mxu0 %v3864
  %v4009 = vpop.f32.mrb[0].mxu0
  %v4010 = vadd.f32 %v3869, %v4009
  %v4011 = vpop.f32.mrb[0].mxu0
  %v4012 = vpop.f32.mrb[0].mxu0
  %v4013 = vadd.f32 %v3869, %v4012
  %v4014 = vpop.f32.mrb[0].mxu0
  %4015 = vdwg.mxu0
  %v4016 = vmax.f32 %v3954, 0.0
  %v4017 = vmax.f32 %v3957, 0.0
  %v4018 = vmax.f32 %v3962, 0.0
  %v4019 = vmax.f32 %v3965, 0.0
  %v4020 = vmax.f32 %v3970, 0.0
  %v4021 = vmax.f32 %v3973, 0.0
  %v4022 = vmax.f32 %v3978, 0.0
  %v4023 = vmax.f32 %v3981, 0.0
  %v4024 = vmax.f32 %v3986, 0.0
  %v4025 = vmax.f32 %v3989, 0.0
  %v4026 = vmax.f32 %v3994, 0.0
  %v4027 = vmax.f32 %v3997, 0.0
  %v4028 = vmax.f32 %v4002, 0.0
  %v4029 = vmax.f32 %v4005, 0.0
  %v4030 = vmax.f32 %v4010, 0.0
  %v4031 = vmax.f32 %v4013, 0.0
  %v4032 = vpack.c.bf16 %v4017, %v4016
  %v4033 = vpack.c.bf16 %v4019, %v4018
  %v4034 = vpack.c.bf16 %v4021, %v4020
  %v4035 = vpack.c.bf16 %v4023, %v4022
  %v4036 = vpack.c.bf16 %v4025, %v4024
  %v4037 = vpack.c.bf16 %v4027, %v4026
  %v4038 = vpack.c.bf16 %v4029, %v4028
  %v4039 = vpack.c.bf16 %v4031, %v4030
  %v4041 = vlaneseq
  %v4042 = vshrl.u32 %v4041, 7
  %v4043 = vsub.s32 0, %v4042
  %v4044 = vrot.slane %v3856, %v4043
  %v4062 = vunpack.c.l.b16 %v3840
  %v4063 = vunpack.c.l.b16 %v3841
  %v4064 = vunpack.c.l.b16 %v3842
  %v4065 = vunpack.c.l.b16 %v3843
  %v4066 = vunpack.c.l.b16 %v3844
  %v4067 = vunpack.c.l.b16 %v3845
  %v4068 = vunpack.c.l.b16 %v3846
  %v4069 = vunpack.c.l.b16 %v3847
  %v4070 = vunpack.c.l.b16 %v3848
  %v4071 = vunpack.c.l.b16 %v3849
  %v4072 = vunpack.c.l.b16 %v3850
  %v4073 = vunpack.c.l.b16 %v3851
  %v4074 = vunpack.c.l.b16 %v3852
  %v4075 = vunpack.c.l.b16 %v3853
  %v4076 = vunpack.c.l.b16 %v3854
  %v4077 = vunpack.c.l.b16 %v3855
  %v4078 = vpack.c.b16 %v4063, %v4062
  %v4079 = vpack.c.b16 %v4065, %v4064
  %v4080 = vpack.c.b16 %v4067, %v4066
  %v4081 = vpack.c.b16 %v4069, %v4068
  %v4082 = vpack.c.b16 %v4071, %v4070
  %v4083 = vpack.c.b16 %v4073, %v4072
  %v4084 = vpack.c.b16 %v4075, %v4074
  %v4085 = vpack.c.b16 %v4077, %v4076
  %4094 = vmatprep.subr.bf16.mxu0 0
  %4095 = vmatpush1.bf16.msra.mxu0 %v4078
  %4096 = vmatprep.subr.bf16.mxu0 0
  %4097 = vmatpush1.bf16.msra.mxu0 %v4079
  %4098 = vmatprep.subr.bf16.mxu0 0
  %4099 = vmatpush1.bf16.msra.mxu0 %v4080
  %4100 = vmatprep.subr.bf16.mxu0 0
  %4101 = vmatpush1.bf16.msra.mxu0 %v4081
  %4102 = vmatprep.subr.bf16.mxu0 0
  %4103 = vmatpush1.bf16.msra.mxu0 %v4082
  %4104 = vmatprep.subr.bf16.mxu0 0
  %4105 = vmatpush1.bf16.msra.mxu0 %v4083
  %4106 = vmatprep.subr.bf16.mxu0 0
  %4107 = vmatpush1.bf16.msra.mxu0 %v4084
  %4108 = vmatprep.subr.bf16.mxu0 0
  %4109 = vmatpush1.bf16.msra.mxu0 %v4085
  %4110 = vmatprep.subr.bf16.mxu0 0
  %4111 = vmatpush1.bf16.msra.mxu0 0
  %4112 = vmatprep.subr.bf16.mxu0 0
  %4113 = vmatpush1.bf16.msra.mxu0 0
  %4114 = vmatprep.subr.bf16.mxu0 0
  %4115 = vmatpush1.bf16.msra.mxu0 0
  %4116 = vmatprep.subr.bf16.mxu0 0
  %4117 = vmatpush1.bf16.msra.mxu0 0
  %4118 = vmatprep.subr.bf16.mxu0 0
  %4119 = vmatpush1.bf16.msra.mxu0 0
  %4120 = vmatprep.subr.bf16.mxu0 0
  %4121 = vmatpush1.bf16.msra.mxu0 0
  %4122 = vmatprep.subr.bf16.mxu0 0
  %4123 = vmatpush1.bf16.msra.mxu0 0
  %4124 = vmatprep.subr.bf16.mxu0 0
  %4125 = vmatpush1.bf16.msra.mxu0 0
  %4126 = vmatprep.mubr.bf16.mxu0 0
  %4127 = vmatmul.mubr.bf16.gmra.mrb[0].mxu0 %v4032
  %v4128 = vpop.f32.mrb[0].mxu0
  %v4129 = vadd.f32 %v4044, %v4128
  %v4130 = vpop.f32.mrb[0].mxu0
  %v4131 = vpop.f32.mrb[0].mxu0
  %v4132 = vadd.f32 %v4044, %v4131
  %v4133 = vpop.f32.mrb[0].mxu0
  %4134 = vmatprep.mubr.bf16.mxu0 0
  %4135 = vmatmul.mubr.bf16.gmra.mrb[0].mxu0 %v4033
  %v4136 = vpop.f32.mrb[0].mxu0
  %v4137 = vadd.f32 %v4044, %v4136
  %v4138 = vpop.f32.mrb[0].mxu0
  %v4139 = vpop.f32.mrb[0].mxu0
  %v4140 = vadd.f32 %v4044, %v4139
  %v4141 = vpop.f32.mrb[0].mxu0
  %4142 = vmatprep.mubr.bf16.mxu0 0
  %4143 = vmatmul.mubr.bf16.gmra.mrb[0].mxu0 %v4034
  %v4144 = vpop.f32.mrb[0].mxu0
  %v4145 = vadd.f32 %v4044, %v4144
  %v4146 = vpop.f32.mrb[0].mxu0
  %v4147 = vpop.f32.mrb[0].mxu0
  %v4148 = vadd.f32 %v4044, %v4147
  %v4149 = vpop.f32.mrb[0].mxu0
  %4150 = vmatprep.mubr.bf16.mxu0 0
  %4151 = vmatmul.mubr.bf16.gmra.mrb[0].mxu0 %v4035
  %v4152 = vpop.f32.mrb[0].mxu0
  %v4153 = vadd.f32 %v4044, %v4152
  %v4154 = vpop.f32.mrb[0].mxu0
  %v4155 = vpop.f32.mrb[0].mxu0
  %v4156 = vadd.f32 %v4044, %v4155
  %v4157 = vpop.f32.mrb[0].mxu0
  %4158 = vmatprep.mubr.bf16.mxu0 0
  %4159 = vmatmul.mubr.bf16.gmra.mrb[0].mxu0 %v4036
  %v4160 = vpop.f32.mrb[0].mxu0
  %v4161 = vadd.f32 %v4044, %v4160
  %v4162 = vpop.f32.mrb[0].mxu0
  %v4163 = vpop.f32.mrb[0].mxu0
  %v4164 = vadd.f32 %v4044, %v4163
  %v4165 = vpop.f32.mrb[0].mxu0
  %4166 = vmatprep.mubr.bf16.mxu0 0
  %4167 = vmatmul.mubr.bf16.gmra.mrb[0].mxu0 %v4037
  %v4168 = vpop.f32.mrb[0].mxu0
  %v4169 = vadd.f32 %v4044, %v4168
  %v4170 = vpop.f32.mrb[0].mxu0
  %v4171 = vpop.f32.mrb[0].mxu0
  %v4172 = vadd.f32 %v4044, %v4171
  %v4173 = vpop.f32.mrb[0].mxu0
  %4174 = vmatprep.mubr.bf16.mxu0 0
  %4175 = vmatmul.mubr.bf16.gmra.mrb[0].mxu0 %v4038
  %v4176 = vpop.f32.mrb[0].mxu0
  %v4177 = vadd.f32 %v4044, %v4176
  %v4178 = vpop.f32.mrb[0].mxu0
  %v4179 = vpop.f32.mrb[0].mxu0
  %v4180 = vadd.f32 %v4044, %v4179
  %v4181 = vpop.f32.mrb[0].mxu0
  %4182 = vmatprep.mubr.bf16.mxu0 0
  %4183 = vmatmul.mubr.bf16.gmra.mrb[0].mxu0 %v4039
  %v4184 = vpop.f32.mrb[0].mxu0
  %v4185 = vadd.f32 %v4044, %v4184
  %v4186 = vpop.f32.mrb[0].mxu0
  %v4187 = vpop.f32.mrb[0].mxu0
  %v4188 = vadd.f32 %v4044, %v4187
  %v4189 = vpop.f32.mrb[0].mxu0
  %4190 = vdwg.mxu0
  %4191 = vst [vmem:[%s11] sm:$0xff] %v4129
  %4192 = vst [vmem:[%s11 + $0x8] sm:$0xff] %v4132
  %4193 = vst [vmem:[%s11 + $0x10] sm:$0xff] %v4137
  %4194 = vst [vmem:[%s11 + $0x18] sm:$0xff] %v4140
  %4195 = vst [vmem:[%s11 + $0x20] sm:$0xff] %v4145
  %4196 = vst [vmem:[%s11 + $0x28] sm:$0xff] %v4148
  %4197 = vst [vmem:[%s11 + $0x30] sm:$0xff] %v4153
  %4198 = vst [vmem:[%s11 + $0x38] sm:$0xff] %v4156
  %4199 = vst [vmem:[%s11 + $0x40] sm:$0xff] %v4161
  %4200 = vst [vmem:[%s11 + $0x48] sm:$0xff] %v4164
  %4201 = vst [vmem:[%s11 + $0x50] sm:$0xff] %v4169
  %4202 = vst [vmem:[%s11 + $0x58] sm:$0xff] %v4172
  %4203 = vst [vmem:[%s11 + $0x60] sm:$0xff] %v4177
  %4204 = vst [vmem:[%s11 + $0x68] sm:$0xff] %v4180
  %4205 = vst [vmem:[%s11 + $0x70] sm:$0xff] %v4185
  %4206 = vst [vmem:[%s11 + $0x78] sm:$0xff] %v4188
  // Predicated region
  $region46: #{model_forward.1} parent=0 // pred_check
    _
  $region47: #{model_forward.1} parent=0 // pred_check_branch
    %4208 = sbr.rel (0) target = $region49
  $region48: #{model_forward.1} parent=0 // pred_region
    _
  $region49: #{model_forward.1} parent=0 // pred_fallthru
    _
  // Predicated region
  $region50: #{model_forward.1} parent=0 // pred_check
    _
  $region51: #{model_forward.1} parent=0 // pred_check_branch
    %4210 = sbr.rel (0) target = $region53
  $region52: #{model_forward.1} parent=0 // pred_region
    _
  $region53: #{model_forward.1} parent=0 // pred_fallthru
    _

</llo_original>
